<compile_context>
chip_gen: v6e
topology: v6e:2x2x1
jax: 0.10.0
libtpu: 0.0.40
codegen_flags: <defaults>
</compile_context>

<pallas_src>
import functools
import math

import jax
import jax.numpy as jnp
from jax.experimental import pallas as pl
from jax.experimental.pallas import tpu as pltpu


# -----------------------------------------------------------------------------
# Fused Hyena implicit-filter kernel:
#     positional embedding  ->  Sin MLP  ->  exponential modulation
# Output: the filter in transposed (d_model, TILE_S) tiles (seq on the lane axis).
# -----------------------------------------------------------------------------
def _hyena_filter_kernel(freq_ref, w1_ref, b1_ref, w2_ref, b2_ref, w3_ref, b3_ref,
                         w4_ref, deltas_ref, k_ref, *, seq_len, bands, shift):
    _, tile = k_ref.shape                           # (d_model, TILE_S)

    # ---- positional embedding, built in-register, lane-dense (seq on lanes) ----
    pid = pl.program_id(0)
    lane = jax.lax.broadcasted_iota(jnp.int32, (1, tile), 1)
    pos = (pid * tile + lane).astype(jnp.float32)   # global position 0 .. L_pad-1
    inv_len_m1 = 1.0 / (seq_len - 1) if seq_len > 1 else 0.0   # guard seq_len == 1
    t_row = pos * inv_len_m1                        # torch.linspace(0, 1, seq_len)[pos]
    omega = pos * (2.0 * math.pi / seq_len)         # w = 2*pi*t_rescaled/seq_len

    # ---- first Linear(emb_dim -> order): broadcast FMAs over the tiny feature
    #      axis, so no lane-axis concatenate and no oddly-shaped matmul is needed ----
    w1 = w1_ref[...]                                # (order, 1 + 2*bands)
    h = w1[:, 0:1] * t_row + b1_ref[...]            # (order, T)
    f_slope = ((bands - 1) - 1e-4) / (bands - 1) if bands > 1 else 0.0
    for b in range(bands):                          # static unroll (bands = 1 here)
        fb = 1e-4 + b * f_slope                     # torch.linspace(1e-4, bands-1, bands)[b]
        theta = fb * omega                          # (1, T)
        h = h + w1[:, 1 + b:2 + b] * jnp.cos(theta) \
              - w1[:, 1 + bands + b:2 + bands + b] * jnp.sin(theta)

    freq = freq_ref[...]                            # (order, 1): Sin activation frequency
    h = jnp.sin(freq * h)
    h = jnp.dot(w2_ref[...], h, preferred_element_type=jnp.float32) + b2_ref[...]
    h = jnp.sin(freq * h)
    h = jnp.dot(w3_ref[...], h, preferred_element_type=jnp.float32) + b3_ref[...]
    h = jnp.sin(freq * h)
    h = jnp.dot(w4_ref[...], h, preferred_element_type=jnp.float32)   # (d_model, T)

    # ---- ExponentialModulation: h * (exp(-t * |deltas|) + shift) -----------------
    decay = jnp.exp(-t_row * jnp.abs(deltas_ref[...]))                # (d_model, T)
    scale = decay if shift == 0.0 else decay + shift
    k_ref[...] = (h * scale).astype(k_ref.dtype)


def hyena_filter_pallas(fp, L, seq_len):
    """Pallas implementation of HyenaFilter.filter(L); returns the filter transposed (d_model, L)."""
    order, emb_dim = fp["w1"].shape
    d_model = fp["w4"].shape[0]
    assert emb_dim % 2 == 1 and emb_dim >= 3, "emb_dim must be odd and >= 3"
    bands = (emb_dim - 1) // 2

    tile = 512 if L >= 512 else 128                 # lane-dense tiles, multiple of 128
    l_pad = ((L + tile - 1) // tile) * tile
    grid = (l_pad // tile,)

    def _const_spec(a):                             # small weight, same block every grid step
        return pl.BlockSpec(a.shape, lambda *_: (0,) * a.ndim)

    args = (fp["freq"], fp["w1"], fp["b1"], fp["w2"], fp["b2"],
            fp["w3"], fp["b3"], fp["w4"], fp["deltas"])

    cost = pl.CostEstimate(
        flops=2 * l_pad * (order * (1 + 2 * bands) + 2 * order * order + d_model * order),
        transcendentals=l_pad * (2 * bands + 3 * order + d_model),
        bytes_accessed=4 * (l_pad * d_model + sum(int(a.size) for a in args)),
    )

    kernel = functools.partial(_hyena_filter_kernel, seq_len=seq_len, bands=bands, shift=0.0)
    k_t = pl.pallas_call(
        kernel,
        grid=grid,
        in_specs=[_const_spec(a) for a in args],
        out_specs=pl.BlockSpec((d_model, tile), lambda i: (0, i)),
        out_shape=jax.ShapeDtypeStruct((d_model, l_pad), jnp.float32),
        compiler_params=pltpu.CompilerParams(dimension_semantics=("parallel",)),
        cost_estimate=cost,
    )(*args)
    return k_t[:, :L]


# -----------------------------------------------------------------------------
# Pure-JAX reference of the filter (mirrors the PyTorch code path exactly).
# -----------------------------------------------------------------------------
def hyena_filter_reference(fp, L, seq_len):
    order, emb_dim = fp["w1"].shape
    bands = (emb_dim - 1) // 2
    hp = jax.lax.Precision.HIGHEST
    t = jnp.linspace(0.0, 1.0, seq_len, dtype=jnp.float32)[:, None]          # (S, 1)
    t_res = jnp.linspace(0.0, seq_len - 1, seq_len, dtype=jnp.float32)[:, None]
    omega = 2.0 * math.pi * t_res / seq_len
    f = jnp.linspace(1e-4, bands - 1, bands, dtype=jnp.float32)[None, :]     # (1, bands)
    z = jnp.concatenate([t, jnp.cos(f * omega), -jnp.sin(f * omega)], axis=-1)[:L]
    freq = fp["freq"][:, 0][None, :]                                         # (1, order)
    h = jnp.sin(freq * (jnp.matmul(z, fp["w1"].T, precision=hp) + fp["b1"][:, 0]))
    h = jnp.sin(freq * (jnp.matmul(h, fp["w2"].T, precision=hp) + fp["b2"][:, 0]))
    h = jnp.sin(freq * (jnp.matmul(h, fp["w3"].T, precision=hp) + fp["b3"][:, 0]))
    h = jnp.matmul(h, fp["w4"].T, precision=hp)                              # (L, d_model)
    decay = jnp.exp(-t[:L] * jnp.abs(fp["deltas"][:, 0])[None, :])           # (L, d_model)
    return (h * decay).T                                                     # (d_model, L)


# -----------------------------------------------------------------------------
# Rest of the HyenaBlock forward (XLA glue, identical for both filter paths).
# -----------------------------------------------------------------------------
def fftconv_jax(u, k, D):
    # TODO(synk): FFT has no Pallas/Mosaic primitive; the circular convolution stays in XLA.
    seqlen = u.shape[-1]
    fft_size = 2 * seqlen
    k_f = jnp.fft.rfft(k, n=fft_size) / fft_size
    u_f = jnp.fft.rfft(u.astype(k.dtype), n=fft_size)
    if u.ndim > 3:
        k_f = k_f[:, None]
    y = jnp.fft.irfft(u_f * k_f, n=fft_size, norm="forward")[..., :seqlen]
    if D is not None:
        y = y + u * D[..., None]
    return y.astype(u.dtype)


def hyena_block_forward(params, u, l_max, filter_impl):
    """JAX replica of HyenaBlock.forward (HyenaOperator with order=2, filter_order=64, emb_dim=3)."""
    hp = jax.lax.Precision.HIGHEST
    _, l, _ = u.shape
    l_filter = min(l, l_max)

    u_proj = jnp.matmul(u, params["in_proj_w"].T, precision=hp) + params["in_proj_b"]
    u_t = jnp.swapaxes(u_proj, 1, 2)                            # (B, 3d, l)

    # depthwise Conv1d(kernel=3, padding=2, groups=3d), then [..., :l_filter]
    w = params["short_w"]                                       # (3d, 3)
    xp = jnp.pad(u_t, ((0, 0), (0, 0), (2, 2)))
    lc = l + 2
    uc = (w[None, :, 0:1] * xp[..., 0:lc]
          + w[None, :, 1:2] * xp[..., 1:lc + 1]
          + w[None, :, 2:3] * xp[..., 2:lc + 2]) + params["short_b"][None, :, None]
    uc = uc[..., :l_filter]

    x0, x1, v = jnp.split(uc, 3, axis=1)                        # each (B, d, L)

    k_t = filter_impl(params["filter"], l_filter, l_max)        # (d, L)  == k[0] in torch
    v = v * x1                                                  # dropout = identity at eval
    v = fftconv_jax(v, k_t, params["filter_bias"])
    y = jnp.swapaxes(v * x0, 1, 2)                              # (B, L, d)
    y = jnp.matmul(y, params["out_proj_w"].T, precision=hp) + params["out_proj_b"]
    return y


def init_params(key, d_model, filter_order=64, emb_dim=3):
    inner = 3 * d_model
    ks = jax.random.split(key, 16)
    n = lambda k, shape, s: s * jax.random.normal(k, shape, jnp.float32)
    fp = {
        "freq": jnp.ones((filter_order, 1), jnp.float32),       # Sin(dim=order, w=1)
        "w1": n(ks[0], (filter_order, emb_dim), 1.0 / math.sqrt(emb_dim)),
        "b1": n(ks[1], (filter_order, 1), 0.1),
        "w2": n(ks[2], (filter_order, filter_order), 1.0 / math.sqrt(filter_order)),
        "b2": n(ks[3], (filter_order, 1), 0.1),
        "w3": n(ks[4], (filter_order, filter_order), 1.0 / math.sqrt(filter_order)),
        "b3": n(ks[5], (filter_order, 1), 0.1),
        "w4": n(ks[6], (d_model, filter_order), 1.0 / math.sqrt(filter_order)),
    }
    # ExponentialModulation deltas (deterministic buffer, lr=0)
    max_decay = math.log(0.01) / 0.3
    min_decay = math.log(0.01) / 1.5
    fp["deltas"] = jnp.linspace(min_decay, max_decay, d_model, dtype=jnp.float32)[:, None]
    return {
        "in_proj_w": n(ks[7], (inner, d_model), 1.0 / math.sqrt(d_model)),
        "in_proj_b": n(ks[8], (inner,), 0.1),
        "short_w": n(ks[9], (inner, 3), 1.0 / math.sqrt(3.0)),
        "short_b": n(ks[10], (inner,), 0.1),
        "out_proj_w": n(ks[11], (d_model, d_model), 1.0 / math.sqrt(d_model)),
        "out_proj_b": n(ks[12], (d_model,), 0.1),
        "filter_bias": n(ks[13], (d_model,), 0.1),
        "filter": fp,
    }


if __name__ == "__main__":
    # HyenaBlock(in_channels=16, out_channels=16, seq_len=128) at small shapes:
    # batch=2, d_model=16, l_max=128, input sequence length 128.
    batch, d_model, l_max = 2, 16, 128
    key = jax.random.PRNGKey(0)
    k_params, k_input = jax.random.split(key)
    params = init_params(k_params, d_model)
    u = jax.random.normal(k_input, (batch, l_max, d_model), jnp.float32)

    # Pallas-filter path (jitted) vs pure-JAX reference path (identical glue).
    pallas_fwd = jax.jit(functools.partial(hyena_block_forward,
                                           l_max=l_max, filter_impl=hyena_filter_pallas))
    y = pallas_fwd(params, u)
    jax.block_until_ready(y)

    y_ref = hyena_block_forward(params, u, l_max, hyena_filter_reference)
    k_t = hyena_filter_pallas(params["filter"], l_max, l_max)
    k_ref = hyena_filter_reference(params["filter"], l_max, l_max)
    jax.block_until_ready((y_ref, k_t, k_ref))

    assert k_t.shape == (d_model, l_max)
    assert y.shape == (batch, l_max, d_model)
    assert jnp.allclose(k_t, k_ref, atol=2e-3, rtol=2e-3), "filter mismatch vs reference"
    assert jnp.allclose(y, y_ref, atol=5e-3, rtol=5e-3), "HyenaBlock output mismatch vs reference"

    print("KERNEL_OK")
</pallas_src>

<mosaic_0001>
module attributes {stable_mosaic.version = 11 : i64} {
  func.func @_hyena_filter_kernel(%arg0: i32, %arg1: memref<64x1xf32, #tpu.memory_space<vmem>>, %arg2: memref<64x3xf32, #tpu.memory_space<vmem>>, %arg3: memref<64x1xf32, #tpu.memory_space<vmem>>, %arg4: memref<64x64xf32, #tpu.memory_space<vmem>>, %arg5: memref<64x1xf32, #tpu.memory_space<vmem>>, %arg6: memref<64x64xf32, #tpu.memory_space<vmem>>, %arg7: memref<64x1xf32, #tpu.memory_space<vmem>>, %arg8: memref<16x64xf32, #tpu.memory_space<vmem>>, %arg9: memref<16x1xf32, #tpu.memory_space<vmem>>, %arg10: memref<16x128xf32, #tpu.memory_space<vmem>>) attributes {dimension_semantics = [#tpu.dimension_semantics<parallel>], iteration_bounds = array<i64: 1>, scalar_prefetch = 0 : i64, scratch_operands = 0 : i64, tpu.core_type = #tpu.core_type<tc>, window_params = [{pipeline_mode = #tpu.pipeline_mode<synchronous>, transform_indices = @transform_0, window_bounds = array<i64: 64, 1>}, {pipeline_mode = #tpu.pipeline_mode<synchronous>, transform_indices = @transform_1, window_bounds = array<i64: 64, 3>}, {pipeline_mode = #tpu.pipeline_mode<synchronous>, transform_indices = @transform_2, window_bounds = array<i64: 64, 1>}, {pipeline_mode = #tpu.pipeline_mode<synchronous>, transform_indices = @transform_3, window_bounds = array<i64: 64, 64>}, {pipeline_mode = #tpu.pipeline_mode<synchronous>, transform_indices = @transform_4, window_bounds = array<i64: 64, 1>}, {pipeline_mode = #tpu.pipeline_mode<synchronous>, transform_indices = @transform_5, window_bounds = array<i64: 64, 64>}, {pipeline_mode = #tpu.pipeline_mode<synchronous>, transform_indices = @transform_6, window_bounds = array<i64: 64, 1>}, {pipeline_mode = #tpu.pipeline_mode<synchronous>, transform_indices = @transform_7, window_bounds = array<i64: 16, 64>}, {pipeline_mode = #tpu.pipeline_mode<synchronous>, transform_indices = @transform_8, window_bounds = array<i64: 16, 1>}, {transform_indices = @transform_9, window_bounds = array<i64: 16, 128>}]} {
    %0 = tpu.iota {dimensions = array<i32: 1>} : vector<1x128xi32>
    %c128_i32 = arith.constant 128 : i32
    %1 = arith.muli %arg0, %c128_i32 : i32
    %2 = vector.broadcast %1 : i32 to vector<1x128xi32>
    %3 = arith.addi %2, %0 : vector<1x128xi32>
    %4 = arith.sitofp %3 : vector<1x128xi32> to vector<1x128xf32>
    %cst = arith.constant 0.00787401571 : f32
    %5 = vector.broadcast %cst : f32 to vector<1x128xf32>
    %6 = arith.mulf %4, %5 : vector<1x128xf32>
    %cst_0 = arith.constant 0.0490873866 : f32
    %7 = vector.broadcast %cst_0 : f32 to vector<1x128xf32>
    %8 = arith.mulf %4, %7 : vector<1x128xf32>
    %c0 = arith.constant 0 : index
    %c0_1 = arith.constant 0 : index
    %9 = vector.load %arg2[%c0, %c0_1] : memref<64x3xf32, #tpu.memory_space<vmem>>, vector<64x3xf32>
    %10 = vector.extract_strided_slice %9 {offsets = [0, 0], sizes = [64, 1], strides = [1, 1]} : vector<64x3xf32> to vector<64x1xf32>
    %11 = vector.broadcast %10 : vector<64x1xf32> to vector<64x128xf32>
    %12 = vector.broadcast %6 : vector<1x128xf32> to vector<64x128xf32>
    %13 = arith.mulf %11, %12 : vector<64x128xf32>
    %c0_2 = arith.constant 0 : index
    %c0_3 = arith.constant 0 : index
    %14 = vector.load %arg3[%c0_2, %c0_3] : memref<64x1xf32, #tpu.memory_space<vmem>>, vector<64x1xf32>
    %15 = vector.broadcast %14 : vector<64x1xf32> to vector<64x128xf32>
    %16 = arith.addf %13, %15 : vector<64x128xf32>
    %cst_4 = arith.constant 9.99999974E-5 : f32
    %17 = vector.broadcast %cst_4 : f32 to vector<1x128xf32>
    %18 = arith.mulf %17, %8 : vector<1x128xf32>
    %19 = vector.extract_strided_slice %9 {offsets = [0, 1], sizes = [64, 1], strides = [1, 1]} : vector<64x3xf32> to vector<64x1xf32>
    %20 = math.cos %18 : vector<1x128xf32>
    %21 = vector.broadcast %19 : vector<64x1xf32> to vector<64x128xf32>
    %22 = vector.broadcast %20 : vector<1x128xf32> to vector<64x128xf32>
    %23 = arith.mulf %21, %22 : vector<64x128xf32>
    %24 = arith.addf %16, %23 : vector<64x128xf32>
    %25 = vector.extract_strided_slice %9 {offsets = [0, 2], sizes = [64, 1], strides = [1, 1]} : vector<64x3xf32> to vector<64x1xf32>
    %26 = math.sin %18 : vector<1x128xf32>
    %27 = vector.broadcast %25 : vector<64x1xf32> to vector<64x128xf32>
    %28 = vector.broadcast %26 : vector<1x128xf32> to vector<64x128xf32>
    %29 = arith.mulf %27, %28 : vector<64x128xf32>
    %30 = arith.subf %24, %29 : vector<64x128xf32>
    %c0_5 = arith.constant 0 : index
    %c0_6 = arith.constant 0 : index
    %31 = vector.load %arg1[%c0_5, %c0_6] : memref<64x1xf32, #tpu.memory_space<vmem>>, vector<64x1xf32>
    %32 = vector.broadcast %31 : vector<64x1xf32> to vector<64x128xf32>
    %33 = arith.mulf %32, %30 : vector<64x128xf32>
    %34 = math.sin %33 : vector<64x128xf32>
    %c0_7 = arith.constant 0 : index
    %c0_8 = arith.constant 0 : index
    %35 = vector.load %arg4[%c0_7, %c0_8] : memref<64x64xf32, #tpu.memory_space<vmem>>, vector<64x64xf32>
    %cst_9 = arith.constant dense<0.000000e+00> : vector<64x128xf32>
    %36 = tpu.matmul %35, %34, %cst_9 {dimension_numbers = #tpu.dot_dimension_numbers<[1], [0], [0], [1], [0, 0, 1, 1], [], []>} : vector<64x64xf32>, vector<64x128xf32>, vector<64x128xf32> -> vector<64x128xf32>
    %c0_10 = arith.constant 0 : index
    %c0_11 = arith.constant 0 : index
    %37 = vector.load %arg5[%c0_10, %c0_11] : memref<64x1xf32, #tpu.memory_space<vmem>>, vector<64x1xf32>
    %38 = vector.broadcast %37 : vector<64x1xf32> to vector<64x128xf32>
    %39 = arith.addf %36, %38 : vector<64x128xf32>
    %40 = vector.broadcast %31 : vector<64x1xf32> to vector<64x128xf32>
    %41 = arith.mulf %40, %39 : vector<64x128xf32>
    %42 = math.sin %41 : vector<64x128xf32>
    %c0_12 = arith.constant 0 : index
    %c0_13 = arith.constant 0 : index
    %43 = vector.load %arg6[%c0_12, %c0_13] : memref<64x64xf32, #tpu.memory_space<vmem>>, vector<64x64xf32>
    %cst_14 = arith.constant dense<0.000000e+00> : vector<64x128xf32>
    %44 = tpu.matmul %43, %42, %cst_14 {dimension_numbers = #tpu.dot_dimension_numbers<[1], [0], [0], [1], [0, 0, 1, 1], [], []>} : vector<64x64xf32>, vector<64x128xf32>, vector<64x128xf32> -> vector<64x128xf32>
    %c0_15 = arith.constant 0 : index
    %c0_16 = arith.constant 0 : index
    %45 = vector.load %arg7[%c0_15, %c0_16] : memref<64x1xf32, #tpu.memory_space<vmem>>, vector<64x1xf32>
    %46 = vector.broadcast %45 : vector<64x1xf32> to vector<64x128xf32>
    %47 = arith.addf %44, %46 : vector<64x128xf32>
    %48 = vector.broadcast %31 : vector<64x1xf32> to vector<64x128xf32>
    %49 = arith.mulf %48, %47 : vector<64x128xf32>
    %50 = math.sin %49 : vector<64x128xf32>
    %c0_17 = arith.constant 0 : index
    %c0_18 = arith.constant 0 : index
    %51 = vector.load %arg8[%c0_17, %c0_18] : memref<16x64xf32, #tpu.memory_space<vmem>>, vector<16x64xf32>
    %cst_19 = arith.constant dense<0.000000e+00> : vector<16x128xf32>
    %52 = tpu.matmul %51, %50, %cst_19 {dimension_numbers = #tpu.dot_dimension_numbers<[1], [0], [0], [1], [0, 0, 1, 1], [], []>} : vector<16x64xf32>, vector<64x128xf32>, vector<16x128xf32> -> vector<16x128xf32>
    %cst_20 = arith.constant 0.000000e+00 : f32
    %53 = vector.broadcast %cst_20 : f32 to vector<1x128xf32>
    %54 = arith.subf %53, %6 : vector<1x128xf32>
    %c0_21 = arith.constant 0 : index
    %c0_22 = arith.constant 0 : index
    %55 = vector.load %arg9[%c0_21, %c0_22] : memref<16x1xf32, #tpu.memory_space<vmem>>, vector<16x1xf32>
    %56 = math.absf %55 : vector<16x1xf32>
    %57 = vector.broadcast %54 : vector<1x128xf32> to vector<16x128xf32>
    %58 = vector.broadcast %56 : vector<16x1xf32> to vector<16x128xf32>
    %59 = arith.mulf %57, %58 : vector<16x128xf32>
    %60 = math.exp %59 : vector<16x128xf32>
    %61 = arith.mulf %52, %60 : vector<16x128xf32>
    %c0_23 = arith.constant 0 : index
    %c0_24 = arith.constant 0 : index
    %62 = vector.load %arg10[%c0_23, %c0_24] : memref<16x128xf32, #tpu.memory_space<vmem>>, vector<16x128xf32>
    tpu.vector_store %arg10[%c0_23, %c0_24], %61 {strides = array<i32>} : memref<16x128xf32, #tpu.memory_space<vmem>>, vector<16x128xf32>,
    return
  }
  func.func @transform_0(%arg0: i32) -> (i32, i32) {
    %c0_i32 = arith.constant 0 : i32
    %c0_i32_0 = arith.constant 0 : i32
    %c0_i32_1 = arith.constant 0 : i32
    return %c0_i32, %c0_i32_0 : i32, i32
  }
  func.func @transform_1(%arg0: i32) -> (i32, i32) {
    %c0_i32 = arith.constant 0 : i32
    %c0_i32_0 = arith.constant 0 : i32
    %c0_i32_1 = arith.constant 0 : i32
    return %c0_i32, %c0_i32_0 : i32, i32
  }
  func.func @transform_2(%arg0: i32) -> (i32, i32) {
    %c0_i32 = arith.constant 0 : i32
    %c0_i32_0 = arith.constant 0 : i32
    %c0_i32_1 = arith.constant 0 : i32
    return %c0_i32, %c0_i32_0 : i32, i32
  }
  func.func @transform_3(%arg0: i32) -> (i32, i32) {
    %c0_i32 = arith.constant 0 : i32
    %c0_i32_0 = arith.constant 0 : i32
    %c0_i32_1 = arith.constant 0 : i32
    return %c0_i32, %c0_i32_0 : i32, i32
  }
  func.func @transform_4(%arg0: i32) -> (i32, i32) {
    %c0_i32 = arith.constant 0 : i32
    %c0_i32_0 = arith.constant 0 : i32
    %c0_i32_1 = arith.constant 0 : i32
    return %c0_i32, %c0_i32_0 : i32, i32
  }
  func.func @transform_5(%arg0: i32) -> (i32, i32) {
    %c0_i32 = arith.constant 0 : i32
    %c0_i32_0 = arith.constant 0 : i32
    %c0_i32_1 = arith.constant 0 : i32
    return %c0_i32, %c0_i32_0 : i32, i32
  }
  func.func @transform_6(%arg0: i32) -> (i32, i32) {
    %c0_i32 = arith.constant 0 : i32
    %c0_i32_0 = arith.constant 0 : i32
    %c0_i32_1 = arith.constant 0 : i32
    return %c0_i32, %c0_i32_0 : i32, i32
  }
  func.func @transform_7(%arg0: i32) -> (i32, i32) {
    %c0_i32 = arith.constant 0 : i32
    %c0_i32_0 = arith.constant 0 : i32
    %c0_i32_1 = arith.constant 0 : i32
    return %c0_i32, %c0_i32_0 : i32, i32
  }
  func.func @transform_8(%arg0: i32) -> (i32, i32) {
    %c0_i32 = arith.constant 0 : i32
    %c0_i32_0 = arith.constant 0 : i32
    %c0_i32_1 = arith.constant 0 : i32
    return %c0_i32, %c0_i32_0 : i32, i32
  }
  func.func @transform_9(%arg0: i32) -> (i32, i32) {
    %c0_i32 = arith.constant 0 : i32
    %c0_i32_0 = arith.constant 0 : i32
    return %c0_i32, %arg0 : i32, i32
  }
}

</mosaic_0001>

<llo_original>
// kernel: hyena_block_forward.1
$region0: #{hyena_block_forward.1}
  #allocation0 [shape = 'u32[]', space=smem, size = 0x4, offset = 0x4, fixed_abs, tag = 'smem constant byte address 0x4 - core index']
  #allocation1 [shape = 'u32[144,128]{1,0:T(1,128)}', space=vmem, size = 0x12000, scoped, tag = 'internal scratch']
  %s0 = inlined_call_operand.vmem [shape: f32[64,1], index: 0, kind: input, shape index: {}]
  %s1 = inlined_call_operand.vmem [shape: f32[64,3], index: 1, kind: input, shape index: {}]
  %s2 = inlined_call_operand.vmem [shape: f32[64,1], index: 2, kind: input, shape index: {}]
  %s3 = inlined_call_operand.vmem [shape: f32[64,64], index: 3, kind: input, shape index: {}]
  %s4 = inlined_call_operand.vmem [shape: f32[64,1], index: 4, kind: input, shape index: {}]
  %s5 = inlined_call_operand.vmem [shape: f32[64,64], index: 5, kind: input, shape index: {}]
  %s6 = inlined_call_operand.vmem [shape: f32[64,1], index: 6, kind: input, shape index: {}]
  %s7 = inlined_call_operand.vmem [shape: f32[16,64], index: 7, kind: input, shape index: {}]
  %s8 = inlined_call_operand.vmem [shape: f32[16,1], index: 8, kind: input, shape index: {}]
  %s9 = inlined_call_operand.vmem [shape: f32[16,128], index: 9, kind: output, shape index: {}]
  %s10 = sld [smem:[#allocation0]]
  $region46: #{hyena_block_forward.1} parent=0
    _
  %s12 = ssub.s32 1, %s10
  %s13 = scalar_select 0, %s12, %s10
  // Predicated region
  $region2: #{hyena_block_forward.1} parent=0 // pred_check
    _
  $region3: #{hyena_block_forward.1} parent=0 // pred_check_branch
    %15 = sbr.rel (0) target = $region5
  $region4: #{hyena_block_forward.1} parent=0 // pred_region
    _
  $region5: #{hyena_block_forward.1} parent=0 // pred_fallthru
    _
  // Predicated region
  $region6: #{hyena_block_forward.1} parent=0 // pred_check
    _
  $region7: #{hyena_block_forward.1} parent=0 // pred_check_branch
    %17 = sbr.rel (0) target = $region9
  $region8: #{hyena_block_forward.1} parent=0 // pred_region
    _
  $region9: #{hyena_block_forward.1} parent=0 // pred_fallthru
    _
  // Predicated region
  $region10: #{hyena_block_forward.1} parent=0 // pred_check
    _
  $region11: #{hyena_block_forward.1} parent=0 // pred_check_branch
    %19 = sbr.rel (0) target = $region13
  $region12: #{hyena_block_forward.1} parent=0 // pred_region
    _
  $region13: #{hyena_block_forward.1} parent=0 // pred_fallthru
    _
  // Predicated region
  $region14: #{hyena_block_forward.1} parent=0 // pred_check
    _
  $region15: #{hyena_block_forward.1} parent=0 // pred_check_branch
    %21 = sbr.rel (0) target = $region17
  $region16: #{hyena_block_forward.1} parent=0 // pred_region
    _
  $region17: #{hyena_block_forward.1} parent=0 // pred_fallthru
    _
  // Predicated region
  $region18: #{hyena_block_forward.1} parent=0 // pred_check
    _
  $region19: #{hyena_block_forward.1} parent=0 // pred_check_branch
    %23 = sbr.rel (0) target = $region21
  $region20: #{hyena_block_forward.1} parent=0 // pred_region
    _
  $region21: #{hyena_block_forward.1} parent=0 // pred_fallthru
    _
  // Predicated region
  $region22: #{hyena_block_forward.1} parent=0 // pred_check
    _
  $region23: #{hyena_block_forward.1} parent=0 // pred_check_branch
    %25 = sbr.rel (0) target = $region25
  $region24: #{hyena_block_forward.1} parent=0 // pred_region
    _
  $region25: #{hyena_block_forward.1} parent=0 // pred_fallthru
    _
  // Predicated region
  $region26: #{hyena_block_forward.1} parent=0 // pred_check
    _
  $region27: #{hyena_block_forward.1} parent=0 // pred_check_branch
    %27 = sbr.rel (0) target = $region29
  $region28: #{hyena_block_forward.1} parent=0 // pred_region
    _
  $region29: #{hyena_block_forward.1} parent=0 // pred_fallthru
    _
  // Predicated region
  $region30: #{hyena_block_forward.1} parent=0 // pred_check
    _
  $region31: #{hyena_block_forward.1} parent=0 // pred_check_branch
    %29 = sbr.rel (0) target = $region33
  $region32: #{hyena_block_forward.1} parent=0 // pred_region
    _
  $region33: #{hyena_block_forward.1} parent=0 // pred_fallthru
    _
  // Predicated region
  $region34: #{hyena_block_forward.1} parent=0 // pred_check
    _
  $region35: #{hyena_block_forward.1} parent=0 // pred_check_branch
    %31 = sbr.rel (0) target = $region37
  $region36: #{hyena_block_forward.1} parent=0 // pred_region
    _
  $region37: #{hyena_block_forward.1} parent=0 // pred_fallthru
    _
  %v32 = vlaneseq
  %v33 = vand.u32 %v32, 127
  %s34 = smul.u32 0, 128
  %v35 = vstv %s34
  %v36 = vadd.s32 %v35, %v33
  %v37 = vcvt.s32.f32 %v36
  %v38 = vmul.f32 %v37, 0.007874016
  %v39 = vmul.f32 %v37, 0.049087387
  %v40 = vld [vmem:[%s1] sm:$0xff]
  %v41 = vld [vmem:[%s1 + $0x8] sm:$0xff]
  %v42 = vld [vmem:[%s1 + $0x10] sm:$0xff]
  %v43 = vld [vmem:[%s1 + $0x18] sm:$0xff]
  %v44 = vld [vmem:[%s1 + $0x20] sm:$0xff]
  %v45 = vld [vmem:[%s1 + $0x28] sm:$0xff]
  %v46 = vld [vmem:[%s1 + $0x30] sm:$0xff]
  %v47 = vld [vmem:[%s1 + $0x38] sm:$0xff]
  %49 = vset.pattern.permute.xlu0 0
  %50 = vperm.xlu0 %49, %v40
  %v51 = vpop.permute.xlu0 %50
  %54 = vset.pattern.permute.xlu0 0
  %55 = vperm.xlu0 %54, %v41
  %v56 = vpop.permute.xlu0 %55
  %59 = vset.pattern.permute.xlu0 0
  %60 = vperm.xlu0 %59, %v42
  %v61 = vpop.permute.xlu0 %60
  %64 = vset.pattern.permute.xlu0 0
  %65 = vperm.xlu0 %64, %v43
  %v66 = vpop.permute.xlu0 %65
  %69 = vset.pattern.permute.xlu0 0
  %70 = vperm.xlu0 %69, %v44
  %v71 = vpop.permute.xlu0 %70
  %74 = vset.pattern.permute.xlu0 0
  %75 = vperm.xlu0 %74, %v45
  %v76 = vpop.permute.xlu0 %75
  %79 = vset.pattern.permute.xlu0 0
  %80 = vperm.xlu0 %79, %v46
  %v81 = vpop.permute.xlu0 %80
  %84 = vset.pattern.permute.xlu0 0
  %85 = vperm.xlu0 %84, %v47
  %v86 = vpop.permute.xlu0 %85
  %v88 = vmul.f32 %v51, %v38
  %v89 = vmul.f32 %v56, %v38
  %v90 = vmul.f32 %v61, %v38
  %v91 = vmul.f32 %v66, %v38
  %v92 = vmul.f32 %v71, %v38
  %v93 = vmul.f32 %v76, %v38
  %v94 = vmul.f32 %v81, %v38
  %v95 = vmul.f32 %v86, %v38
  %v96 = vld [vmem:[%s2] sm:$0xff]
  %v97 = vld [vmem:[%s2 + $0x8] sm:$0xff]
  %v98 = vld [vmem:[%s2 + $0x10] sm:$0xff]
  %v99 = vld [vmem:[%s2 + $0x18] sm:$0xff]
  %v100 = vld [vmem:[%s2 + $0x20] sm:$0xff]
  %v101 = vld [vmem:[%s2 + $0x28] sm:$0xff]
  %v102 = vld [vmem:[%s2 + $0x30] sm:$0xff]
  %v103 = vld [vmem:[%s2 + $0x38] sm:$0xff]
  %105 = vset.pattern.permute.xlu0 0
  %106 = vperm.xlu0 %105, %v96
  %v107 = vpop.permute.xlu0 %106
  %110 = vset.pattern.permute.xlu0 0
  %111 = vperm.xlu0 %110, %v97
  %v112 = vpop.permute.xlu0 %111
  %115 = vset.pattern.permute.xlu0 0
  %116 = vperm.xlu0 %115, %v98
  %v117 = vpop.permute.xlu0 %116
  %120 = vset.pattern.permute.xlu0 0
  %121 = vperm.xlu0 %120, %v99
  %v122 = vpop.permute.xlu0 %121
  %125 = vset.pattern.permute.xlu0 0
  %126 = vperm.xlu0 %125, %v100
  %v127 = vpop.permute.xlu0 %126
  %130 = vset.pattern.permute.xlu0 0
  %131 = vperm.xlu0 %130, %v101
  %v132 = vpop.permute.xlu0 %131
  %135 = vset.pattern.permute.xlu0 0
  %136 = vperm.xlu0 %135, %v102
  %v137 = vpop.permute.xlu0 %136
  %140 = vset.pattern.permute.xlu0 0
  %141 = vperm.xlu0 %140, %v103
  %v142 = vpop.permute.xlu0 %141
  %v144 = vadd.f32 %v88, %v107
  %v145 = vadd.f32 %v89, %v112
  %v146 = vadd.f32 %v90, %v117
  %v147 = vadd.f32 %v91, %v122
  %v148 = vadd.f32 %v92, %v127
  %v149 = vadd.f32 %v93, %v132
  %v150 = vadd.f32 %v94, %v137
  %v151 = vadd.f32 %v95, %v142
  %v152 = vmul.f32 %v39, 0.0001
  %v153 = vand.u32 2147483647, %v152
  %vm154 = vcmp.le.f32.partialorder %v153, 0.7853982
  %vm155 = vcmp.lt.s32.totalorder %v152, 0
  %v156 = vand.u32 %v152, 2139095040
  %v157 = vshrl.u32 %v156, 23
  %v158 = vsub.s32 %v157, 127
  %v159 = vand.u32 2147483647, %v152
  %v160 = vand.u32 %v159, 8388607
  %v161 = vor.u32 %v160, 8388608
  %v162 = vsub.s32 0, %v161
  %v163 = vadd.s32 %v158, 1
  %vm164 = vcmp.gt.s32.totalorder %v163, 0
  %v165 = vsel %vm164, %v163, 0
  %v166 = vshrl.u32 %v165, 5
  %v167 = vand.u32 %v165, 31
  %v168 = vsub.s32 32, %v167
  %v169 = vshrl.u32 683565275, %v168
  %v170 = vshll.u32 683565275, %v167
  %v171 = vshrl.u32 2475754826, %v168
  %v172 = vor.u32 %v170, %v171
  %v173 = vshll.u32 2475754826, %v167
  %v174 = vshrl.u32 2131351028, %v168
  %v175 = vor.u32 %v173, %v174
  %v176 = vshll.u32 2131351028, %v167
  %v177 = vshrl.u32 2102212464, %v168
  %v178 = vor.u32 %v176, %v177
  %v179 = vshll.u32 2102212464, %v167
  %v180 = vshrl.u32 920167782, %v168
  %v181 = vor.u32 %v179, %v180
  %v182 = vshll.u32 920167782, %v167
  %v183 = vshrl.u32 1326507024, %v168
  %v184 = vor.u32 %v182, %v183
  %vm185 = vcmp.lt.s32.totalorder %v166, 1
  %vm186 = vcmp.lt.s32.totalorder %v166, 2
  %vm187 = vcmp.lt.s32.totalorder %v166, 3
  %vm188 = vcmp.lt.s32.totalorder %v166, 4
  %v189 = vsel %vm185, %v169, %v172
  %v190 = vsel %vm188, %v178, 2102212464
  %v191 = vsel %vm187, %v175, %v190
  %v192 = vsel %vm186, %v189, %v191
  %v193 = vsel %vm185, %v172, %v175
  %v194 = vsel %vm188, %v181, 920167782
  %v195 = vsel %vm187, %v178, %v194
  %v196 = vsel %vm186, %v193, %v195
  %v197 = vsel %vm185, %v175, %v178
  %v198 = vsel %vm188, %v184, 1326507024
  %v199 = vsel %vm187, %v181, %v198
  %v200 = vsel %vm186, %v197, %v199
  %v201 = vshll.u32 %v161, 8
  %v202 = vmul.u32.u64.compose %v201, %v200
  %v203 = vextract.low.u32 %v202
  %v204 = vextract.high.u32 %v202
  %v205 = vmul.u32.u64.compose %v201, %v196
  %v206 = vextract.low.u32 %v205
  %v207 = vextract.high.u32 %v205
  %v208 = vmul.u32 %v201, %v192
  %v209 = vadd.s32 %v204, %v206
  %vm210 = vc.u32 %v204, %v206
  %v211 = vadd.s32 %v207, 1
  %v212 = vsel %vm210, %v211, %v207
  %v213 = vadd.s32 %v208, %v212
  %v214 = vadd.s32 %v213, 536870912
  %v215 = vshrl.u32 %v214, 30
  %v216 = vshll.u32 %v215, 30
  %v217 = vsub.s32 %v213, %v216
  %vm218 = vcmp.lt.s32.totalorder %v217, 0
  %v219 = vsub.s32 0, %v217
  %v220 = vsel %vm218, %v219, %v217
  %v221 = vclz %v220
  %v222 = vsub.s32 %v221, 2
  %vm223 = vcmp.gt.s32.totalorder 0, %v222
  %v224 = vsel %vm223, 0, %v222
  %v225 = vsub.s32 32, %v224
  %v226 = vshll.u32 %v217, %v224
  %v227 = vshrl.u32 %v209, %v225
  %v228 = vor.u32 %v226, %v227
  %v229 = vsub.s32 4294967266, %v224
  %v230 = vadd.s32 %v229, 127
  %v231 = vshll.u32 %v230, 23
  %v232 = vor.u32 4788187, %v231
  %v233 = vand.u32 2147483647, %v232
  %v235 = vcvt.s32.f32 %v228
  %v236 = vmul.f32 %v235, %v233
  %v237 = vxor.u32 %v236, 2147483648
  %v238 = vsel %vm155, %v237, %v236
  %v239 = vsub.s32 4, %v215
  %v240 = vsel %vm155, %v239, %v215
  %v241 = vsel %vm154, %v152, %v238
  %v242 = vsel %vm154, 0, %v240
  %v243 = vcosq.f32.pop %v241
  %v244 = vsinq.f32.pop %v241
  %vm245 = vweird.f32 %v152
  %v246 = vand.u32 %v242, 3
  %vm247 = vcmp.lt.s32.totalorder %v246, 2
  %vm248 = vcmp.eq.s32.totalorder %v246, 0
  %v249 = vxor.u32 %v244, 2147483648
  %v250 = vsel %vm248, %v243, %v249
  %vm251 = vcmp.eq.s32.totalorder %v246, 2
  %v252 = vxor.u32 %v243, 2147483648
  %v253 = vsel %vm251, %v252, %v244
  %v254 = vsel %vm247, %v250, %v253
  %v255 = vsel %vm245, nan, %v254
  %256 = vset.pattern.permute.xlu0 1
  %257 = vperm.xlu0 %256, %v40
  %v258 = vpop.permute.xlu0 %257
  %260 = vset.pattern.permute.xlu0 1
  %261 = vperm.xlu0 %260, %v41
  %v262 = vpop.permute.xlu0 %261
  %264 = vset.pattern.permute.xlu0 1
  %265 = vperm.xlu0 %264, %v42
  %v266 = vpop.permute.xlu0 %265
  %268 = vset.pattern.permute.xlu0 1
  %269 = vperm.xlu0 %268, %v43
  %v270 = vpop.permute.xlu0 %269
  %272 = vset.pattern.permute.xlu0 1
  %273 = vperm.xlu0 %272, %v44
  %v274 = vpop.permute.xlu0 %273
  %276 = vset.pattern.permute.xlu0 1
  %277 = vperm.xlu0 %276, %v45
  %v278 = vpop.permute.xlu0 %277
  %280 = vset.pattern.permute.xlu0 1
  %281 = vperm.xlu0 %280, %v46
  %v282 = vpop.permute.xlu0 %281
  %284 = vset.pattern.permute.xlu0 1
  %285 = vperm.xlu0 %284, %v47
  %v286 = vpop.permute.xlu0 %285
  %v288 = vmul.f32 %v258, %v255
  %v289 = vmul.f32 %v262, %v255
  %v290 = vmul.f32 %v266, %v255
  %v291 = vmul.f32 %v270, %v255
  %v292 = vmul.f32 %v274, %v255
  %v293 = vmul.f32 %v278, %v255
  %v294 = vmul.f32 %v282, %v255
  %v295 = vmul.f32 %v286, %v255
  %v296 = vadd.f32 %v144, %v288
  %v297 = vadd.f32 %v145, %v289
  %v298 = vadd.f32 %v146, %v290
  %v299 = vadd.f32 %v147, %v291
  %v300 = vadd.f32 %v148, %v292
  %v301 = vadd.f32 %v149, %v293
  %v302 = vadd.f32 %v150, %v294
  %v303 = vadd.f32 %v151, %v295
  %v304 = vand.u32 2147483647, %v152
  %vm305 = vcmp.le.f32.partialorder %v304, 0.7853982
  %vm306 = vcmp.lt.s32.totalorder %v152, 0
  %v307 = vand.u32 %v152, 2139095040
  %v308 = vshrl.u32 %v307, 23
  %v309 = vsub.s32 %v308, 127
  %v310 = vand.u32 2147483647, %v152
  %v311 = vand.u32 %v310, 8388607
  %v312 = vor.u32 %v311, 8388608
  %v313 = vsub.s32 0, %v312
  %v314 = vadd.s32 %v309, 1
  %vm315 = vcmp.gt.s32.totalorder %v314, 0
  %v316 = vsel %vm315, %v314, 0
  %v317 = vshrl.u32 %v316, 5
  %v318 = vand.u32 %v316, 31
  %v319 = vsub.s32 32, %v318
  %v320 = vshrl.u32 683565275, %v319
  %v321 = vshll.u32 683565275, %v318
  %v322 = vshrl.u32 2475754826, %v319
  %v323 = vor.u32 %v321, %v322
  %v324 = vshll.u32 2475754826, %v318
  %v325 = vshrl.u32 2131351028, %v319
  %v326 = vor.u32 %v324, %v325
  %v327 = vshll.u32 2131351028, %v318
  %v328 = vshrl.u32 2102212464, %v319
  %v329 = vor.u32 %v327, %v328
  %v330 = vshll.u32 2102212464, %v318
  %v331 = vshrl.u32 920167782, %v319
  %v332 = vor.u32 %v330, %v331
  %v333 = vshll.u32 920167782, %v318
  %v334 = vshrl.u32 1326507024, %v319
  %v335 = vor.u32 %v333, %v334
  %vm336 = vcmp.lt.s32.totalorder %v317, 1
  %vm337 = vcmp.lt.s32.totalorder %v317, 2
  %vm338 = vcmp.lt.s32.totalorder %v317, 3
  %vm339 = vcmp.lt.s32.totalorder %v317, 4
  %v340 = vsel %vm336, %v320, %v323
  %v341 = vsel %vm339, %v329, 2102212464
  %v342 = vsel %vm338, %v326, %v341
  %v343 = vsel %vm337, %v340, %v342
  %v344 = vsel %vm336, %v323, %v326
  %v345 = vsel %vm339, %v332, 920167782
  %v346 = vsel %vm338, %v329, %v345
  %v347 = vsel %vm337, %v344, %v346
  %v348 = vsel %vm336, %v326, %v329
  %v349 = vsel %vm339, %v335, 1326507024
  %v350 = vsel %vm338, %v332, %v349
  %v351 = vsel %vm337, %v348, %v350
  %v352 = vshll.u32 %v312, 8
  %v353 = vmul.u32.u64.compose %v352, %v351
  %v354 = vextract.low.u32 %v353
  %v355 = vextract.high.u32 %v353
  %v356 = vmul.u32.u64.compose %v352, %v347
  %v357 = vextract.low.u32 %v356
  %v358 = vextract.high.u32 %v356
  %v359 = vmul.u32 %v352, %v343
  %v360 = vadd.s32 %v355, %v357
  %vm361 = vc.u32 %v355, %v357
  %v362 = vadd.s32 %v358, 1
  %v363 = vsel %vm361, %v362, %v358
  %v364 = vadd.s32 %v359, %v363
  %v365 = vadd.s32 %v364, 536870912
  %v366 = vshrl.u32 %v365, 30
  %v367 = vshll.u32 %v366, 30
  %v368 = vsub.s32 %v364, %v367
  %vm369 = vcmp.lt.s32.totalorder %v368, 0
  %v370 = vsub.s32 0, %v368
  %v371 = vsel %vm369, %v370, %v368
  %v372 = vclz %v371
  %v373 = vsub.s32 %v372, 2
  %vm374 = vcmp.gt.s32.totalorder 0, %v373
  %v375 = vsel %vm374, 0, %v373
  %v376 = vsub.s32 32, %v375
  %v377 = vshll.u32 %v368, %v375
  %v378 = vshrl.u32 %v360, %v376
  %v379 = vor.u32 %v377, %v378
  %v380 = vsub.s32 4294967266, %v375
  %v381 = vadd.s32 %v380, 127
  %v382 = vshll.u32 %v381, 23
  %v383 = vor.u32 4788187, %v382
  %v384 = vand.u32 2147483647, %v383
  %v386 = vcvt.s32.f32 %v379
  %v387 = vmul.f32 %v386, %v384
  %v388 = vxor.u32 %v387, 2147483648
  %v389 = vsel %vm306, %v388, %v387
  %v390 = vsub.s32 4, %v366
  %v391 = vsel %vm306, %v390, %v366
  %v392 = vsel %vm305, %v152, %v389
  %v393 = vsel %vm305, 0, %v391
  %v394 = vcosq.f32.pop %v392
  %v395 = vsinq.f32.pop %v392
  %vm396 = vweird.f32 %v152
  %v397 = vadd.s32 %v393, 3
  %v398 = vand.u32 %v397, 3
  %vm399 = vcmp.lt.s32.totalorder %v398, 2
  %vm400 = vcmp.eq.s32.totalorder %v398, 0
  %v401 = vxor.u32 %v395, 2147483648
  %v402 = vsel %vm400, %v394, %v401
  %vm403 = vcmp.eq.s32.totalorder %v398, 2
  %v404 = vxor.u32 %v394, 2147483648
  %v405 = vsel %vm403, %v404, %v395
  %v406 = vsel %vm399, %v402, %v405
  %v407 = vsel %vm396, nan, %v406
  %408 = vset.pattern.permute.xlu0 2
  %409 = vperm.xlu0 %408, %v40
  %v410 = vpop.permute.xlu0 %409
  %412 = vset.pattern.permute.xlu0 2
  %413 = vperm.xlu0 %412, %v41
  %v414 = vpop.permute.xlu0 %413
  %416 = vset.pattern.permute.xlu0 2
  %417 = vperm.xlu0 %416, %v42
  %v418 = vpop.permute.xlu0 %417
  %420 = vset.pattern.permute.xlu0 2
  %421 = vperm.xlu0 %420, %v43
  %v422 = vpop.permute.xlu0 %421
  %424 = vset.pattern.permute.xlu0 2
  %425 = vperm.xlu0 %424, %v44
  %v426 = vpop.permute.xlu0 %425
  %428 = vset.pattern.permute.xlu0 2
  %429 = vperm.xlu0 %428, %v45
  %v430 = vpop.permute.xlu0 %429
  %432 = vset.pattern.permute.xlu0 2
  %433 = vperm.xlu0 %432, %v46
  %v434 = vpop.permute.xlu0 %433
  %436 = vset.pattern.permute.xlu0 2
  %437 = vperm.xlu0 %436, %v47
  %v438 = vpop.permute.xlu0 %437
  %v440 = vmul.f32 %v410, %v407
  %v441 = vmul.f32 %v414, %v407
  %v442 = vmul.f32 %v418, %v407
  %v443 = vmul.f32 %v422, %v407
  %v444 = vmul.f32 %v426, %v407
  %v445 = vmul.f32 %v430, %v407
  %v446 = vmul.f32 %v434, %v407
  %v447 = vmul.f32 %v438, %v407
  %v448 = vsub.f32 %v296, %v440
  %v449 = vsub.f32 %v297, %v441
  %v450 = vsub.f32 %v298, %v442
  %v451 = vsub.f32 %v299, %v443
  %v452 = vsub.f32 %v300, %v444
  %v453 = vsub.f32 %v301, %v445
  %v454 = vsub.f32 %v302, %v446
  %v455 = vsub.f32 %v303, %v447
  %v456 = vld [vmem:[%s0] sm:$0xff]
  %v457 = vld [vmem:[%s0 + $0x8] sm:$0xff]
  %v458 = vld [vmem:[%s0 + $0x10] sm:$0xff]
  %v459 = vld [vmem:[%s0 + $0x18] sm:$0xff]
  %v460 = vld [vmem:[%s0 + $0x20] sm:$0xff]
  %v461 = vld [vmem:[%s0 + $0x28] sm:$0xff]
  %v462 = vld [vmem:[%s0 + $0x30] sm:$0xff]
  %v463 = vld [vmem:[%s0 + $0x38] sm:$0xff]
  %465 = vset.pattern.permute.xlu0 0
  %466 = vperm.xlu0 %465, %v456
  %v467 = vpop.permute.xlu0 %466
  %470 = vset.pattern.permute.xlu0 0
  %471 = vperm.xlu0 %470, %v457
  %v472 = vpop.permute.xlu0 %471
  %475 = vset.pattern.permute.xlu0 0
  %476 = vperm.xlu0 %475, %v458
  %v477 = vpop.permute.xlu0 %476
  %480 = vset.pattern.permute.xlu0 0
  %481 = vperm.xlu0 %480, %v459
  %v482 = vpop.permute.xlu0 %481
  %485 = vset.pattern.permute.xlu0 0
  %486 = vperm.xlu0 %485, %v460
  %v487 = vpop.permute.xlu0 %486
  %490 = vset.pattern.permute.xlu0 0
  %491 = vperm.xlu0 %490, %v461
  %v492 = vpop.permute.xlu0 %491
  %495 = vset.pattern.permute.xlu0 0
  %496 = vperm.xlu0 %495, %v462
  %v497 = vpop.permute.xlu0 %496
  %500 = vset.pattern.permute.xlu0 0
  %501 = vperm.xlu0 %500, %v463
  %v502 = vpop.permute.xlu0 %501
  %v504 = vmul.f32 %v467, %v448
  %v505 = vmul.f32 %v472, %v449
  %v506 = vmul.f32 %v477, %v450
  %v507 = vmul.f32 %v482, %v451
  %v508 = vmul.f32 %v487, %v452
  %v509 = vmul.f32 %v492, %v453
  %v510 = vmul.f32 %v497, %v454
  %v511 = vmul.f32 %v502, %v455
  %v512 = vand.u32 2147483647, %v504
  %vm513 = vcmp.le.f32.partialorder %v512, 0.7853982
  %vm514 = vcmp.lt.s32.totalorder %v504, 0
  %v515 = vand.u32 %v504, 2139095040
  %v516 = vshrl.u32 %v515, 23
  %v517 = vsub.s32 %v516, 127
  %v518 = vand.u32 2147483647, %v504
  %v519 = vand.u32 %v518, 8388607
  %v520 = vor.u32 %v519, 8388608
  %v521 = vsub.s32 0, %v520
  %v522 = vadd.s32 %v517, 1
  %vm523 = vcmp.gt.s32.totalorder %v522, 0
  %v524 = vsel %vm523, %v522, 0
  %v525 = vshrl.u32 %v524, 5
  %v526 = vand.u32 %v524, 31
  %v527 = vsub.s32 32, %v526
  %v528 = vshrl.u32 683565275, %v527
  %v529 = vshll.u32 683565275, %v526
  %v530 = vshrl.u32 2475754826, %v527
  %v531 = vor.u32 %v529, %v530
  %v532 = vshll.u32 2475754826, %v526
  %v533 = vshrl.u32 2131351028, %v527
  %v534 = vor.u32 %v532, %v533
  %v535 = vshll.u32 2131351028, %v526
  %v536 = vshrl.u32 2102212464, %v527
  %v537 = vor.u32 %v535, %v536
  %v538 = vshll.u32 2102212464, %v526
  %v539 = vshrl.u32 920167782, %v527
  %v540 = vor.u32 %v538, %v539
  %v541 = vshll.u32 920167782, %v526
  %v542 = vshrl.u32 1326507024, %v527
  %v543 = vor.u32 %v541, %v542
  %vm544 = vcmp.lt.s32.totalorder %v525, 1
  %vm545 = vcmp.lt.s32.totalorder %v525, 2
  %vm546 = vcmp.lt.s32.totalorder %v525, 3
  %vm547 = vcmp.lt.s32.totalorder %v525, 4
  %v548 = vsel %vm544, %v528, %v531
  %v549 = vsel %vm547, %v537, 2102212464
  %v550 = vsel %vm546, %v534, %v549
  %v551 = vsel %vm545, %v548, %v550
  %v552 = vsel %vm544, %v531, %v534
  %v553 = vsel %vm547, %v540, 920167782
  %v554 = vsel %vm546, %v537, %v553
  %v555 = vsel %vm545, %v552, %v554
  %v556 = vsel %vm544, %v534, %v537
  %v557 = vsel %vm547, %v543, 1326507024
  %v558 = vsel %vm546, %v540, %v557
  %v559 = vsel %vm545, %v556, %v558
  %v560 = vshll.u32 %v520, 8
  %v561 = vmul.u32.u64.compose %v560, %v559
  %v562 = vextract.low.u32 %v561
  %v563 = vextract.high.u32 %v561
  %v564 = vmul.u32.u64.compose %v560, %v555
  %v565 = vextract.low.u32 %v564
  %v566 = vextract.high.u32 %v564
  %v567 = vmul.u32 %v560, %v551
  %v568 = vadd.s32 %v563, %v565
  %vm569 = vc.u32 %v563, %v565
  %v570 = vadd.s32 %v566, 1
  %v571 = vsel %vm569, %v570, %v566
  %v572 = vadd.s32 %v567, %v571
  %v573 = vadd.s32 %v572, 536870912
  %v574 = vshrl.u32 %v573, 30
  %v575 = vshll.u32 %v574, 30
  %v576 = vsub.s32 %v572, %v575
  %vm577 = vcmp.lt.s32.totalorder %v576, 0
  %v578 = vsub.s32 0, %v576
  %v579 = vsel %vm577, %v578, %v576
  %v580 = vclz %v579
  %v581 = vsub.s32 %v580, 2
  %vm582 = vcmp.gt.s32.totalorder 0, %v581
  %v583 = vsel %vm582, 0, %v581
  %v584 = vsub.s32 32, %v583
  %v585 = vshll.u32 %v576, %v583
  %v586 = vshrl.u32 %v568, %v584
  %v587 = vor.u32 %v585, %v586
  %v588 = vsub.s32 4294967266, %v583
  %v589 = vadd.s32 %v588, 127
  %v590 = vshll.u32 %v589, 23
  %v591 = vor.u32 4788187, %v590
  %v592 = vand.u32 2147483647, %v591
  %v594 = vcvt.s32.f32 %v587
  %v595 = vmul.f32 %v594, %v592
  %v596 = vxor.u32 %v595, 2147483648
  %v597 = vsel %vm514, %v596, %v595
  %v598 = vsub.s32 4, %v574
  %v599 = vsel %vm514, %v598, %v574
  %v600 = vsel %vm513, %v504, %v597
  %v601 = vsel %vm513, 0, %v599
  %v602 = vcosq.f32.pop %v600
  %v603 = vsinq.f32.pop %v600
  %vm604 = vweird.f32 %v504
  %v605 = vadd.s32 %v601, 3
  %v606 = vand.u32 %v605, 3
  %vm607 = vcmp.lt.s32.totalorder %v606, 2
  %vm608 = vcmp.eq.s32.totalorder %v606, 0
  %v609 = vxor.u32 %v603, 2147483648
  %v610 = vsel %vm608, %v602, %v609
  %vm611 = vcmp.eq.s32.totalorder %v606, 2
  %v612 = vxor.u32 %v602, 2147483648
  %v613 = vsel %vm611, %v612, %v603
  %v614 = vsel %vm607, %v610, %v613
  %v615 = vsel %vm604, nan, %v614
  %v616 = vand.u32 2147483647, %v505
  %vm617 = vcmp.le.f32.partialorder %v616, 0.7853982
  %vm618 = vcmp.lt.s32.totalorder %v505, 0
  %v619 = vand.u32 %v505, 2139095040
  %v620 = vshrl.u32 %v619, 23
  %v621 = vsub.s32 %v620, 127
  %v622 = vand.u32 2147483647, %v505
  %v623 = vand.u32 %v622, 8388607
  %v624 = vor.u32 %v623, 8388608
  %v625 = vsub.s32 0, %v624
  %v626 = vadd.s32 %v621, 1
  %vm627 = vcmp.gt.s32.totalorder %v626, 0
  %v628 = vsel %vm627, %v626, 0
  %v629 = vshrl.u32 %v628, 5
  %v630 = vand.u32 %v628, 31
  %v631 = vsub.s32 32, %v630
  %v632 = vshrl.u32 683565275, %v631
  %v633 = vshll.u32 683565275, %v630
  %v634 = vshrl.u32 2475754826, %v631
  %v635 = vor.u32 %v633, %v634
  %v636 = vshll.u32 2475754826, %v630
  %v637 = vshrl.u32 2131351028, %v631
  %v638 = vor.u32 %v636, %v637
  %v639 = vshll.u32 2131351028, %v630
  %v640 = vshrl.u32 2102212464, %v631
  %v641 = vor.u32 %v639, %v640
  %v642 = vshll.u32 2102212464, %v630
  %v643 = vshrl.u32 920167782, %v631
  %v644 = vor.u32 %v642, %v643
  %v645 = vshll.u32 920167782, %v630
  %v646 = vshrl.u32 1326507024, %v631
  %v647 = vor.u32 %v645, %v646
  %vm648 = vcmp.lt.s32.totalorder %v629, 1
  %vm649 = vcmp.lt.s32.totalorder %v629, 2
  %vm650 = vcmp.lt.s32.totalorder %v629, 3
  %vm651 = vcmp.lt.s32.totalorder %v629, 4
  %v652 = vsel %vm648, %v632, %v635
  %v653 = vsel %vm651, %v641, 2102212464
  %v654 = vsel %vm650, %v638, %v653
  %v655 = vsel %vm649, %v652, %v654
  %v656 = vsel %vm648, %v635, %v638
  %v657 = vsel %vm651, %v644, 920167782
  %v658 = vsel %vm650, %v641, %v657
  %v659 = vsel %vm649, %v656, %v658
  %v660 = vsel %vm648, %v638, %v641
  %v661 = vsel %vm651, %v647, 1326507024
  %v662 = vsel %vm650, %v644, %v661
  %v663 = vsel %vm649, %v660, %v662
  %v664 = vshll.u32 %v624, 8
  %v665 = vmul.u32.u64.compose %v664, %v663
  %v666 = vextract.low.u32 %v665
  %v667 = vextract.high.u32 %v665
  %v668 = vmul.u32.u64.compose %v664, %v659
  %v669 = vextract.low.u32 %v668
  %v670 = vextract.high.u32 %v668
  %v671 = vmul.u32 %v664, %v655
  %v672 = vadd.s32 %v667, %v669
  %vm673 = vc.u32 %v667, %v669
  %v674 = vadd.s32 %v670, 1
  %v675 = vsel %vm673, %v674, %v670
  %v676 = vadd.s32 %v671, %v675
  %v677 = vadd.s32 %v676, 536870912
  %v678 = vshrl.u32 %v677, 30
  %v679 = vshll.u32 %v678, 30
  %v680 = vsub.s32 %v676, %v679
  %vm681 = vcmp.lt.s32.totalorder %v680, 0
  %v682 = vsub.s32 0, %v680
  %v683 = vsel %vm681, %v682, %v680
  %v684 = vclz %v683
  %v685 = vsub.s32 %v684, 2
  %vm686 = vcmp.gt.s32.totalorder 0, %v685
  %v687 = vsel %vm686, 0, %v685
  %v688 = vsub.s32 32, %v687
  %v689 = vshll.u32 %v680, %v687
  %v690 = vshrl.u32 %v672, %v688
  %v691 = vor.u32 %v689, %v690
  %v692 = vsub.s32 4294967266, %v687
  %v693 = vadd.s32 %v692, 127
  %v694 = vshll.u32 %v693, 23
  %v695 = vor.u32 4788187, %v694
  %v696 = vand.u32 2147483647, %v695
  %v698 = vcvt.s32.f32 %v691
  %v699 = vmul.f32 %v698, %v696
  %v700 = vxor.u32 %v699, 2147483648
  %v701 = vsel %vm618, %v700, %v699
  %v702 = vsub.s32 4, %v678
  %v703 = vsel %vm618, %v702, %v678
  %v704 = vsel %vm617, %v505, %v701
  %v705 = vsel %vm617, 0, %v703
  %v706 = vcosq.f32.pop %v704
  %v707 = vsinq.f32.pop %v704
  %vm708 = vweird.f32 %v505
  %v709 = vadd.s32 %v705, 3
  %v710 = vand.u32 %v709, 3
  %vm711 = vcmp.lt.s32.totalorder %v710, 2
  %vm712 = vcmp.eq.s32.totalorder %v710, 0
  %v713 = vxor.u32 %v707, 2147483648
  %v714 = vsel %vm712, %v706, %v713
  %vm715 = vcmp.eq.s32.totalorder %v710, 2
  %v716 = vxor.u32 %v706, 2147483648
  %v717 = vsel %vm715, %v716, %v707
  %v718 = vsel %vm711, %v714, %v717
  %v719 = vsel %vm708, nan, %v718
  %v720 = vand.u32 2147483647, %v506
  %vm721 = vcmp.le.f32.partialorder %v720, 0.7853982
  %vm722 = vcmp.lt.s32.totalorder %v506, 0
  %v723 = vand.u32 %v506, 2139095040
  %v724 = vshrl.u32 %v723, 23
  %v725 = vsub.s32 %v724, 127
  %v726 = vand.u32 2147483647, %v506
  %v727 = vand.u32 %v726, 8388607
  %v728 = vor.u32 %v727, 8388608
  %v729 = vsub.s32 0, %v728
  %v730 = vadd.s32 %v725, 1
  %vm731 = vcmp.gt.s32.totalorder %v730, 0
  %v732 = vsel %vm731, %v730, 0
  %v733 = vshrl.u32 %v732, 5
  %v734 = vand.u32 %v732, 31
  %v735 = vsub.s32 32, %v734
  %v736 = vshrl.u32 683565275, %v735
  %v737 = vshll.u32 683565275, %v734
  %v738 = vshrl.u32 2475754826, %v735
  %v739 = vor.u32 %v737, %v738
  %v740 = vshll.u32 2475754826, %v734
  %v741 = vshrl.u32 2131351028, %v735
  %v742 = vor.u32 %v740, %v741
  %v743 = vshll.u32 2131351028, %v734
  %v744 = vshrl.u32 2102212464, %v735
  %v745 = vor.u32 %v743, %v744
  %v746 = vshll.u32 2102212464, %v734
  %v747 = vshrl.u32 920167782, %v735
  %v748 = vor.u32 %v746, %v747
  %v749 = vshll.u32 920167782, %v734
  %v750 = vshrl.u32 1326507024, %v735
  %v751 = vor.u32 %v749, %v750
  %vm752 = vcmp.lt.s32.totalorder %v733, 1
  %vm753 = vcmp.lt.s32.totalorder %v733, 2
  %vm754 = vcmp.lt.s32.totalorder %v733, 3
  %vm755 = vcmp.lt.s32.totalorder %v733, 4
  %v756 = vsel %vm752, %v736, %v739
  %v757 = vsel %vm755, %v745, 2102212464
  %v758 = vsel %vm754, %v742, %v757
  %v759 = vsel %vm753, %v756, %v758
  %v760 = vsel %vm752, %v739, %v742
  %v761 = vsel %vm755, %v748, 920167782
  %v762 = vsel %vm754, %v745, %v761
  %v763 = vsel %vm753, %v760, %v762
  %v764 = vsel %vm752, %v742, %v745
  %v765 = vsel %vm755, %v751, 1326507024
  %v766 = vsel %vm754, %v748, %v765
  %v767 = vsel %vm753, %v764, %v766
  %v768 = vshll.u32 %v728, 8
  %v769 = vmul.u32.u64.compose %v768, %v767
  %v770 = vextract.low.u32 %v769
  %v771 = vextract.high.u32 %v769
  %v772 = vmul.u32.u64.compose %v768, %v763
  %v773 = vextract.low.u32 %v772
  %v774 = vextract.high.u32 %v772
  %v775 = vmul.u32 %v768, %v759
  %v776 = vadd.s32 %v771, %v773
  %vm777 = vc.u32 %v771, %v773
  %v778 = vadd.s32 %v774, 1
  %v779 = vsel %vm777, %v778, %v774
  %v780 = vadd.s32 %v775, %v779
  %v781 = vadd.s32 %v780, 536870912
  %v782 = vshrl.u32 %v781, 30
  %v783 = vshll.u32 %v782, 30
  %v784 = vsub.s32 %v780, %v783
  %vm785 = vcmp.lt.s32.totalorder %v784, 0
  %v786 = vsub.s32 0, %v784
  %v787 = vsel %vm785, %v786, %v784
  %v788 = vclz %v787
  %v789 = vsub.s32 %v788, 2
  %vm790 = vcmp.gt.s32.totalorder 0, %v789
  %v791 = vsel %vm790, 0, %v789
  %v792 = vsub.s32 32, %v791
  %v793 = vshll.u32 %v784, %v791
  %v794 = vshrl.u32 %v776, %v792
  %v795 = vor.u32 %v793, %v794
  %v796 = vsub.s32 4294967266, %v791
  %v797 = vadd.s32 %v796, 127
  %v798 = vshll.u32 %v797, 23
  %v799 = vor.u32 4788187, %v798
  %v800 = vand.u32 2147483647, %v799
  %v802 = vcvt.s32.f32 %v795
  %v803 = vmul.f32 %v802, %v800
  %v804 = vxor.u32 %v803, 2147483648
  %v805 = vsel %vm722, %v804, %v803
  %v806 = vsub.s32 4, %v782
  %v807 = vsel %vm722, %v806, %v782
  %v808 = vsel %vm721, %v506, %v805
  %v809 = vsel %vm721, 0, %v807
  %v810 = vcosq.f32.pop %v808
  %v811 = vsinq.f32.pop %v808
  %vm812 = vweird.f32 %v506
  %v813 = vadd.s32 %v809, 3
  %v814 = vand.u32 %v813, 3
  %vm815 = vcmp.lt.s32.totalorder %v814, 2
  %vm816 = vcmp.eq.s32.totalorder %v814, 0
  %v817 = vxor.u32 %v811, 2147483648
  %v818 = vsel %vm816, %v810, %v817
  %vm819 = vcmp.eq.s32.totalorder %v814, 2
  %v820 = vxor.u32 %v810, 2147483648
  %v821 = vsel %vm819, %v820, %v811
  %v822 = vsel %vm815, %v818, %v821
  %v823 = vsel %vm812, nan, %v822
  %v824 = vand.u32 2147483647, %v507
  %vm825 = vcmp.le.f32.partialorder %v824, 0.7853982
  %vm826 = vcmp.lt.s32.totalorder %v507, 0
  %v827 = vand.u32 %v507, 2139095040
  %v828 = vshrl.u32 %v827, 23
  %v829 = vsub.s32 %v828, 127
  %v830 = vand.u32 2147483647, %v507
  %v831 = vand.u32 %v830, 8388607
  %v832 = vor.u32 %v831, 8388608
  %v833 = vsub.s32 0, %v832
  %v834 = vadd.s32 %v829, 1
  %vm835 = vcmp.gt.s32.totalorder %v834, 0
  %v836 = vsel %vm835, %v834, 0
  %v837 = vshrl.u32 %v836, 5
  %v838 = vand.u32 %v836, 31
  %v839 = vsub.s32 32, %v838
  %v840 = vshrl.u32 683565275, %v839
  %v841 = vshll.u32 683565275, %v838
  %v842 = vshrl.u32 2475754826, %v839
  %v843 = vor.u32 %v841, %v842
  %v844 = vshll.u32 2475754826, %v838
  %v845 = vshrl.u32 2131351028, %v839
  %v846 = vor.u32 %v844, %v845
  %v847 = vshll.u32 2131351028, %v838
  %v848 = vshrl.u32 2102212464, %v839
  %v849 = vor.u32 %v847, %v848
  %v850 = vshll.u32 2102212464, %v838
  %v851 = vshrl.u32 920167782, %v839
  %v852 = vor.u32 %v850, %v851
  %v853 = vshll.u32 920167782, %v838
  %v854 = vshrl.u32 1326507024, %v839
  %v855 = vor.u32 %v853, %v854
  %vm856 = vcmp.lt.s32.totalorder %v837, 1
  %vm857 = vcmp.lt.s32.totalorder %v837, 2
  %vm858 = vcmp.lt.s32.totalorder %v837, 3
  %vm859 = vcmp.lt.s32.totalorder %v837, 4
  %v860 = vsel %vm856, %v840, %v843
  %v861 = vsel %vm859, %v849, 2102212464
  %v862 = vsel %vm858, %v846, %v861
  %v863 = vsel %vm857, %v860, %v862
  %v864 = vsel %vm856, %v843, %v846
  %v865 = vsel %vm859, %v852, 920167782
  %v866 = vsel %vm858, %v849, %v865
  %v867 = vsel %vm857, %v864, %v866
  %v868 = vsel %vm856, %v846, %v849
  %v869 = vsel %vm859, %v855, 1326507024
  %v870 = vsel %vm858, %v852, %v869
  %v871 = vsel %vm857, %v868, %v870
  %v872 = vshll.u32 %v832, 8
  %v873 = vmul.u32.u64.compose %v872, %v871
  %v874 = vextract.low.u32 %v873
  %v875 = vextract.high.u32 %v873
  %v876 = vmul.u32.u64.compose %v872, %v867
  %v877 = vextract.low.u32 %v876
  %v878 = vextract.high.u32 %v876
  %v879 = vmul.u32 %v872, %v863
  %v880 = vadd.s32 %v875, %v877
  %vm881 = vc.u32 %v875, %v877
  %v882 = vadd.s32 %v878, 1
  %v883 = vsel %vm881, %v882, %v878
  %v884 = vadd.s32 %v879, %v883
  %v885 = vadd.s32 %v884, 536870912
  %v886 = vshrl.u32 %v885, 30
  %v887 = vshll.u32 %v886, 30
  %v888 = vsub.s32 %v884, %v887
  %vm889 = vcmp.lt.s32.totalorder %v888, 0
  %v890 = vsub.s32 0, %v888
  %v891 = vsel %vm889, %v890, %v888
  %v892 = vclz %v891
  %v893 = vsub.s32 %v892, 2
  %vm894 = vcmp.gt.s32.totalorder 0, %v893
  %v895 = vsel %vm894, 0, %v893
  %v896 = vsub.s32 32, %v895
  %v897 = vshll.u32 %v888, %v895
  %v898 = vshrl.u32 %v880, %v896
  %v899 = vor.u32 %v897, %v898
  %v900 = vsub.s32 4294967266, %v895
  %v901 = vadd.s32 %v900, 127
  %v902 = vshll.u32 %v901, 23
  %v903 = vor.u32 4788187, %v902
  %v904 = vand.u32 2147483647, %v903
  %v906 = vcvt.s32.f32 %v899
  %v907 = vmul.f32 %v906, %v904
  %v908 = vxor.u32 %v907, 2147483648
  %v909 = vsel %vm826, %v908, %v907
  %v910 = vsub.s32 4, %v886
  %v911 = vsel %vm826, %v910, %v886
  %v912 = vsel %vm825, %v507, %v909
  %v913 = vsel %vm825, 0, %v911
  %v914 = vcosq.f32.pop %v912
  %v915 = vsinq.f32.pop %v912
  %vm916 = vweird.f32 %v507
  %v917 = vadd.s32 %v913, 3
  %v918 = vand.u32 %v917, 3
  %vm919 = vcmp.lt.s32.totalorder %v918, 2
  %vm920 = vcmp.eq.s32.totalorder %v918, 0
  %v921 = vxor.u32 %v915, 2147483648
  %v922 = vsel %vm920, %v914, %v921
  %vm923 = vcmp.eq.s32.totalorder %v918, 2
  %v924 = vxor.u32 %v914, 2147483648
  %v925 = vsel %vm923, %v924, %v915
  %v926 = vsel %vm919, %v922, %v925
  %v927 = vsel %vm916, nan, %v926
  %v928 = vand.u32 2147483647, %v508
  %vm929 = vcmp.le.f32.partialorder %v928, 0.7853982
  %vm930 = vcmp.lt.s32.totalorder %v508, 0
  %v931 = vand.u32 %v508, 2139095040
  %v932 = vshrl.u32 %v931, 23
  %v933 = vsub.s32 %v932, 127
  %v934 = vand.u32 2147483647, %v508
  %v935 = vand.u32 %v934, 8388607
  %v936 = vor.u32 %v935, 8388608
  %v937 = vsub.s32 0, %v936
  %v938 = vadd.s32 %v933, 1
  %vm939 = vcmp.gt.s32.totalorder %v938, 0
  %v940 = vsel %vm939, %v938, 0
  %v941 = vshrl.u32 %v940, 5
  %v942 = vand.u32 %v940, 31
  %v943 = vsub.s32 32, %v942
  %v944 = vshrl.u32 683565275, %v943
  %v945 = vshll.u32 683565275, %v942
  %v946 = vshrl.u32 2475754826, %v943
  %v947 = vor.u32 %v945, %v946
  %v948 = vshll.u32 2475754826, %v942
  %v949 = vshrl.u32 2131351028, %v943
  %v950 = vor.u32 %v948, %v949
  %v951 = vshll.u32 2131351028, %v942
  %v952 = vshrl.u32 2102212464, %v943
  %v953 = vor.u32 %v951, %v952
  %v954 = vshll.u32 2102212464, %v942
  %v955 = vshrl.u32 920167782, %v943
  %v956 = vor.u32 %v954, %v955
  %v957 = vshll.u32 920167782, %v942
  %v958 = vshrl.u32 1326507024, %v943
  %v959 = vor.u32 %v957, %v958
  %vm960 = vcmp.lt.s32.totalorder %v941, 1
  %vm961 = vcmp.lt.s32.totalorder %v941, 2
  %vm962 = vcmp.lt.s32.totalorder %v941, 3
  %vm963 = vcmp.lt.s32.totalorder %v941, 4
  %v964 = vsel %vm960, %v944, %v947
  %v965 = vsel %vm963, %v953, 2102212464
  %v966 = vsel %vm962, %v950, %v965
  %v967 = vsel %vm961, %v964, %v966
  %v968 = vsel %vm960, %v947, %v950
  %v969 = vsel %vm963, %v956, 920167782
  %v970 = vsel %vm962, %v953, %v969
  %v971 = vsel %vm961, %v968, %v970
  %v972 = vsel %vm960, %v950, %v953
  %v973 = vsel %vm963, %v959, 1326507024
  %v974 = vsel %vm962, %v956, %v973
  %v975 = vsel %vm961, %v972, %v974
  %v976 = vshll.u32 %v936, 8
  %v977 = vmul.u32.u64.compose %v976, %v975
  %v978 = vextract.low.u32 %v977
  %v979 = vextract.high.u32 %v977
  %v980 = vmul.u32.u64.compose %v976, %v971
  %v981 = vextract.low.u32 %v980
  %v982 = vextract.high.u32 %v980
  %v983 = vmul.u32 %v976, %v967
  %v984 = vadd.s32 %v979, %v981
  %vm985 = vc.u32 %v979, %v981
  %v986 = vadd.s32 %v982, 1
  %v987 = vsel %vm985, %v986, %v982
  %v988 = vadd.s32 %v983, %v987
  %v989 = vadd.s32 %v988, 536870912
  %v990 = vshrl.u32 %v989, 30
  %v991 = vshll.u32 %v990, 30
  %v992 = vsub.s32 %v988, %v991
  %vm993 = vcmp.lt.s32.totalorder %v992, 0
  %v994 = vsub.s32 0, %v992
  %v995 = vsel %vm993, %v994, %v992
  %v996 = vclz %v995
  %v997 = vsub.s32 %v996, 2
  %vm998 = vcmp.gt.s32.totalorder 0, %v997
  %v999 = vsel %vm998, 0, %v997
  %v1000 = vsub.s32 32, %v999
  %v1001 = vshll.u32 %v992, %v999
  %v1002 = vshrl.u32 %v984, %v1000
  %v1003 = vor.u32 %v1001, %v1002
  %v1004 = vsub.s32 4294967266, %v999
  %v1005 = vadd.s32 %v1004, 127
  %v1006 = vshll.u32 %v1005, 23
  %v1007 = vor.u32 4788187, %v1006
  %v1008 = vand.u32 2147483647, %v1007
  %v1010 = vcvt.s32.f32 %v1003
  %v1011 = vmul.f32 %v1010, %v1008
  %v1012 = vxor.u32 %v1011, 2147483648
  %v1013 = vsel %vm930, %v1012, %v1011
  %v1014 = vsub.s32 4, %v990
  %v1015 = vsel %vm930, %v1014, %v990
  %v1016 = vsel %vm929, %v508, %v1013
  %v1017 = vsel %vm929, 0, %v1015
  %v1018 = vcosq.f32.pop %v1016
  %v1019 = vsinq.f32.pop %v1016
  %vm1020 = vweird.f32 %v508
  %v1021 = vadd.s32 %v1017, 3
  %v1022 = vand.u32 %v1021, 3
  %vm1023 = vcmp.lt.s32.totalorder %v1022, 2
  %vm1024 = vcmp.eq.s32.totalorder %v1022, 0
  %v1025 = vxor.u32 %v1019, 2147483648
  %v1026 = vsel %vm1024, %v1018, %v1025
  %vm1027 = vcmp.eq.s32.totalorder %v1022, 2
  %v1028 = vxor.u32 %v1018, 2147483648
  %v1029 = vsel %vm1027, %v1028, %v1019
  %v1030 = vsel %vm1023, %v1026, %v1029
  %v1031 = vsel %vm1020, nan, %v1030
  %v1032 = vand.u32 2147483647, %v509
  %vm1033 = vcmp.le.f32.partialorder %v1032, 0.7853982
  %vm1034 = vcmp.lt.s32.totalorder %v509, 0
  %v1035 = vand.u32 %v509, 2139095040
  %v1036 = vshrl.u32 %v1035, 23
  %v1037 = vsub.s32 %v1036, 127
  %v1038 = vand.u32 2147483647, %v509
  %v1039 = vand.u32 %v1038, 8388607
  %v1040 = vor.u32 %v1039, 8388608
  %v1041 = vsub.s32 0, %v1040
  %v1042 = vadd.s32 %v1037, 1
  %vm1043 = vcmp.gt.s32.totalorder %v1042, 0
  %v1044 = vsel %vm1043, %v1042, 0
  %v1045 = vshrl.u32 %v1044, 5
  %v1046 = vand.u32 %v1044, 31
  %v1047 = vsub.s32 32, %v1046
  %v1048 = vshrl.u32 683565275, %v1047
  %v1049 = vshll.u32 683565275, %v1046
  %v1050 = vshrl.u32 2475754826, %v1047
  %v1051 = vor.u32 %v1049, %v1050
  %v1052 = vshll.u32 2475754826, %v1046
  %v1053 = vshrl.u32 2131351028, %v1047
  %v1054 = vor.u32 %v1052, %v1053
  %v1055 = vshll.u32 2131351028, %v1046
  %v1056 = vshrl.u32 2102212464, %v1047
  %v1057 = vor.u32 %v1055, %v1056
  %v1058 = vshll.u32 2102212464, %v1046
  %v1059 = vshrl.u32 920167782, %v1047
  %v1060 = vor.u32 %v1058, %v1059
  %v1061 = vshll.u32 920167782, %v1046
  %v1062 = vshrl.u32 1326507024, %v1047
  %v1063 = vor.u32 %v1061, %v1062
  %vm1064 = vcmp.lt.s32.totalorder %v1045, 1
  %vm1065 = vcmp.lt.s32.totalorder %v1045, 2
  %vm1066 = vcmp.lt.s32.totalorder %v1045, 3
  %vm1067 = vcmp.lt.s32.totalorder %v1045, 4
  %v1068 = vsel %vm1064, %v1048, %v1051
  %v1069 = vsel %vm1067, %v1057, 2102212464
  %v1070 = vsel %vm1066, %v1054, %v1069
  %v1071 = vsel %vm1065, %v1068, %v1070
  %v1072 = vsel %vm1064, %v1051, %v1054
  %v1073 = vsel %vm1067, %v1060, 920167782
  %v1074 = vsel %vm1066, %v1057, %v1073
  %v1075 = vsel %vm1065, %v1072, %v1074
  %v1076 = vsel %vm1064, %v1054, %v1057
  %v1077 = vsel %vm1067, %v1063, 1326507024
  %v1078 = vsel %vm1066, %v1060, %v1077
  %v1079 = vsel %vm1065, %v1076, %v1078
  %v1080 = vshll.u32 %v1040, 8
  %v1081 = vmul.u32.u64.compose %v1080, %v1079
  %v1082 = vextract.low.u32 %v1081
  %v1083 = vextract.high.u32 %v1081
  %v1084 = vmul.u32.u64.compose %v1080, %v1075
  %v1085 = vextract.low.u32 %v1084
  %v1086 = vextract.high.u32 %v1084
  %v1087 = vmul.u32 %v1080, %v1071
  %v1088 = vadd.s32 %v1083, %v1085
  %vm1089 = vc.u32 %v1083, %v1085
  %v1090 = vadd.s32 %v1086, 1
  %v1091 = vsel %vm1089, %v1090, %v1086
  %v1092 = vadd.s32 %v1087, %v1091
  %v1093 = vadd.s32 %v1092, 536870912
  %v1094 = vshrl.u32 %v1093, 30
  %v1095 = vshll.u32 %v1094, 30
  %v1096 = vsub.s32 %v1092, %v1095
  %vm1097 = vcmp.lt.s32.totalorder %v1096, 0
  %v1098 = vsub.s32 0, %v1096
  %v1099 = vsel %vm1097, %v1098, %v1096
  %v1100 = vclz %v1099
  %v1101 = vsub.s32 %v1100, 2
  %vm1102 = vcmp.gt.s32.totalorder 0, %v1101
  %v1103 = vsel %vm1102, 0, %v1101
  %v1104 = vsub.s32 32, %v1103
  %v1105 = vshll.u32 %v1096, %v1103
  %v1106 = vshrl.u32 %v1088, %v1104
  %v1107 = vor.u32 %v1105, %v1106
  %v1108 = vsub.s32 4294967266, %v1103
  %v1109 = vadd.s32 %v1108, 127
  %v1110 = vshll.u32 %v1109, 23
  %v1111 = vor.u32 4788187, %v1110
  %v1112 = vand.u32 2147483647, %v1111
  %v1114 = vcvt.s32.f32 %v1107
  %v1115 = vmul.f32 %v1114, %v1112
  %v1116 = vxor.u32 %v1115, 2147483648
  %v1117 = vsel %vm1034, %v1116, %v1115
  %v1118 = vsub.s32 4, %v1094
  %v1119 = vsel %vm1034, %v1118, %v1094
  %v1120 = vsel %vm1033, %v509, %v1117
  %v1121 = vsel %vm1033, 0, %v1119
  %v1122 = vcosq.f32.pop %v1120
  %v1123 = vsinq.f32.pop %v1120
  %vm1124 = vweird.f32 %v509
  %v1125 = vadd.s32 %v1121, 3
  %v1126 = vand.u32 %v1125, 3
  %vm1127 = vcmp.lt.s32.totalorder %v1126, 2
  %vm1128 = vcmp.eq.s32.totalorder %v1126, 0
  %v1129 = vxor.u32 %v1123, 2147483648
  %v1130 = vsel %vm1128, %v1122, %v1129
  %vm1131 = vcmp.eq.s32.totalorder %v1126, 2
  %v1132 = vxor.u32 %v1122, 2147483648
  %v1133 = vsel %vm1131, %v1132, %v1123
  %v1134 = vsel %vm1127, %v1130, %v1133
  %v1135 = vsel %vm1124, nan, %v1134
  %v1136 = vand.u32 2147483647, %v510
  %vm1137 = vcmp.le.f32.partialorder %v1136, 0.7853982
  %vm1138 = vcmp.lt.s32.totalorder %v510, 0
  %v1139 = vand.u32 %v510, 2139095040
  %v1140 = vshrl.u32 %v1139, 23
  %v1141 = vsub.s32 %v1140, 127
  %v1142 = vand.u32 2147483647, %v510
  %v1143 = vand.u32 %v1142, 8388607
  %v1144 = vor.u32 %v1143, 8388608
  %v1145 = vsub.s32 0, %v1144
  %v1146 = vadd.s32 %v1141, 1
  %vm1147 = vcmp.gt.s32.totalorder %v1146, 0
  %v1148 = vsel %vm1147, %v1146, 0
  %v1149 = vshrl.u32 %v1148, 5
  %v1150 = vand.u32 %v1148, 31
  %v1151 = vsub.s32 32, %v1150
  %v1152 = vshrl.u32 683565275, %v1151
  %v1153 = vshll.u32 683565275, %v1150
  %v1154 = vshrl.u32 2475754826, %v1151
  %v1155 = vor.u32 %v1153, %v1154
  %v1156 = vshll.u32 2475754826, %v1150
  %v1157 = vshrl.u32 2131351028, %v1151
  %v1158 = vor.u32 %v1156, %v1157
  %v1159 = vshll.u32 2131351028, %v1150
  %v1160 = vshrl.u32 2102212464, %v1151
  %v1161 = vor.u32 %v1159, %v1160
  %v1162 = vshll.u32 2102212464, %v1150
  %v1163 = vshrl.u32 920167782, %v1151
  %v1164 = vor.u32 %v1162, %v1163
  %v1165 = vshll.u32 920167782, %v1150
  %v1166 = vshrl.u32 1326507024, %v1151
  %v1167 = vor.u32 %v1165, %v1166
  %vm1168 = vcmp.lt.s32.totalorder %v1149, 1
  %vm1169 = vcmp.lt.s32.totalorder %v1149, 2
  %vm1170 = vcmp.lt.s32.totalorder %v1149, 3
  %vm1171 = vcmp.lt.s32.totalorder %v1149, 4
  %v1172 = vsel %vm1168, %v1152, %v1155
  %v1173 = vsel %vm1171, %v1161, 2102212464
  %v1174 = vsel %vm1170, %v1158, %v1173
  %v1175 = vsel %vm1169, %v1172, %v1174
  %v1176 = vsel %vm1168, %v1155, %v1158
  %v1177 = vsel %vm1171, %v1164, 920167782
  %v1178 = vsel %vm1170, %v1161, %v1177
  %v1179 = vsel %vm1169, %v1176, %v1178
  %v1180 = vsel %vm1168, %v1158, %v1161
  %v1181 = vsel %vm1171, %v1167, 1326507024
  %v1182 = vsel %vm1170, %v1164, %v1181
  %v1183 = vsel %vm1169, %v1180, %v1182
  %v1184 = vshll.u32 %v1144, 8
  %v1185 = vmul.u32.u64.compose %v1184, %v1183
  %v1186 = vextract.low.u32 %v1185
  %v1187 = vextract.high.u32 %v1185
  %v1188 = vmul.u32.u64.compose %v1184, %v1179
  %v1189 = vextract.low.u32 %v1188
  %v1190 = vextract.high.u32 %v1188
  %v1191 = vmul.u32 %v1184, %v1175
  %v1192 = vadd.s32 %v1187, %v1189
  %vm1193 = vc.u32 %v1187, %v1189
  %v1194 = vadd.s32 %v1190, 1
  %v1195 = vsel %vm1193, %v1194, %v1190
  %v1196 = vadd.s32 %v1191, %v1195
  %v1197 = vadd.s32 %v1196, 536870912
  %v1198 = vshrl.u32 %v1197, 30
  %v1199 = vshll.u32 %v1198, 30
  %v1200 = vsub.s32 %v1196, %v1199
  %vm1201 = vcmp.lt.s32.totalorder %v1200, 0
  %v1202 = vsub.s32 0, %v1200
  %v1203 = vsel %vm1201, %v1202, %v1200
  %v1204 = vclz %v1203
  %v1205 = vsub.s32 %v1204, 2
  %vm1206 = vcmp.gt.s32.totalorder 0, %v1205
  %v1207 = vsel %vm1206, 0, %v1205
  %v1208 = vsub.s32 32, %v1207
  %v1209 = vshll.u32 %v1200, %v1207
  %v1210 = vshrl.u32 %v1192, %v1208
  %v1211 = vor.u32 %v1209, %v1210
  %v1212 = vsub.s32 4294967266, %v1207
  %v1213 = vadd.s32 %v1212, 127
  %v1214 = vshll.u32 %v1213, 23
  %v1215 = vor.u32 4788187, %v1214
  %v1216 = vand.u32 2147483647, %v1215
  %v1218 = vcvt.s32.f32 %v1211
  %v1219 = vmul.f32 %v1218, %v1216
  %v1220 = vxor.u32 %v1219, 2147483648
  %v1221 = vsel %vm1138, %v1220, %v1219
  %v1222 = vsub.s32 4, %v1198
  %v1223 = vsel %vm1138, %v1222, %v1198
  %v1224 = vsel %vm1137, %v510, %v1221
  %v1225 = vsel %vm1137, 0, %v1223
  %v1226 = vcosq.f32.pop %v1224
  %v1227 = vsinq.f32.pop %v1224
  %vm1228 = vweird.f32 %v510
  %v1229 = vadd.s32 %v1225, 3
  %v1230 = vand.u32 %v1229, 3
  %vm1231 = vcmp.lt.s32.totalorder %v1230, 2
  %vm1232 = vcmp.eq.s32.totalorder %v1230, 0
  %v1233 = vxor.u32 %v1227, 2147483648
  %v1234 = vsel %vm1232, %v1226, %v1233
  %vm1235 = vcmp.eq.s32.totalorder %v1230, 2
  %v1236 = vxor.u32 %v1226, 2147483648
  %v1237 = vsel %vm1235, %v1236, %v1227
  %v1238 = vsel %vm1231, %v1234, %v1237
  %v1239 = vsel %vm1228, nan, %v1238
  %v1240 = vand.u32 2147483647, %v511
  %vm1241 = vcmp.le.f32.partialorder %v1240, 0.7853982
  %vm1242 = vcmp.lt.s32.totalorder %v511, 0
  %v1243 = vand.u32 %v511, 2139095040
  %v1244 = vshrl.u32 %v1243, 23
  %v1245 = vsub.s32 %v1244, 127
  %v1246 = vand.u32 2147483647, %v511
  %v1247 = vand.u32 %v1246, 8388607
  %v1248 = vor.u32 %v1247, 8388608
  %v1249 = vsub.s32 0, %v1248
  %v1250 = vadd.s32 %v1245, 1
  %vm1251 = vcmp.gt.s32.totalorder %v1250, 0
  %v1252 = vsel %vm1251, %v1250, 0
  %v1253 = vshrl.u32 %v1252, 5
  %v1254 = vand.u32 %v1252, 31
  %v1255 = vsub.s32 32, %v1254
  %v1256 = vshrl.u32 683565275, %v1255
  %v1257 = vshll.u32 683565275, %v1254
  %v1258 = vshrl.u32 2475754826, %v1255
  %v1259 = vor.u32 %v1257, %v1258
  %v1260 = vshll.u32 2475754826, %v1254
  %v1261 = vshrl.u32 2131351028, %v1255
  %v1262 = vor.u32 %v1260, %v1261
  %v1263 = vshll.u32 2131351028, %v1254
  %v1264 = vshrl.u32 2102212464, %v1255
  %v1265 = vor.u32 %v1263, %v1264
  %v1266 = vshll.u32 2102212464, %v1254
  %v1267 = vshrl.u32 920167782, %v1255
  %v1268 = vor.u32 %v1266, %v1267
  %v1269 = vshll.u32 920167782, %v1254
  %v1270 = vshrl.u32 1326507024, %v1255
  %v1271 = vor.u32 %v1269, %v1270
  %vm1272 = vcmp.lt.s32.totalorder %v1253, 1
  %vm1273 = vcmp.lt.s32.totalorder %v1253, 2
  %vm1274 = vcmp.lt.s32.totalorder %v1253, 3
  %vm1275 = vcmp.lt.s32.totalorder %v1253, 4
  %v1276 = vsel %vm1272, %v1256, %v1259
  %v1277 = vsel %vm1275, %v1265, 2102212464
  %v1278 = vsel %vm1274, %v1262, %v1277
  %v1279 = vsel %vm1273, %v1276, %v1278
  %v1280 = vsel %vm1272, %v1259, %v1262
  %v1281 = vsel %vm1275, %v1268, 920167782
  %v1282 = vsel %vm1274, %v1265, %v1281
  %v1283 = vsel %vm1273, %v1280, %v1282
  %v1284 = vsel %vm1272, %v1262, %v1265
  %v1285 = vsel %vm1275, %v1271, 1326507024
  %v1286 = vsel %vm1274, %v1268, %v1285
  %v1287 = vsel %vm1273, %v1284, %v1286
  %v1288 = vshll.u32 %v1248, 8
  %v1289 = vmul.u32.u64.compose %v1288, %v1287
  %v1290 = vextract.low.u32 %v1289
  %v1291 = vextract.high.u32 %v1289
  %v1292 = vmul.u32.u64.compose %v1288, %v1283
  %v1293 = vextract.low.u32 %v1292
  %v1294 = vextract.high.u32 %v1292
  %v1295 = vmul.u32 %v1288, %v1279
  %v1296 = vadd.s32 %v1291, %v1293
  %vm1297 = vc.u32 %v1291, %v1293
  %v1298 = vadd.s32 %v1294, 1
  %v1299 = vsel %vm1297, %v1298, %v1294
  %v1300 = vadd.s32 %v1295, %v1299
  %v1301 = vadd.s32 %v1300, 536870912
  %v1302 = vshrl.u32 %v1301, 30
  %v1303 = vshll.u32 %v1302, 30
  %v1304 = vsub.s32 %v1300, %v1303
  %vm1305 = vcmp.lt.s32.totalorder %v1304, 0
  %v1306 = vsub.s32 0, %v1304
  %v1307 = vsel %vm1305, %v1306, %v1304
  %v1308 = vclz %v1307
  %v1309 = vsub.s32 %v1308, 2
  %vm1310 = vcmp.gt.s32.totalorder 0, %v1309
  %v1311 = vsel %vm1310, 0, %v1309
  %v1312 = vsub.s32 32, %v1311
  %v1313 = vshll.u32 %v1304, %v1311
  %v1314 = vshrl.u32 %v1296, %v1312
  %v1315 = vor.u32 %v1313, %v1314
  %v1316 = vsub.s32 4294967266, %v1311
  %v1317 = vadd.s32 %v1316, 127
  %v1318 = vshll.u32 %v1317, 23
  %v1319 = vor.u32 4788187, %v1318
  %v1320 = vand.u32 2147483647, %v1319
  %v1322 = vcvt.s32.f32 %v1315
  %v1323 = vmul.f32 %v1322, %v1320
  %v1324 = vxor.u32 %v1323, 2147483648
  %v1325 = vsel %vm1242, %v1324, %v1323
  %v1326 = vsub.s32 4, %v1302
  %v1327 = vsel %vm1242, %v1326, %v1302
  %v1328 = vsel %vm1241, %v511, %v1325
  %v1329 = vsel %vm1241, 0, %v1327
  %v1330 = vcosq.f32.pop %v1328
  %v1331 = vsinq.f32.pop %v1328
  %vm1332 = vweird.f32 %v511
  %v1333 = vadd.s32 %v1329, 3
  %v1334 = vand.u32 %v1333, 3
  %vm1335 = vcmp.lt.s32.totalorder %v1334, 2
  %vm1336 = vcmp.eq.s32.totalorder %v1334, 0
  %v1337 = vxor.u32 %v1331, 2147483648
  %v1338 = vsel %vm1336, %v1330, %v1337
  %vm1339 = vcmp.eq.s32.totalorder %v1334, 2
  %v1340 = vxor.u32 %v1330, 2147483648
  %v1341 = vsel %vm1339, %v1340, %v1331
  %v1342 = vsel %vm1335, %v1338, %v1341
  %v1343 = vsel %vm1332, nan, %v1342
  %v1344 = vld [vmem:[%s3] sm:$0xff]
  %v1345 = vld [vmem:[%s3 + $0x8] sm:$0xff]
  %v1346 = vld [vmem:[%s3 + $0x10] sm:$0xff]
  %v1347 = vld [vmem:[%s3 + $0x18] sm:$0xff]
  %v1348 = vld [vmem:[%s3 + $0x20] sm:$0xff]
  %v1349 = vld [vmem:[%s3 + $0x28] sm:$0xff]
  %v1350 = vld [vmem:[%s3 + $0x30] sm:$0xff]
  %v1351 = vld [vmem:[%s3 + $0x38] sm:$0xff]
  %v1352 = vld [vmem:[%s4] sm:$0xff]
  %v1353 = vld [vmem:[%s4 + $0x8] sm:$0xff]
  %v1354 = vld [vmem:[%s4 + $0x10] sm:$0xff]
  %v1355 = vld [vmem:[%s4 + $0x18] sm:$0xff]
  %v1356 = vld [vmem:[%s4 + $0x20] sm:$0xff]
  %v1357 = vld [vmem:[%s4 + $0x28] sm:$0xff]
  %v1358 = vld [vmem:[%s4 + $0x30] sm:$0xff]
  %v1359 = vld [vmem:[%s4 + $0x38] sm:$0xff]
  %1361 = vset.pattern.permute.xlu0 0
  %1362 = vperm.xlu0 %1361, %v1352
  %v1363 = vpop.permute.xlu0 %1362
  %1366 = vset.pattern.permute.xlu0 0
  %1367 = vperm.xlu0 %1366, %v1353
  %v1368 = vpop.permute.xlu0 %1367
  %1371 = vset.pattern.permute.xlu0 0
  %1372 = vperm.xlu0 %1371, %v1354
  %v1373 = vpop.permute.xlu0 %1372
  %1376 = vset.pattern.permute.xlu0 0
  %1377 = vperm.xlu0 %1376, %v1355
  %v1378 = vpop.permute.xlu0 %1377
  %1381 = vset.pattern.permute.xlu0 0
  %1382 = vperm.xlu0 %1381, %v1356
  %v1383 = vpop.permute.xlu0 %1382
  %1386 = vset.pattern.permute.xlu0 0
  %1387 = vperm.xlu0 %1386, %v1357
  %v1388 = vpop.permute.xlu0 %1387
  %1391 = vset.pattern.permute.xlu0 0
  %1392 = vperm.xlu0 %1391, %v1358
  %v1393 = vpop.permute.xlu0 %1392
  %1396 = vset.pattern.permute.xlu0 0
  %1397 = vperm.xlu0 %1396, %v1359
  %v1398 = vpop.permute.xlu0 %1397
  %vm1400 = vcmask 523264
  %v1402 = vsel %vm1400, %v1344, 0
  %v1405 = vsel %vm1400, %v1345, 0
  %v1408 = vsel %vm1400, %v1346, 0
  %v1411 = vsel %vm1400, %v1347, 0
  %v1414 = vsel %vm1400, %v1348, 0
  %v1417 = vsel %vm1400, %v1349, 0
  %v1420 = vsel %vm1400, %v1350, 0
  %v1423 = vsel %vm1400, %v1351, 0
  %1425 = vmatprep.subr.mxu0 0.0
  %1426 = vmatpush1.msra.mxu0 0.0
  %1427 = vmatprep.subr.mxu0 0.0
  %1428 = vmatpush1.msra.mxu0 0.0
  %1429 = vmatprep.subr.mxu0 0.0
  %1430 = vmatpush1.msra.mxu0 0.0
  %1431 = vmatprep.subr.mxu0 0.0
  %1432 = vmatpush1.msra.mxu0 0.0
  %1433 = vmatprep.subr.mxu0 0.0
  %1434 = vmatpush1.msra.mxu0 0.0
  %1435 = vmatprep.subr.mxu0 0.0
  %1436 = vmatpush1.msra.mxu0 0.0
  %1437 = vmatprep.subr.mxu0 0.0
  %1438 = vmatpush1.msra.mxu0 0.0
  %1439 = vmatprep.subr.mxu0 0.0
  %1440 = vmatpush1.msra.mxu0 0.0
  %1441 = vmatprep.subr.mxu0 0.0
  %1442 = vmatpush1.msra.mxu0 %v1343
  %1443 = vmatprep.subr.mxu0 0.0
  %1444 = vmatpush1.msra.mxu0 %v1239
  %1445 = vmatprep.subr.mxu0 0.0
  %1446 = vmatpush1.msra.mxu0 %v1135
  %1447 = vmatprep.subr.mxu0 0.0
  %1448 = vmatpush1.msra.mxu0 %v1031
  %1449 = vmatprep.subr.mxu0 0.0
  %1450 = vmatpush1.msra.mxu0 %v927
  %1451 = vmatprep.subr.mxu0 0.0
  %1452 = vmatpush1.msra.mxu0 %v823
  %1453 = vmatprep.subr.mxu0 0.0
  %1454 = vmatpush1.msra.mxu0 %v719
  %1455 = vmatprep.subr.mxu0 0.0
  %1456 = vmatpush1.msra.mxu0 %v615
  %1457 = vmatprep.subr.mxu0 0.0
  %1458 = vmatpush2.msra.mxu0 0.0
  %1459 = vmatprep.subr.mxu0 0.0
  %1460 = vmatpush2.msra.mxu0 0.0
  %1461 = vmatprep.subr.mxu0 0.0
  %1462 = vmatpush2.msra.mxu0 0.0
  %1463 = vmatprep.subr.mxu0 0.0
  %1464 = vmatpush2.msra.mxu0 0.0
  %1465 = vmatprep.subr.mxu0 0.0
  %1466 = vmatpush2.msra.mxu0 0.0
  %1467 = vmatprep.subr.mxu0 0.0
  %1468 = vmatpush2.msra.mxu0 0.0
  %1469 = vmatprep.subr.mxu0 0.0
  %1470 = vmatpush2.msra.mxu0 0.0
  %1471 = vmatprep.subr.mxu0 0.0
  %1472 = vmatpush2.msra.mxu0 0.0
  %1473 = vmatprep.subr.mxu0 0.0
  %1474 = vmatpush2.msra.mxu0 0.0
  %1475 = vmatprep.subr.mxu0 0.0
  %1476 = vmatpush2.msra.mxu0 0.0
  %1477 = vmatprep.subr.mxu0 0.0
  %1478 = vmatpush2.msra.mxu0 0.0
  %1479 = vmatprep.subr.mxu0 0.0
  %1480 = vmatpush2.msra.mxu0 0.0
  %1481 = vmatprep.subr.mxu0 0.0
  %1482 = vmatpush2.msra.mxu0 0.0
  %1483 = vmatprep.subr.mxu0 0.0
  %1484 = vmatpush2.msra.mxu0 0.0
  %1485 = vmatprep.subr.mxu0 0.0
  %1486 = vmatpush2.msra.mxu0 0.0
  %1487 = vmatprep.subr.mxu0 0.0
  %1488 = vmatpush2.msra.mxu0 0.0
  %1489 = vmatprep.mubr.f32.mxu0 0.0
  %1490 = vmatmul.mubr.f32.gmra.mxu0 %v1402
  %v1491 = vpop.f32.mrf.mxu0
  %v1492 = vadd.f32 %v1363, %v1491
  %v1493 = vpop.f32.mrf.mxu0
  %1494 = vmatprep.mubr.f32.mxu0 0.0
  %1495 = vmatmul.mubr.f32.gmra.mxu0 %v1405
  %v1496 = vpop.f32.mrf.mxu0
  %v1497 = vadd.f32 %v1368, %v1496
  %v1498 = vpop.f32.mrf.mxu0
  %1499 = vmatprep.mubr.f32.mxu0 0.0
  %1500 = vmatmul.mubr.f32.gmra.mxu0 %v1408
  %v1501 = vpop.f32.mrf.mxu0
  %v1502 = vadd.f32 %v1373, %v1501
  %v1503 = vpop.f32.mrf.mxu0
  %1504 = vmatprep.mubr.f32.mxu0 0.0
  %1505 = vmatmul.mubr.f32.gmra.mxu0 %v1411
  %v1506 = vpop.f32.mrf.mxu0
  %v1507 = vadd.f32 %v1378, %v1506
  %v1508 = vpop.f32.mrf.mxu0
  %1509 = vmatprep.mubr.f32.mxu0 0.0
  %1510 = vmatmul.mubr.f32.gmra.mxu0 %v1414
  %v1511 = vpop.f32.mrf.mxu0
  %v1512 = vadd.f32 %v1383, %v1511
  %v1513 = vpop.f32.mrf.mxu0
  %1514 = vmatprep.mubr.f32.mxu0 0.0
  %1515 = vmatmul.mubr.f32.gmra.mxu0 %v1417
  %v1516 = vpop.f32.mrf.mxu0
  %v1517 = vadd.f32 %v1388, %v1516
  %v1518 = vpop.f32.mrf.mxu0
  %1519 = vmatprep.mubr.f32.mxu0 0.0
  %1520 = vmatmul.mubr.f32.gmra.mxu0 %v1420
  %v1521 = vpop.f32.mrf.mxu0
  %v1522 = vadd.f32 %v1393, %v1521
  %v1523 = vpop.f32.mrf.mxu0
  %1524 = vmatprep.mubr.f32.mxu0 0.0
  %1525 = vmatmul.mubr.f32.gmra.mxu0 %v1423
  %v1526 = vpop.f32.mrf.mxu0
  %v1527 = vadd.f32 %v1398, %v1526
  %v1528 = vpop.f32.mrf.mxu0
  %1529 = vdwg.mxu0
  %v1530 = vmul.f32 %v467, %v1492
  %v1531 = vmul.f32 %v472, %v1497
  %v1532 = vmul.f32 %v477, %v1502
  %v1533 = vmul.f32 %v482, %v1507
  %v1534 = vmul.f32 %v487, %v1512
  %v1535 = vmul.f32 %v492, %v1517
  %v1536 = vmul.f32 %v497, %v1522
  %v1537 = vmul.f32 %v502, %v1527
  %v1538 = vand.u32 2147483647, %v1530
  %vm1539 = vcmp.le.f32.partialorder %v1538, 0.7853982
  %vm1540 = vcmp.lt.s32.totalorder %v1530, 0
  %v1541 = vand.u32 %v1530, 2139095040
  %v1542 = vshrl.u32 %v1541, 23
  %v1543 = vsub.s32 %v1542, 127
  %v1544 = vand.u32 2147483647, %v1530
  %v1545 = vand.u32 %v1544, 8388607
  %v1546 = vor.u32 %v1545, 8388608
  %v1547 = vsub.s32 0, %v1546
  %v1548 = vadd.s32 %v1543, 1
  %vm1549 = vcmp.gt.s32.totalorder %v1548, 0
  %v1550 = vsel %vm1549, %v1548, 0
  %v1551 = vshrl.u32 %v1550, 5
  %v1552 = vand.u32 %v1550, 31
  %v1553 = vsub.s32 32, %v1552
  %v1554 = vshrl.u32 683565275, %v1553
  %v1555 = vshll.u32 683565275, %v1552
  %v1556 = vshrl.u32 2475754826, %v1553
  %v1557 = vor.u32 %v1555, %v1556
  %v1558 = vshll.u32 2475754826, %v1552
  %v1559 = vshrl.u32 2131351028, %v1553
  %v1560 = vor.u32 %v1558, %v1559
  %v1561 = vshll.u32 2131351028, %v1552
  %v1562 = vshrl.u32 2102212464, %v1553
  %v1563 = vor.u32 %v1561, %v1562
  %v1564 = vshll.u32 2102212464, %v1552
  %v1565 = vshrl.u32 920167782, %v1553
  %v1566 = vor.u32 %v1564, %v1565
  %v1567 = vshll.u32 920167782, %v1552
  %v1568 = vshrl.u32 1326507024, %v1553
  %v1569 = vor.u32 %v1567, %v1568
  %vm1570 = vcmp.lt.s32.totalorder %v1551, 1
  %vm1571 = vcmp.lt.s32.totalorder %v1551, 2
  %vm1572 = vcmp.lt.s32.totalorder %v1551, 3
  %vm1573 = vcmp.lt.s32.totalorder %v1551, 4
  %v1574 = vsel %vm1570, %v1554, %v1557
  %v1575 = vsel %vm1573, %v1563, 2102212464
  %v1576 = vsel %vm1572, %v1560, %v1575
  %v1577 = vsel %vm1571, %v1574, %v1576
  %v1578 = vsel %vm1570, %v1557, %v1560
  %v1579 = vsel %vm1573, %v1566, 920167782
  %v1580 = vsel %vm1572, %v1563, %v1579
  %v1581 = vsel %vm1571, %v1578, %v1580
  %v1582 = vsel %vm1570, %v1560, %v1563
  %v1583 = vsel %vm1573, %v1569, 1326507024
  %v1584 = vsel %vm1572, %v1566, %v1583
  %v1585 = vsel %vm1571, %v1582, %v1584
  %v1586 = vshll.u32 %v1546, 8
  %v1587 = vmul.u32.u64.compose %v1586, %v1585
  %v1588 = vextract.low.u32 %v1587
  %v1589 = vextract.high.u32 %v1587
  %v1590 = vmul.u32.u64.compose %v1586, %v1581
  %v1591 = vextract.low.u32 %v1590
  %v1592 = vextract.high.u32 %v1590
  %v1593 = vmul.u32 %v1586, %v1577
  %v1594 = vadd.s32 %v1589, %v1591
  %vm1595 = vc.u32 %v1589, %v1591
  %v1596 = vadd.s32 %v1592, 1
  %v1597 = vsel %vm1595, %v1596, %v1592
  %v1598 = vadd.s32 %v1593, %v1597
  %v1599 = vadd.s32 %v1598, 536870912
  %v1600 = vshrl.u32 %v1599, 30
  %v1601 = vshll.u32 %v1600, 30
  %v1602 = vsub.s32 %v1598, %v1601
  %vm1603 = vcmp.lt.s32.totalorder %v1602, 0
  %v1604 = vsub.s32 0, %v1602
  %v1605 = vsel %vm1603, %v1604, %v1602
  %v1606 = vclz %v1605
  %v1607 = vsub.s32 %v1606, 2
  %vm1608 = vcmp.gt.s32.totalorder 0, %v1607
  %v1609 = vsel %vm1608, 0, %v1607
  %v1610 = vsub.s32 32, %v1609
  %v1611 = vshll.u32 %v1602, %v1609
  %v1612 = vshrl.u32 %v1594, %v1610
  %v1613 = vor.u32 %v1611, %v1612
  %v1614 = vsub.s32 4294967266, %v1609
  %v1615 = vadd.s32 %v1614, 127
  %v1616 = vshll.u32 %v1615, 23
  %v1617 = vor.u32 4788187, %v1616
  %v1618 = vand.u32 2147483647, %v1617
  %v1620 = vcvt.s32.f32 %v1613
  %v1621 = vmul.f32 %v1620, %v1618
  %v1622 = vxor.u32 %v1621, 2147483648
  %v1623 = vsel %vm1540, %v1622, %v1621
  %v1624 = vsub.s32 4, %v1600
  %v1625 = vsel %vm1540, %v1624, %v1600
  %v1626 = vsel %vm1539, %v1530, %v1623
  %v1627 = vsel %vm1539, 0, %v1625
  %v1628 = vcosq.f32.pop %v1626
  %v1629 = vsinq.f32.pop %v1626
  %vm1630 = vweird.f32 %v1530
  %v1631 = vadd.s32 %v1627, 3
  %v1632 = vand.u32 %v1631, 3
  %vm1633 = vcmp.lt.s32.totalorder %v1632, 2
  %vm1634 = vcmp.eq.s32.totalorder %v1632, 0
  %v1635 = vxor.u32 %v1629, 2147483648
  %v1636 = vsel %vm1634, %v1628, %v1635
  %vm1637 = vcmp.eq.s32.totalorder %v1632, 2
  %v1638 = vxor.u32 %v1628, 2147483648
  %v1639 = vsel %vm1637, %v1638, %v1629
  %v1640 = vsel %vm1633, %v1636, %v1639
  %v1641 = vsel %vm1630, nan, %v1640
  %v1642 = vand.u32 2147483647, %v1531
  %vm1643 = vcmp.le.f32.partialorder %v1642, 0.7853982
  %vm1644 = vcmp.lt.s32.totalorder %v1531, 0
  %v1645 = vand.u32 %v1531, 2139095040
  %v1646 = vshrl.u32 %v1645, 23
  %v1647 = vsub.s32 %v1646, 127
  %v1648 = vand.u32 2147483647, %v1531
  %v1649 = vand.u32 %v1648, 8388607
  %v1650 = vor.u32 %v1649, 8388608
  %v1651 = vsub.s32 0, %v1650
  %v1652 = vadd.s32 %v1647, 1
  %vm1653 = vcmp.gt.s32.totalorder %v1652, 0
  %v1654 = vsel %vm1653, %v1652, 0
  %v1655 = vshrl.u32 %v1654, 5
  %v1656 = vand.u32 %v1654, 31
  %v1657 = vsub.s32 32, %v1656
  %v1658 = vshrl.u32 683565275, %v1657
  %v1659 = vshll.u32 683565275, %v1656
  %v1660 = vshrl.u32 2475754826, %v1657
  %v1661 = vor.u32 %v1659, %v1660
  %v1662 = vshll.u32 2475754826, %v1656
  %v1663 = vshrl.u32 2131351028, %v1657
  %v1664 = vor.u32 %v1662, %v1663
  %v1665 = vshll.u32 2131351028, %v1656
  %v1666 = vshrl.u32 2102212464, %v1657
  %v1667 = vor.u32 %v1665, %v1666
  %v1668 = vshll.u32 2102212464, %v1656
  %v1669 = vshrl.u32 920167782, %v1657
  %v1670 = vor.u32 %v1668, %v1669
  %v1671 = vshll.u32 920167782, %v1656
  %v1672 = vshrl.u32 1326507024, %v1657
  %v1673 = vor.u32 %v1671, %v1672
  %vm1674 = vcmp.lt.s32.totalorder %v1655, 1
  %vm1675 = vcmp.lt.s32.totalorder %v1655, 2
  %vm1676 = vcmp.lt.s32.totalorder %v1655, 3
  %vm1677 = vcmp.lt.s32.totalorder %v1655, 4
  %v1678 = vsel %vm1674, %v1658, %v1661
  %v1679 = vsel %vm1677, %v1667, 2102212464
  %v1680 = vsel %vm1676, %v1664, %v1679
  %v1681 = vsel %vm1675, %v1678, %v1680
  %v1682 = vsel %vm1674, %v1661, %v1664
  %v1683 = vsel %vm1677, %v1670, 920167782
  %v1684 = vsel %vm1676, %v1667, %v1683
  %v1685 = vsel %vm1675, %v1682, %v1684
  %v1686 = vsel %vm1674, %v1664, %v1667
  %v1687 = vsel %vm1677, %v1673, 1326507024
  %v1688 = vsel %vm1676, %v1670, %v1687
  %v1689 = vsel %vm1675, %v1686, %v1688
  %v1690 = vshll.u32 %v1650, 8
  %v1691 = vmul.u32.u64.compose %v1690, %v1689
  %v1692 = vextract.low.u32 %v1691
  %v1693 = vextract.high.u32 %v1691
  %v1694 = vmul.u32.u64.compose %v1690, %v1685
  %v1695 = vextract.low.u32 %v1694
  %v1696 = vextract.high.u32 %v1694
  %v1697 = vmul.u32 %v1690, %v1681
  %v1698 = vadd.s32 %v1693, %v1695
  %vm1699 = vc.u32 %v1693, %v1695
  %v1700 = vadd.s32 %v1696, 1
  %v1701 = vsel %vm1699, %v1700, %v1696
  %v1702 = vadd.s32 %v1697, %v1701
  %v1703 = vadd.s32 %v1702, 536870912
  %v1704 = vshrl.u32 %v1703, 30
  %v1705 = vshll.u32 %v1704, 30
  %v1706 = vsub.s32 %v1702, %v1705
  %vm1707 = vcmp.lt.s32.totalorder %v1706, 0
  %v1708 = vsub.s32 0, %v1706
  %v1709 = vsel %vm1707, %v1708, %v1706
  %v1710 = vclz %v1709
  %v1711 = vsub.s32 %v1710, 2
  %vm1712 = vcmp.gt.s32.totalorder 0, %v1711
  %v1713 = vsel %vm1712, 0, %v1711
  %v1714 = vsub.s32 32, %v1713
  %v1715 = vshll.u32 %v1706, %v1713
  %v1716 = vshrl.u32 %v1698, %v1714
  %v1717 = vor.u32 %v1715, %v1716
  %v1718 = vsub.s32 4294967266, %v1713
  %v1719 = vadd.s32 %v1718, 127
  %v1720 = vshll.u32 %v1719, 23
  %v1721 = vor.u32 4788187, %v1720
  %v1722 = vand.u32 2147483647, %v1721
  %v1724 = vcvt.s32.f32 %v1717
  %v1725 = vmul.f32 %v1724, %v1722
  %v1726 = vxor.u32 %v1725, 2147483648
  %v1727 = vsel %vm1644, %v1726, %v1725
  %v1728 = vsub.s32 4, %v1704
  %v1729 = vsel %vm1644, %v1728, %v1704
  %v1730 = vsel %vm1643, %v1531, %v1727
  %v1731 = vsel %vm1643, 0, %v1729
  %v1732 = vcosq.f32.pop %v1730
  %v1733 = vsinq.f32.pop %v1730
  %vm1734 = vweird.f32 %v1531
  %v1735 = vadd.s32 %v1731, 3
  %v1736 = vand.u32 %v1735, 3
  %vm1737 = vcmp.lt.s32.totalorder %v1736, 2
  %vm1738 = vcmp.eq.s32.totalorder %v1736, 0
  %v1739 = vxor.u32 %v1733, 2147483648
  %v1740 = vsel %vm1738, %v1732, %v1739
  %vm1741 = vcmp.eq.s32.totalorder %v1736, 2
  %v1742 = vxor.u32 %v1732, 2147483648
  %v1743 = vsel %vm1741, %v1742, %v1733
  %v1744 = vsel %vm1737, %v1740, %v1743
  %v1745 = vsel %vm1734, nan, %v1744
  %v1746 = vand.u32 2147483647, %v1532
  %vm1747 = vcmp.le.f32.partialorder %v1746, 0.7853982
  %vm1748 = vcmp.lt.s32.totalorder %v1532, 0
  %v1749 = vand.u32 %v1532, 2139095040
  %v1750 = vshrl.u32 %v1749, 23
  %v1751 = vsub.s32 %v1750, 127
  %v1752 = vand.u32 2147483647, %v1532
  %v1753 = vand.u32 %v1752, 8388607
  %v1754 = vor.u32 %v1753, 8388608
  %v1755 = vsub.s32 0, %v1754
  %v1756 = vadd.s32 %v1751, 1
  %vm1757 = vcmp.gt.s32.totalorder %v1756, 0
  %v1758 = vsel %vm1757, %v1756, 0
  %v1759 = vshrl.u32 %v1758, 5
  %v1760 = vand.u32 %v1758, 31
  %v1761 = vsub.s32 32, %v1760
  %v1762 = vshrl.u32 683565275, %v1761
  %v1763 = vshll.u32 683565275, %v1760
  %v1764 = vshrl.u32 2475754826, %v1761
  %v1765 = vor.u32 %v1763, %v1764
  %v1766 = vshll.u32 2475754826, %v1760
  %v1767 = vshrl.u32 2131351028, %v1761
  %v1768 = vor.u32 %v1766, %v1767
  %v1769 = vshll.u32 2131351028, %v1760
  %v1770 = vshrl.u32 2102212464, %v1761
  %v1771 = vor.u32 %v1769, %v1770
  %v1772 = vshll.u32 2102212464, %v1760
  %v1773 = vshrl.u32 920167782, %v1761
  %v1774 = vor.u32 %v1772, %v1773
  %v1775 = vshll.u32 920167782, %v1760
  %v1776 = vshrl.u32 1326507024, %v1761
  %v1777 = vor.u32 %v1775, %v1776
  %vm1778 = vcmp.lt.s32.totalorder %v1759, 1
  %vm1779 = vcmp.lt.s32.totalorder %v1759, 2
  %vm1780 = vcmp.lt.s32.totalorder %v1759, 3
  %vm1781 = vcmp.lt.s32.totalorder %v1759, 4
  %v1782 = vsel %vm1778, %v1762, %v1765
  %v1783 = vsel %vm1781, %v1771, 2102212464
  %v1784 = vsel %vm1780, %v1768, %v1783
  %v1785 = vsel %vm1779, %v1782, %v1784
  %v1786 = vsel %vm1778, %v1765, %v1768
  %v1787 = vsel %vm1781, %v1774, 920167782
  %v1788 = vsel %vm1780, %v1771, %v1787
  %v1789 = vsel %vm1779, %v1786, %v1788
  %v1790 = vsel %vm1778, %v1768, %v1771
  %v1791 = vsel %vm1781, %v1777, 1326507024
  %v1792 = vsel %vm1780, %v1774, %v1791
  %v1793 = vsel %vm1779, %v1790, %v1792
  %v1794 = vshll.u32 %v1754, 8
  %v1795 = vmul.u32.u64.compose %v1794, %v1793
  %v1796 = vextract.low.u32 %v1795
  %v1797 = vextract.high.u32 %v1795
  %v1798 = vmul.u32.u64.compose %v1794, %v1789
  %v1799 = vextract.low.u32 %v1798
  %v1800 = vextract.high.u32 %v1798
  %v1801 = vmul.u32 %v1794, %v1785
  %v1802 = vadd.s32 %v1797, %v1799
  %vm1803 = vc.u32 %v1797, %v1799
  %v1804 = vadd.s32 %v1800, 1
  %v1805 = vsel %vm1803, %v1804, %v1800
  %v1806 = vadd.s32 %v1801, %v1805
  %v1807 = vadd.s32 %v1806, 536870912
  %v1808 = vshrl.u32 %v1807, 30
  %v1809 = vshll.u32 %v1808, 30
  %v1810 = vsub.s32 %v1806, %v1809
  %vm1811 = vcmp.lt.s32.totalorder %v1810, 0
  %v1812 = vsub.s32 0, %v1810
  %v1813 = vsel %vm1811, %v1812, %v1810
  %v1814 = vclz %v1813
  %v1815 = vsub.s32 %v1814, 2
  %vm1816 = vcmp.gt.s32.totalorder 0, %v1815
  %v1817 = vsel %vm1816, 0, %v1815
  %v1818 = vsub.s32 32, %v1817
  %v1819 = vshll.u32 %v1810, %v1817
  %v1820 = vshrl.u32 %v1802, %v1818
  %v1821 = vor.u32 %v1819, %v1820
  %v1822 = vsub.s32 4294967266, %v1817
  %v1823 = vadd.s32 %v1822, 127
  %v1824 = vshll.u32 %v1823, 23
  %v1825 = vor.u32 4788187, %v1824
  %v1826 = vand.u32 2147483647, %v1825
  %v1828 = vcvt.s32.f32 %v1821
  %v1829 = vmul.f32 %v1828, %v1826
  %v1830 = vxor.u32 %v1829, 2147483648
  %v1831 = vsel %vm1748, %v1830, %v1829
  %v1832 = vsub.s32 4, %v1808
  %v1833 = vsel %vm1748, %v1832, %v1808
  %v1834 = vsel %vm1747, %v1532, %v1831
  %v1835 = vsel %vm1747, 0, %v1833
  %v1836 = vcosq.f32.pop %v1834
  %v1837 = vsinq.f32.pop %v1834
  %vm1838 = vweird.f32 %v1532
  %v1839 = vadd.s32 %v1835, 3
  %v1840 = vand.u32 %v1839, 3
  %vm1841 = vcmp.lt.s32.totalorder %v1840, 2
  %vm1842 = vcmp.eq.s32.totalorder %v1840, 0
  %v1843 = vxor.u32 %v1837, 2147483648
  %v1844 = vsel %vm1842, %v1836, %v1843
  %vm1845 = vcmp.eq.s32.totalorder %v1840, 2
  %v1846 = vxor.u32 %v1836, 2147483648
  %v1847 = vsel %vm1845, %v1846, %v1837
  %v1848 = vsel %vm1841, %v1844, %v1847
  %v1849 = vsel %vm1838, nan, %v1848
  %v1850 = vand.u32 2147483647, %v1533
  %vm1851 = vcmp.le.f32.partialorder %v1850, 0.7853982
  %vm1852 = vcmp.lt.s32.totalorder %v1533, 0
  %v1853 = vand.u32 %v1533, 2139095040
  %v1854 = vshrl.u32 %v1853, 23
  %v1855 = vsub.s32 %v1854, 127
  %v1856 = vand.u32 2147483647, %v1533
  %v1857 = vand.u32 %v1856, 8388607
  %v1858 = vor.u32 %v1857, 8388608
  %v1859 = vsub.s32 0, %v1858
  %v1860 = vadd.s32 %v1855, 1
  %vm1861 = vcmp.gt.s32.totalorder %v1860, 0
  %v1862 = vsel %vm1861, %v1860, 0
  %v1863 = vshrl.u32 %v1862, 5
  %v1864 = vand.u32 %v1862, 31
  %v1865 = vsub.s32 32, %v1864
  %v1866 = vshrl.u32 683565275, %v1865
  %v1867 = vshll.u32 683565275, %v1864
  %v1868 = vshrl.u32 2475754826, %v1865
  %v1869 = vor.u32 %v1867, %v1868
  %v1870 = vshll.u32 2475754826, %v1864
  %v1871 = vshrl.u32 2131351028, %v1865
  %v1872 = vor.u32 %v1870, %v1871
  %v1873 = vshll.u32 2131351028, %v1864
  %v1874 = vshrl.u32 2102212464, %v1865
  %v1875 = vor.u32 %v1873, %v1874
  %v1876 = vshll.u32 2102212464, %v1864
  %v1877 = vshrl.u32 920167782, %v1865
  %v1878 = vor.u32 %v1876, %v1877
  %v1879 = vshll.u32 920167782, %v1864
  %v1880 = vshrl.u32 1326507024, %v1865
  %v1881 = vor.u32 %v1879, %v1880
  %vm1882 = vcmp.lt.s32.totalorder %v1863, 1
  %vm1883 = vcmp.lt.s32.totalorder %v1863, 2
  %vm1884 = vcmp.lt.s32.totalorder %v1863, 3
  %vm1885 = vcmp.lt.s32.totalorder %v1863, 4
  %v1886 = vsel %vm1882, %v1866, %v1869
  %v1887 = vsel %vm1885, %v1875, 2102212464
  %v1888 = vsel %vm1884, %v1872, %v1887
  %v1889 = vsel %vm1883, %v1886, %v1888
  %v1890 = vsel %vm1882, %v1869, %v1872
  %v1891 = vsel %vm1885, %v1878, 920167782
  %v1892 = vsel %vm1884, %v1875, %v1891
  %v1893 = vsel %vm1883, %v1890, %v1892
  %v1894 = vsel %vm1882, %v1872, %v1875
  %v1895 = vsel %vm1885, %v1881, 1326507024
  %v1896 = vsel %vm1884, %v1878, %v1895
  %v1897 = vsel %vm1883, %v1894, %v1896
  %v1898 = vshll.u32 %v1858, 8
  %v1899 = vmul.u32.u64.compose %v1898, %v1897
  %v1900 = vextract.low.u32 %v1899
  %v1901 = vextract.high.u32 %v1899
  %v1902 = vmul.u32.u64.compose %v1898, %v1893
  %v1903 = vextract.low.u32 %v1902
  %v1904 = vextract.high.u32 %v1902
  %v1905 = vmul.u32 %v1898, %v1889
  %v1906 = vadd.s32 %v1901, %v1903
  %vm1907 = vc.u32 %v1901, %v1903
  %v1908 = vadd.s32 %v1904, 1
  %v1909 = vsel %vm1907, %v1908, %v1904
  %v1910 = vadd.s32 %v1905, %v1909
  %v1911 = vadd.s32 %v1910, 536870912
  %v1912 = vshrl.u32 %v1911, 30
  %v1913 = vshll.u32 %v1912, 30
  %v1914 = vsub.s32 %v1910, %v1913
  %vm1915 = vcmp.lt.s32.totalorder %v1914, 0
  %v1916 = vsub.s32 0, %v1914
  %v1917 = vsel %vm1915, %v1916, %v1914
  %v1918 = vclz %v1917
  %v1919 = vsub.s32 %v1918, 2
  %vm1920 = vcmp.gt.s32.totalorder 0, %v1919
  %v1921 = vsel %vm1920, 0, %v1919
  %v1922 = vsub.s32 32, %v1921
  %v1923 = vshll.u32 %v1914, %v1921
  %v1924 = vshrl.u32 %v1906, %v1922
  %v1925 = vor.u32 %v1923, %v1924
  %v1926 = vsub.s32 4294967266, %v1921
  %v1927 = vadd.s32 %v1926, 127
  %v1928 = vshll.u32 %v1927, 23
  %v1929 = vor.u32 4788187, %v1928
  %v1930 = vand.u32 2147483647, %v1929
  %v1932 = vcvt.s32.f32 %v1925
  %v1933 = vmul.f32 %v1932, %v1930
  %v1934 = vxor.u32 %v1933, 2147483648
  %v1935 = vsel %vm1852, %v1934, %v1933
  %v1936 = vsub.s32 4, %v1912
  %v1937 = vsel %vm1852, %v1936, %v1912
  %v1938 = vsel %vm1851, %v1533, %v1935
  %v1939 = vsel %vm1851, 0, %v1937
  %v1940 = vcosq.f32.pop %v1938
  %v1941 = vsinq.f32.pop %v1938
  %vm1942 = vweird.f32 %v1533
  %v1943 = vadd.s32 %v1939, 3
  %v1944 = vand.u32 %v1943, 3
  %vm1945 = vcmp.lt.s32.totalorder %v1944, 2
  %vm1946 = vcmp.eq.s32.totalorder %v1944, 0
  %v1947 = vxor.u32 %v1941, 2147483648
  %v1948 = vsel %vm1946, %v1940, %v1947
  %vm1949 = vcmp.eq.s32.totalorder %v1944, 2
  %v1950 = vxor.u32 %v1940, 2147483648
  %v1951 = vsel %vm1949, %v1950, %v1941
  %v1952 = vsel %vm1945, %v1948, %v1951
  %v1953 = vsel %vm1942, nan, %v1952
  %v1954 = vand.u32 2147483647, %v1534
  %vm1955 = vcmp.le.f32.partialorder %v1954, 0.7853982
  %vm1956 = vcmp.lt.s32.totalorder %v1534, 0
  %v1957 = vand.u32 %v1534, 2139095040
  %v1958 = vshrl.u32 %v1957, 23
  %v1959 = vsub.s32 %v1958, 127
  %v1960 = vand.u32 2147483647, %v1534
  %v1961 = vand.u32 %v1960, 8388607
  %v1962 = vor.u32 %v1961, 8388608
  %v1963 = vsub.s32 0, %v1962
  %v1964 = vadd.s32 %v1959, 1
  %vm1965 = vcmp.gt.s32.totalorder %v1964, 0
  %v1966 = vsel %vm1965, %v1964, 0
  %v1967 = vshrl.u32 %v1966, 5
  %v1968 = vand.u32 %v1966, 31
  %v1969 = vsub.s32 32, %v1968
  %v1970 = vshrl.u32 683565275, %v1969
  %v1971 = vshll.u32 683565275, %v1968
  %v1972 = vshrl.u32 2475754826, %v1969
  %v1973 = vor.u32 %v1971, %v1972
  %v1974 = vshll.u32 2475754826, %v1968
  %v1975 = vshrl.u32 2131351028, %v1969
  %v1976 = vor.u32 %v1974, %v1975
  %v1977 = vshll.u32 2131351028, %v1968
  %v1978 = vshrl.u32 2102212464, %v1969
  %v1979 = vor.u32 %v1977, %v1978
  %v1980 = vshll.u32 2102212464, %v1968
  %v1981 = vshrl.u32 920167782, %v1969
  %v1982 = vor.u32 %v1980, %v1981
  %v1983 = vshll.u32 920167782, %v1968
  %v1984 = vshrl.u32 1326507024, %v1969
  %v1985 = vor.u32 %v1983, %v1984
  %vm1986 = vcmp.lt.s32.totalorder %v1967, 1
  %vm1987 = vcmp.lt.s32.totalorder %v1967, 2
  %vm1988 = vcmp.lt.s32.totalorder %v1967, 3
  %vm1989 = vcmp.lt.s32.totalorder %v1967, 4
  %v1990 = vsel %vm1986, %v1970, %v1973
  %v1991 = vsel %vm1989, %v1979, 2102212464
  %v1992 = vsel %vm1988, %v1976, %v1991
  %v1993 = vsel %vm1987, %v1990, %v1992
  %v1994 = vsel %vm1986, %v1973, %v1976
  %v1995 = vsel %vm1989, %v1982, 920167782
  %v1996 = vsel %vm1988, %v1979, %v1995
  %v1997 = vsel %vm1987, %v1994, %v1996
  %v1998 = vsel %vm1986, %v1976, %v1979
  %v1999 = vsel %vm1989, %v1985, 1326507024
  %v2000 = vsel %vm1988, %v1982, %v1999
  %v2001 = vsel %vm1987, %v1998, %v2000
  %v2002 = vshll.u32 %v1962, 8
  %v2003 = vmul.u32.u64.compose %v2002, %v2001
  %v2004 = vextract.low.u32 %v2003
  %v2005 = vextract.high.u32 %v2003
  %v2006 = vmul.u32.u64.compose %v2002, %v1997
  %v2007 = vextract.low.u32 %v2006
  %v2008 = vextract.high.u32 %v2006
  %v2009 = vmul.u32 %v2002, %v1993
  %v2010 = vadd.s32 %v2005, %v2007
  %vm2011 = vc.u32 %v2005, %v2007
  %v2012 = vadd.s32 %v2008, 1
  %v2013 = vsel %vm2011, %v2012, %v2008
  %v2014 = vadd.s32 %v2009, %v2013
  %v2015 = vadd.s32 %v2014, 536870912
  %v2016 = vshrl.u32 %v2015, 30
  %v2017 = vshll.u32 %v2016, 30
  %v2018 = vsub.s32 %v2014, %v2017
  %vm2019 = vcmp.lt.s32.totalorder %v2018, 0
  %v2020 = vsub.s32 0, %v2018
  %v2021 = vsel %vm2019, %v2020, %v2018
  %v2022 = vclz %v2021
  %v2023 = vsub.s32 %v2022, 2
  %vm2024 = vcmp.gt.s32.totalorder 0, %v2023
  %v2025 = vsel %vm2024, 0, %v2023
  %v2026 = vsub.s32 32, %v2025
  %v2027 = vshll.u32 %v2018, %v2025
  %v2028 = vshrl.u32 %v2010, %v2026
  %v2029 = vor.u32 %v2027, %v2028
  %v2030 = vsub.s32 4294967266, %v2025
  %v2031 = vadd.s32 %v2030, 127
  %v2032 = vshll.u32 %v2031, 23
  %v2033 = vor.u32 4788187, %v2032
  %v2034 = vand.u32 2147483647, %v2033
  %v2036 = vcvt.s32.f32 %v2029
  %v2037 = vmul.f32 %v2036, %v2034
  %v2038 = vxor.u32 %v2037, 2147483648
  %v2039 = vsel %vm1956, %v2038, %v2037
  %v2040 = vsub.s32 4, %v2016
  %v2041 = vsel %vm1956, %v2040, %v2016
  %v2042 = vsel %vm1955, %v1534, %v2039
  %v2043 = vsel %vm1955, 0, %v2041
  %v2044 = vcosq.f32.pop %v2042
  %v2045 = vsinq.f32.pop %v2042
  %vm2046 = vweird.f32 %v1534
  %v2047 = vadd.s32 %v2043, 3
  %v2048 = vand.u32 %v2047, 3
  %vm2049 = vcmp.lt.s32.totalorder %v2048, 2
  %vm2050 = vcmp.eq.s32.totalorder %v2048, 0
  %v2051 = vxor.u32 %v2045, 2147483648
  %v2052 = vsel %vm2050, %v2044, %v2051
  %vm2053 = vcmp.eq.s32.totalorder %v2048, 2
  %v2054 = vxor.u32 %v2044, 2147483648
  %v2055 = vsel %vm2053, %v2054, %v2045
  %v2056 = vsel %vm2049, %v2052, %v2055
  %v2057 = vsel %vm2046, nan, %v2056
  %v2058 = vand.u32 2147483647, %v1535
  %vm2059 = vcmp.le.f32.partialorder %v2058, 0.7853982
  %vm2060 = vcmp.lt.s32.totalorder %v1535, 0
  %v2061 = vand.u32 %v1535, 2139095040
  %v2062 = vshrl.u32 %v2061, 23
  %v2063 = vsub.s32 %v2062, 127
  %v2064 = vand.u32 2147483647, %v1535
  %v2065 = vand.u32 %v2064, 8388607
  %v2066 = vor.u32 %v2065, 8388608
  %v2067 = vsub.s32 0, %v2066
  %v2068 = vadd.s32 %v2063, 1
  %vm2069 = vcmp.gt.s32.totalorder %v2068, 0
  %v2070 = vsel %vm2069, %v2068, 0
  %v2071 = vshrl.u32 %v2070, 5
  %v2072 = vand.u32 %v2070, 31
  %v2073 = vsub.s32 32, %v2072
  %v2074 = vshrl.u32 683565275, %v2073
  %v2075 = vshll.u32 683565275, %v2072
  %v2076 = vshrl.u32 2475754826, %v2073
  %v2077 = vor.u32 %v2075, %v2076
  %v2078 = vshll.u32 2475754826, %v2072
  %v2079 = vshrl.u32 2131351028, %v2073
  %v2080 = vor.u32 %v2078, %v2079
  %v2081 = vshll.u32 2131351028, %v2072
  %v2082 = vshrl.u32 2102212464, %v2073
  %v2083 = vor.u32 %v2081, %v2082
  %v2084 = vshll.u32 2102212464, %v2072
  %v2085 = vshrl.u32 920167782, %v2073
  %v2086 = vor.u32 %v2084, %v2085
  %v2087 = vshll.u32 920167782, %v2072
  %v2088 = vshrl.u32 1326507024, %v2073
  %v2089 = vor.u32 %v2087, %v2088
  %vm2090 = vcmp.lt.s32.totalorder %v2071, 1
  %vm2091 = vcmp.lt.s32.totalorder %v2071, 2
  %vm2092 = vcmp.lt.s32.totalorder %v2071, 3
  %vm2093 = vcmp.lt.s32.totalorder %v2071, 4
  %v2094 = vsel %vm2090, %v2074, %v2077
  %v2095 = vsel %vm2093, %v2083, 2102212464
  %v2096 = vsel %vm2092, %v2080, %v2095
  %v2097 = vsel %vm2091, %v2094, %v2096
  %v2098 = vsel %vm2090, %v2077, %v2080
  %v2099 = vsel %vm2093, %v2086, 920167782
  %v2100 = vsel %vm2092, %v2083, %v2099
  %v2101 = vsel %vm2091, %v2098, %v2100
  %v2102 = vsel %vm2090, %v2080, %v2083
  %v2103 = vsel %vm2093, %v2089, 1326507024
  %v2104 = vsel %vm2092, %v2086, %v2103
  %v2105 = vsel %vm2091, %v2102, %v2104
  %v2106 = vshll.u32 %v2066, 8
  %v2107 = vmul.u32.u64.compose %v2106, %v2105
  %v2108 = vextract.low.u32 %v2107
  %v2109 = vextract.high.u32 %v2107
  %v2110 = vmul.u32.u64.compose %v2106, %v2101
  %v2111 = vextract.low.u32 %v2110
  %v2112 = vextract.high.u32 %v2110
  %v2113 = vmul.u32 %v2106, %v2097
  %v2114 = vadd.s32 %v2109, %v2111
  %vm2115 = vc.u32 %v2109, %v2111
  %v2116 = vadd.s32 %v2112, 1
  %v2117 = vsel %vm2115, %v2116, %v2112
  %v2118 = vadd.s32 %v2113, %v2117
  %v2119 = vadd.s32 %v2118, 536870912
  %v2120 = vshrl.u32 %v2119, 30
  %v2121 = vshll.u32 %v2120, 30
  %v2122 = vsub.s32 %v2118, %v2121
  %vm2123 = vcmp.lt.s32.totalorder %v2122, 0
  %v2124 = vsub.s32 0, %v2122
  %v2125 = vsel %vm2123, %v2124, %v2122
  %v2126 = vclz %v2125
  %v2127 = vsub.s32 %v2126, 2
  %vm2128 = vcmp.gt.s32.totalorder 0, %v2127
  %v2129 = vsel %vm2128, 0, %v2127
  %v2130 = vsub.s32 32, %v2129
  %v2131 = vshll.u32 %v2122, %v2129
  %v2132 = vshrl.u32 %v2114, %v2130
  %v2133 = vor.u32 %v2131, %v2132
  %v2134 = vsub.s32 4294967266, %v2129
  %v2135 = vadd.s32 %v2134, 127
  %v2136 = vshll.u32 %v2135, 23
  %v2137 = vor.u32 4788187, %v2136
  %v2138 = vand.u32 2147483647, %v2137
  %v2140 = vcvt.s32.f32 %v2133
  %v2141 = vmul.f32 %v2140, %v2138
  %v2142 = vxor.u32 %v2141, 2147483648
  %v2143 = vsel %vm2060, %v2142, %v2141
  %v2144 = vsub.s32 4, %v2120
  %v2145 = vsel %vm2060, %v2144, %v2120
  %v2146 = vsel %vm2059, %v1535, %v2143
  %v2147 = vsel %vm2059, 0, %v2145
  %v2148 = vcosq.f32.pop %v2146
  %v2149 = vsinq.f32.pop %v2146
  %vm2150 = vweird.f32 %v1535
  %v2151 = vadd.s32 %v2147, 3
  %v2152 = vand.u32 %v2151, 3
  %vm2153 = vcmp.lt.s32.totalorder %v2152, 2
  %vm2154 = vcmp.eq.s32.totalorder %v2152, 0
  %v2155 = vxor.u32 %v2149, 2147483648
  %v2156 = vsel %vm2154, %v2148, %v2155
  %vm2157 = vcmp.eq.s32.totalorder %v2152, 2
  %v2158 = vxor.u32 %v2148, 2147483648
  %v2159 = vsel %vm2157, %v2158, %v2149
  %v2160 = vsel %vm2153, %v2156, %v2159
  %v2161 = vsel %vm2150, nan, %v2160
  %v2162 = vand.u32 2147483647, %v1536
  %vm2163 = vcmp.le.f32.partialorder %v2162, 0.7853982
  %vm2164 = vcmp.lt.s32.totalorder %v1536, 0
  %v2165 = vand.u32 %v1536, 2139095040
  %v2166 = vshrl.u32 %v2165, 23
  %v2167 = vsub.s32 %v2166, 127
  %v2168 = vand.u32 2147483647, %v1536
  %v2169 = vand.u32 %v2168, 8388607
  %v2170 = vor.u32 %v2169, 8388608
  %v2171 = vsub.s32 0, %v2170
  %v2172 = vadd.s32 %v2167, 1
  %vm2173 = vcmp.gt.s32.totalorder %v2172, 0
  %v2174 = vsel %vm2173, %v2172, 0
  %v2175 = vshrl.u32 %v2174, 5
  %v2176 = vand.u32 %v2174, 31
  %v2177 = vsub.s32 32, %v2176
  %v2178 = vshrl.u32 683565275, %v2177
  %v2179 = vshll.u32 683565275, %v2176
  %v2180 = vshrl.u32 2475754826, %v2177
  %v2181 = vor.u32 %v2179, %v2180
  %v2182 = vshll.u32 2475754826, %v2176
  %v2183 = vshrl.u32 2131351028, %v2177
  %v2184 = vor.u32 %v2182, %v2183
  %v2185 = vshll.u32 2131351028, %v2176
  %v2186 = vshrl.u32 2102212464, %v2177
  %v2187 = vor.u32 %v2185, %v2186
  %v2188 = vshll.u32 2102212464, %v2176
  %v2189 = vshrl.u32 920167782, %v2177
  %v2190 = vor.u32 %v2188, %v2189
  %v2191 = vshll.u32 920167782, %v2176
  %v2192 = vshrl.u32 1326507024, %v2177
  %v2193 = vor.u32 %v2191, %v2192
  %vm2194 = vcmp.lt.s32.totalorder %v2175, 1
  %vm2195 = vcmp.lt.s32.totalorder %v2175, 2
  %vm2196 = vcmp.lt.s32.totalorder %v2175, 3
  %vm2197 = vcmp.lt.s32.totalorder %v2175, 4
  %v2198 = vsel %vm2194, %v2178, %v2181
  %v2199 = vsel %vm2197, %v2187, 2102212464
  %v2200 = vsel %vm2196, %v2184, %v2199
  %v2201 = vsel %vm2195, %v2198, %v2200
  %v2202 = vsel %vm2194, %v2181, %v2184
  %v2203 = vsel %vm2197, %v2190, 920167782
  %v2204 = vsel %vm2196, %v2187, %v2203
  %v2205 = vsel %vm2195, %v2202, %v2204
  %v2206 = vsel %vm2194, %v2184, %v2187
  %v2207 = vsel %vm2197, %v2193, 1326507024
  %v2208 = vsel %vm2196, %v2190, %v2207
  %v2209 = vsel %vm2195, %v2206, %v2208
  %v2210 = vshll.u32 %v2170, 8
  %v2211 = vmul.u32.u64.compose %v2210, %v2209
  %v2212 = vextract.low.u32 %v2211
  %v2213 = vextract.high.u32 %v2211
  %v2214 = vmul.u32.u64.compose %v2210, %v2205
  %v2215 = vextract.low.u32 %v2214
  %v2216 = vextract.high.u32 %v2214
  %v2217 = vmul.u32 %v2210, %v2201
  %v2218 = vadd.s32 %v2213, %v2215
  %vm2219 = vc.u32 %v2213, %v2215
  %v2220 = vadd.s32 %v2216, 1
  %v2221 = vsel %vm2219, %v2220, %v2216
  %v2222 = vadd.s32 %v2217, %v2221
  %v2223 = vadd.s32 %v2222, 536870912
  %v2224 = vshrl.u32 %v2223, 30
  %v2225 = vshll.u32 %v2224, 30
  %v2226 = vsub.s32 %v2222, %v2225
  %vm2227 = vcmp.lt.s32.totalorder %v2226, 0
  %v2228 = vsub.s32 0, %v2226
  %v2229 = vsel %vm2227, %v2228, %v2226
  %v2230 = vclz %v2229
  %v2231 = vsub.s32 %v2230, 2
  %vm2232 = vcmp.gt.s32.totalorder 0, %v2231
  %v2233 = vsel %vm2232, 0, %v2231
  %v2234 = vsub.s32 32, %v2233
  %v2235 = vshll.u32 %v2226, %v2233
  %v2236 = vshrl.u32 %v2218, %v2234
  %v2237 = vor.u32 %v2235, %v2236
  %v2238 = vsub.s32 4294967266, %v2233
  %v2239 = vadd.s32 %v2238, 127
  %v2240 = vshll.u32 %v2239, 23
  %v2241 = vor.u32 4788187, %v2240
  %v2242 = vand.u32 2147483647, %v2241
  %v2244 = vcvt.s32.f32 %v2237
  %v2245 = vmul.f32 %v2244, %v2242
  %v2246 = vxor.u32 %v2245, 2147483648
  %v2247 = vsel %vm2164, %v2246, %v2245
  %v2248 = vsub.s32 4, %v2224
  %v2249 = vsel %vm2164, %v2248, %v2224
  %v2250 = vsel %vm2163, %v1536, %v2247
  %v2251 = vsel %vm2163, 0, %v2249
  %v2252 = vcosq.f32.pop %v2250
  %v2253 = vsinq.f32.pop %v2250
  %vm2254 = vweird.f32 %v1536
  %v2255 = vadd.s32 %v2251, 3
  %v2256 = vand.u32 %v2255, 3
  %vm2257 = vcmp.lt.s32.totalorder %v2256, 2
  %vm2258 = vcmp.eq.s32.totalorder %v2256, 0
  %v2259 = vxor.u32 %v2253, 2147483648
  %v2260 = vsel %vm2258, %v2252, %v2259
  %vm2261 = vcmp.eq.s32.totalorder %v2256, 2
  %v2262 = vxor.u32 %v2252, 2147483648
  %v2263 = vsel %vm2261, %v2262, %v2253
  %v2264 = vsel %vm2257, %v2260, %v2263
  %v2265 = vsel %vm2254, nan, %v2264
  %v2266 = vand.u32 2147483647, %v1537
  %vm2267 = vcmp.le.f32.partialorder %v2266, 0.7853982
  %vm2268 = vcmp.lt.s32.totalorder %v1537, 0
  %v2269 = vand.u32 %v1537, 2139095040
  %v2270 = vshrl.u32 %v2269, 23
  %v2271 = vsub.s32 %v2270, 127
  %v2272 = vand.u32 2147483647, %v1537
  %v2273 = vand.u32 %v2272, 8388607
  %v2274 = vor.u32 %v2273, 8388608
  %v2275 = vsub.s32 0, %v2274
  %v2276 = vadd.s32 %v2271, 1
  %vm2277 = vcmp.gt.s32.totalorder %v2276, 0
  %v2278 = vsel %vm2277, %v2276, 0
  %v2279 = vshrl.u32 %v2278, 5
  %v2280 = vand.u32 %v2278, 31
  %v2281 = vsub.s32 32, %v2280
  %v2282 = vshrl.u32 683565275, %v2281
  %v2283 = vshll.u32 683565275, %v2280
  %v2284 = vshrl.u32 2475754826, %v2281
  %v2285 = vor.u32 %v2283, %v2284
  %v2286 = vshll.u32 2475754826, %v2280
  %v2287 = vshrl.u32 2131351028, %v2281
  %v2288 = vor.u32 %v2286, %v2287
  %v2289 = vshll.u32 2131351028, %v2280
  %v2290 = vshrl.u32 2102212464, %v2281
  %v2291 = vor.u32 %v2289, %v2290
  %v2292 = vshll.u32 2102212464, %v2280
  %v2293 = vshrl.u32 920167782, %v2281
  %v2294 = vor.u32 %v2292, %v2293
  %v2295 = vshll.u32 920167782, %v2280
  %v2296 = vshrl.u32 1326507024, %v2281
  %v2297 = vor.u32 %v2295, %v2296
  %vm2298 = vcmp.lt.s32.totalorder %v2279, 1
  %vm2299 = vcmp.lt.s32.totalorder %v2279, 2
  %vm2300 = vcmp.lt.s32.totalorder %v2279, 3
  %vm2301 = vcmp.lt.s32.totalorder %v2279, 4
  %v2302 = vsel %vm2298, %v2282, %v2285
  %v2303 = vsel %vm2301, %v2291, 2102212464
  %v2304 = vsel %vm2300, %v2288, %v2303
  %v2305 = vsel %vm2299, %v2302, %v2304
  %v2306 = vsel %vm2298, %v2285, %v2288
  %v2307 = vsel %vm2301, %v2294, 920167782
  %v2308 = vsel %vm2300, %v2291, %v2307
  %v2309 = vsel %vm2299, %v2306, %v2308
  %v2310 = vsel %vm2298, %v2288, %v2291
  %v2311 = vsel %vm2301, %v2297, 1326507024
  %v2312 = vsel %vm2300, %v2294, %v2311
  %v2313 = vsel %vm2299, %v2310, %v2312
  %v2314 = vshll.u32 %v2274, 8
  %v2315 = vmul.u32.u64.compose %v2314, %v2313
  %v2316 = vextract.low.u32 %v2315
  %v2317 = vextract.high.u32 %v2315
  %v2318 = vmul.u32.u64.compose %v2314, %v2309
  %v2319 = vextract.low.u32 %v2318
  %v2320 = vextract.high.u32 %v2318
  %v2321 = vmul.u32 %v2314, %v2305
  %v2322 = vadd.s32 %v2317, %v2319
  %vm2323 = vc.u32 %v2317, %v2319
  %v2324 = vadd.s32 %v2320, 1
  %v2325 = vsel %vm2323, %v2324, %v2320
  %v2326 = vadd.s32 %v2321, %v2325
  %v2327 = vadd.s32 %v2326, 536870912
  %v2328 = vshrl.u32 %v2327, 30
  %v2329 = vshll.u32 %v2328, 30
  %v2330 = vsub.s32 %v2326, %v2329
  %vm2331 = vcmp.lt.s32.totalorder %v2330, 0
  %v2332 = vsub.s32 0, %v2330
  %v2333 = vsel %vm2331, %v2332, %v2330
  %v2334 = vclz %v2333
  %v2335 = vsub.s32 %v2334, 2
  %vm2336 = vcmp.gt.s32.totalorder 0, %v2335
  %v2337 = vsel %vm2336, 0, %v2335
  %v2338 = vsub.s32 32, %v2337
  %v2339 = vshll.u32 %v2330, %v2337
  %v2340 = vshrl.u32 %v2322, %v2338
  %v2341 = vor.u32 %v2339, %v2340
  %v2342 = vsub.s32 4294967266, %v2337
  %v2343 = vadd.s32 %v2342, 127
  %v2344 = vshll.u32 %v2343, 23
  %v2345 = vor.u32 4788187, %v2344
  %v2346 = vand.u32 2147483647, %v2345
  %v2348 = vcvt.s32.f32 %v2341
  %v2349 = vmul.f32 %v2348, %v2346
  %v2350 = vxor.u32 %v2349, 2147483648
  %v2351 = vsel %vm2268, %v2350, %v2349
  %v2352 = vsub.s32 4, %v2328
  %v2353 = vsel %vm2268, %v2352, %v2328
  %v2354 = vsel %vm2267, %v1537, %v2351
  %v2355 = vsel %vm2267, 0, %v2353
  %v2356 = vcosq.f32.pop %v2354
  %v2357 = vsinq.f32.pop %v2354
  %vm2358 = vweird.f32 %v1537
  %v2359 = vadd.s32 %v2355, 3
  %v2360 = vand.u32 %v2359, 3
  %vm2361 = vcmp.lt.s32.totalorder %v2360, 2
  %vm2362 = vcmp.eq.s32.totalorder %v2360, 0
  %v2363 = vxor.u32 %v2357, 2147483648
  %v2364 = vsel %vm2362, %v2356, %v2363
  %vm2365 = vcmp.eq.s32.totalorder %v2360, 2
  %v2366 = vxor.u32 %v2356, 2147483648
  %v2367 = vsel %vm2365, %v2366, %v2357
  %v2368 = vsel %vm2361, %v2364, %v2367
  %v2369 = vsel %vm2358, nan, %v2368
  %v2370 = vld [vmem:[%s5] sm:$0xff]
  %v2371 = vld [vmem:[%s5 + $0x8] sm:$0xff]
  %v2372 = vld [vmem:[%s5 + $0x10] sm:$0xff]
  %v2373 = vld [vmem:[%s5 + $0x18] sm:$0xff]
  %v2374 = vld [vmem:[%s5 + $0x20] sm:$0xff]
  %v2375 = vld [vmem:[%s5 + $0x28] sm:$0xff]
  %v2376 = vld [vmem:[%s5 + $0x30] sm:$0xff]
  %v2377 = vld [vmem:[%s5 + $0x38] sm:$0xff]
  %v2378 = vld [vmem:[%s6] sm:$0xff]
  %v2379 = vld [vmem:[%s6 + $0x8] sm:$0xff]
  %v2380 = vld [vmem:[%s6 + $0x10] sm:$0xff]
  %v2381 = vld [vmem:[%s6 + $0x18] sm:$0xff]
  %v2382 = vld [vmem:[%s6 + $0x20] sm:$0xff]
  %v2383 = vld [vmem:[%s6 + $0x28] sm:$0xff]
  %v2384 = vld [vmem:[%s6 + $0x30] sm:$0xff]
  %v2385 = vld [vmem:[%s6 + $0x38] sm:$0xff]
  %2387 = vset.pattern.permute.xlu0 0
  %2388 = vperm.xlu0 %2387, %v2378
  %v2389 = vpop.permute.xlu0 %2388
  %2392 = vset.pattern.permute.xlu0 0
  %2393 = vperm.xlu0 %2392, %v2379
  %v2394 = vpop.permute.xlu0 %2393
  %2397 = vset.pattern.permute.xlu0 0
  %2398 = vperm.xlu0 %2397, %v2380
  %v2399 = vpop.permute.xlu0 %2398
  %2402 = vset.pattern.permute.xlu0 0
  %2403 = vperm.xlu0 %2402, %v2381
  %v2404 = vpop.permute.xlu0 %2403
  %2407 = vset.pattern.permute.xlu0 0
  %2408 = vperm.xlu0 %2407, %v2382
  %v2409 = vpop.permute.xlu0 %2408
  %2412 = vset.pattern.permute.xlu0 0
  %2413 = vperm.xlu0 %2412, %v2383
  %v2414 = vpop.permute.xlu0 %2413
  %2417 = vset.pattern.permute.xlu0 0
  %2418 = vperm.xlu0 %2417, %v2384
  %v2419 = vpop.permute.xlu0 %2418
  %2422 = vset.pattern.permute.xlu0 0
  %2423 = vperm.xlu0 %2422, %v2385
  %v2424 = vpop.permute.xlu0 %2423
  %v2427 = vsel %vm1400, %v2370, 0
  %v2430 = vsel %vm1400, %v2371, 0
  %v2433 = vsel %vm1400, %v2372, 0
  %v2436 = vsel %vm1400, %v2373, 0
  %v2439 = vsel %vm1400, %v2374, 0
  %v2442 = vsel %vm1400, %v2375, 0
  %v2445 = vsel %vm1400, %v2376, 0
  %v2448 = vsel %vm1400, %v2377, 0
  %2450 = vmatprep.subr.mxu0 0.0
  %2451 = vmatpush1.msra.mxu0 0.0
  %2452 = vmatprep.subr.mxu0 0.0
  %2453 = vmatpush1.msra.mxu0 0.0
  %2454 = vmatprep.subr.mxu0 0.0
  %2455 = vmatpush1.msra.mxu0 0.0
  %2456 = vmatprep.subr.mxu0 0.0
  %2457 = vmatpush1.msra.mxu0 0.0
  %2458 = vmatprep.subr.mxu0 0.0
  %2459 = vmatpush1.msra.mxu0 0.0
  %2460 = vmatprep.subr.mxu0 0.0
  %2461 = vmatpush1.msra.mxu0 0.0
  %2462 = vmatprep.subr.mxu0 0.0
  %2463 = vmatpush1.msra.mxu0 0.0
  %2464 = vmatprep.subr.mxu0 0.0
  %2465 = vmatpush1.msra.mxu0 0.0
  %2466 = vmatprep.subr.mxu0 0.0
  %2467 = vmatpush1.msra.mxu0 %v2369
  %2468 = vmatprep.subr.mxu0 0.0
  %2469 = vmatpush1.msra.mxu0 %v2265
  %2470 = vmatprep.subr.mxu0 0.0
  %2471 = vmatpush1.msra.mxu0 %v2161
  %2472 = vmatprep.subr.mxu0 0.0
  %2473 = vmatpush1.msra.mxu0 %v2057
  %2474 = vmatprep.subr.mxu0 0.0
  %2475 = vmatpush1.msra.mxu0 %v1953
  %2476 = vmatprep.subr.mxu0 0.0
  %2477 = vmatpush1.msra.mxu0 %v1849
  %2478 = vmatprep.subr.mxu0 0.0
  %2479 = vmatpush1.msra.mxu0 %v1745
  %2480 = vmatprep.subr.mxu0 0.0
  %2481 = vmatpush1.msra.mxu0 %v1641
  %2482 = vmatprep.subr.mxu0 0.0
  %2483 = vmatpush2.msra.mxu0 0.0
  %2484 = vmatprep.subr.mxu0 0.0
  %2485 = vmatpush2.msra.mxu0 0.0
  %2486 = vmatprep.subr.mxu0 0.0
  %2487 = vmatpush2.msra.mxu0 0.0
  %2488 = vmatprep.subr.mxu0 0.0
  %2489 = vmatpush2.msra.mxu0 0.0
  %2490 = vmatprep.subr.mxu0 0.0
  %2491 = vmatpush2.msra.mxu0 0.0
  %2492 = vmatprep.subr.mxu0 0.0
  %2493 = vmatpush2.msra.mxu0 0.0
  %2494 = vmatprep.subr.mxu0 0.0
  %2495 = vmatpush2.msra.mxu0 0.0
  %2496 = vmatprep.subr.mxu0 0.0
  %2497 = vmatpush2.msra.mxu0 0.0
  %2498 = vmatprep.subr.mxu0 0.0
  %2499 = vmatpush2.msra.mxu0 0.0
  %2500 = vmatprep.subr.mxu0 0.0
  %2501 = vmatpush2.msra.mxu0 0.0
  %2502 = vmatprep.subr.mxu0 0.0
  %2503 = vmatpush2.msra.mxu0 0.0
  %2504 = vmatprep.subr.mxu0 0.0
  %2505 = vmatpush2.msra.mxu0 0.0
  %2506 = vmatprep.subr.mxu0 0.0
  %2507 = vmatpush2.msra.mxu0 0.0
  %2508 = vmatprep.subr.mxu0 0.0
  %2509 = vmatpush2.msra.mxu0 0.0
  %2510 = vmatprep.subr.mxu0 0.0
  %2511 = vmatpush2.msra.mxu0 0.0
  %2512 = vmatprep.subr.mxu0 0.0
  %2513 = vmatpush2.msra.mxu0 0.0
  %2514 = vmatprep.mubr.f32.mxu0 0.0
  %2515 = vmatmul.mubr.f32.gmra.mxu0 %v2427
  %v2516 = vpop.f32.mrf.mxu0
  %v2517 = vadd.f32 %v2389, %v2516
  %v2518 = vpop.f32.mrf.mxu0
  %2519 = vmatprep.mubr.f32.mxu0 0.0
  %2520 = vmatmul.mubr.f32.gmra.mxu0 %v2430
  %v2521 = vpop.f32.mrf.mxu0
  %v2522 = vadd.f32 %v2394, %v2521
  %v2523 = vpop.f32.mrf.mxu0
  %2524 = vmatprep.mubr.f32.mxu0 0.0
  %2525 = vmatmul.mubr.f32.gmra.mxu0 %v2433
  %v2526 = vpop.f32.mrf.mxu0
  %v2527 = vadd.f32 %v2399, %v2526
  %v2528 = vpop.f32.mrf.mxu0
  %2529 = vmatprep.mubr.f32.mxu0 0.0
  %2530 = vmatmul.mubr.f32.gmra.mxu0 %v2436
  %v2531 = vpop.f32.mrf.mxu0
  %v2532 = vadd.f32 %v2404, %v2531
  %v2533 = vpop.f32.mrf.mxu0
  %2534 = vmatprep.mubr.f32.mxu0 0.0
  %2535 = vmatmul.mubr.f32.gmra.mxu0 %v2439
  %v2536 = vpop.f32.mrf.mxu0
  %v2537 = vadd.f32 %v2409, %v2536
  %v2538 = vpop.f32.mrf.mxu0
  %2539 = vmatprep.mubr.f32.mxu0 0.0
  %2540 = vmatmul.mubr.f32.gmra.mxu0 %v2442
  %v2541 = vpop.f32.mrf.mxu0
  %v2542 = vadd.f32 %v2414, %v2541
  %v2543 = vpop.f32.mrf.mxu0
  %2544 = vmatprep.mubr.f32.mxu0 0.0
  %2545 = vmatmul.mubr.f32.gmra.mxu0 %v2445
  %v2546 = vpop.f32.mrf.mxu0
  %v2547 = vadd.f32 %v2419, %v2546
  %v2548 = vpop.f32.mrf.mxu0
  %2549 = vmatprep.mubr.f32.mxu0 0.0
  %2550 = vmatmul.mubr.f32.gmra.mxu0 %v2448
  %v2551 = vpop.f32.mrf.mxu0
  %v2552 = vadd.f32 %v2424, %v2551
  %v2553 = vpop.f32.mrf.mxu0
  %2554 = vdwg.mxu0
  %v2555 = vmul.f32 %v467, %v2517
  %v2556 = vmul.f32 %v472, %v2522
  %v2557 = vmul.f32 %v477, %v2527
  %v2558 = vmul.f32 %v482, %v2532
  %v2559 = vmul.f32 %v487, %v2537
  %v2560 = vmul.f32 %v492, %v2542
  %v2561 = vmul.f32 %v497, %v2547
  %v2562 = vmul.f32 %v502, %v2552
  %v2563 = vand.u32 2147483647, %v2555
  %vm2564 = vcmp.le.f32.partialorder %v2563, 0.7853982
  %vm2565 = vcmp.lt.s32.totalorder %v2555, 0
  %v2566 = vand.u32 %v2555, 2139095040
  %v2567 = vshrl.u32 %v2566, 23
  %v2568 = vsub.s32 %v2567, 127
  %v2569 = vand.u32 2147483647, %v2555
  %v2570 = vand.u32 %v2569, 8388607
  %v2571 = vor.u32 %v2570, 8388608
  %v2572 = vsub.s32 0, %v2571
  %v2573 = vadd.s32 %v2568, 1
  %vm2574 = vcmp.gt.s32.totalorder %v2573, 0
  %v2575 = vsel %vm2574, %v2573, 0
  %v2576 = vshrl.u32 %v2575, 5
  %v2577 = vand.u32 %v2575, 31
  %v2578 = vsub.s32 32, %v2577
  %v2579 = vshrl.u32 683565275, %v2578
  %v2580 = vshll.u32 683565275, %v2577
  %v2581 = vshrl.u32 2475754826, %v2578
  %v2582 = vor.u32 %v2580, %v2581
  %v2583 = vshll.u32 2475754826, %v2577
  %v2584 = vshrl.u32 2131351028, %v2578
  %v2585 = vor.u32 %v2583, %v2584
  %v2586 = vshll.u32 2131351028, %v2577
  %v2587 = vshrl.u32 2102212464, %v2578
  %v2588 = vor.u32 %v2586, %v2587
  %v2589 = vshll.u32 2102212464, %v2577
  %v2590 = vshrl.u32 920167782, %v2578
  %v2591 = vor.u32 %v2589, %v2590
  %v2592 = vshll.u32 920167782, %v2577
  %v2593 = vshrl.u32 1326507024, %v2578
  %v2594 = vor.u32 %v2592, %v2593
  %vm2595 = vcmp.lt.s32.totalorder %v2576, 1
  %vm2596 = vcmp.lt.s32.totalorder %v2576, 2
  %vm2597 = vcmp.lt.s32.totalorder %v2576, 3
  %vm2598 = vcmp.lt.s32.totalorder %v2576, 4
  %v2599 = vsel %vm2595, %v2579, %v2582
  %v2600 = vsel %vm2598, %v2588, 2102212464
  %v2601 = vsel %vm2597, %v2585, %v2600
  %v2602 = vsel %vm2596, %v2599, %v2601
  %v2603 = vsel %vm2595, %v2582, %v2585
  %v2604 = vsel %vm2598, %v2591, 920167782
  %v2605 = vsel %vm2597, %v2588, %v2604
  %v2606 = vsel %vm2596, %v2603, %v2605
  %v2607 = vsel %vm2595, %v2585, %v2588
  %v2608 = vsel %vm2598, %v2594, 1326507024
  %v2609 = vsel %vm2597, %v2591, %v2608
  %v2610 = vsel %vm2596, %v2607, %v2609
  %v2611 = vshll.u32 %v2571, 8
  %v2612 = vmul.u32.u64.compose %v2611, %v2610
  %v2613 = vextract.low.u32 %v2612
  %v2614 = vextract.high.u32 %v2612
  %v2615 = vmul.u32.u64.compose %v2611, %v2606
  %v2616 = vextract.low.u32 %v2615
  %v2617 = vextract.high.u32 %v2615
  %v2618 = vmul.u32 %v2611, %v2602
  %v2619 = vadd.s32 %v2614, %v2616
  %vm2620 = vc.u32 %v2614, %v2616
  %v2621 = vadd.s32 %v2617, 1
  %v2622 = vsel %vm2620, %v2621, %v2617
  %v2623 = vadd.s32 %v2618, %v2622
  %v2624 = vadd.s32 %v2623, 536870912
  %v2625 = vshrl.u32 %v2624, 30
  %v2626 = vshll.u32 %v2625, 30
  %v2627 = vsub.s32 %v2623, %v2626
  %vm2628 = vcmp.lt.s32.totalorder %v2627, 0
  %v2629 = vsub.s32 0, %v2627
  %v2630 = vsel %vm2628, %v2629, %v2627
  %v2631 = vclz %v2630
  %v2632 = vsub.s32 %v2631, 2
  %vm2633 = vcmp.gt.s32.totalorder 0, %v2632
  %v2634 = vsel %vm2633, 0, %v2632
  %v2635 = vsub.s32 32, %v2634
  %v2636 = vshll.u32 %v2627, %v2634
  %v2637 = vshrl.u32 %v2619, %v2635
  %v2638 = vor.u32 %v2636, %v2637
  %v2639 = vsub.s32 4294967266, %v2634
  %v2640 = vadd.s32 %v2639, 127
  %v2641 = vshll.u32 %v2640, 23
  %v2642 = vor.u32 4788187, %v2641
  %v2643 = vand.u32 2147483647, %v2642
  %v2645 = vcvt.s32.f32 %v2638
  %v2646 = vmul.f32 %v2645, %v2643
  %v2647 = vxor.u32 %v2646, 2147483648
  %v2648 = vsel %vm2565, %v2647, %v2646
  %v2649 = vsub.s32 4, %v2625
  %v2650 = vsel %vm2565, %v2649, %v2625
  %v2651 = vsel %vm2564, %v2555, %v2648
  %v2652 = vsel %vm2564, 0, %v2650
  %v2653 = vcosq.f32.pop %v2651
  %v2654 = vsinq.f32.pop %v2651
  %vm2655 = vweird.f32 %v2555
  %v2656 = vadd.s32 %v2652, 3
  %v2657 = vand.u32 %v2656, 3
  %vm2658 = vcmp.lt.s32.totalorder %v2657, 2
  %vm2659 = vcmp.eq.s32.totalorder %v2657, 0
  %v2660 = vxor.u32 %v2654, 2147483648
  %v2661 = vsel %vm2659, %v2653, %v2660
  %vm2662 = vcmp.eq.s32.totalorder %v2657, 2
  %v2663 = vxor.u32 %v2653, 2147483648
  %v2664 = vsel %vm2662, %v2663, %v2654
  %v2665 = vsel %vm2658, %v2661, %v2664
  %v2666 = vsel %vm2655, nan, %v2665
  %v2667 = vand.u32 2147483647, %v2556
  %vm2668 = vcmp.le.f32.partialorder %v2667, 0.7853982
  %vm2669 = vcmp.lt.s32.totalorder %v2556, 0
  %v2670 = vand.u32 %v2556, 2139095040
  %v2671 = vshrl.u32 %v2670, 23
  %v2672 = vsub.s32 %v2671, 127
  %v2673 = vand.u32 2147483647, %v2556
  %v2674 = vand.u32 %v2673, 8388607
  %v2675 = vor.u32 %v2674, 8388608
  %v2676 = vsub.s32 0, %v2675
  %v2677 = vadd.s32 %v2672, 1
  %vm2678 = vcmp.gt.s32.totalorder %v2677, 0
  %v2679 = vsel %vm2678, %v2677, 0
  %v2680 = vshrl.u32 %v2679, 5
  %v2681 = vand.u32 %v2679, 31
  %v2682 = vsub.s32 32, %v2681
  %v2683 = vshrl.u32 683565275, %v2682
  %v2684 = vshll.u32 683565275, %v2681
  %v2685 = vshrl.u32 2475754826, %v2682
  %v2686 = vor.u32 %v2684, %v2685
  %v2687 = vshll.u32 2475754826, %v2681
  %v2688 = vshrl.u32 2131351028, %v2682
  %v2689 = vor.u32 %v2687, %v2688
  %v2690 = vshll.u32 2131351028, %v2681
  %v2691 = vshrl.u32 2102212464, %v2682
  %v2692 = vor.u32 %v2690, %v2691
  %v2693 = vshll.u32 2102212464, %v2681
  %v2694 = vshrl.u32 920167782, %v2682
  %v2695 = vor.u32 %v2693, %v2694
  %v2696 = vshll.u32 920167782, %v2681
  %v2697 = vshrl.u32 1326507024, %v2682
  %v2698 = vor.u32 %v2696, %v2697
  %vm2699 = vcmp.lt.s32.totalorder %v2680, 1
  %vm2700 = vcmp.lt.s32.totalorder %v2680, 2
  %vm2701 = vcmp.lt.s32.totalorder %v2680, 3
  %vm2702 = vcmp.lt.s32.totalorder %v2680, 4
  %v2703 = vsel %vm2699, %v2683, %v2686
  %v2704 = vsel %vm2702, %v2692, 2102212464
  %v2705 = vsel %vm2701, %v2689, %v2704
  %v2706 = vsel %vm2700, %v2703, %v2705
  %v2707 = vsel %vm2699, %v2686, %v2689
  %v2708 = vsel %vm2702, %v2695, 920167782
  %v2709 = vsel %vm2701, %v2692, %v2708
  %v2710 = vsel %vm2700, %v2707, %v2709
  %v2711 = vsel %vm2699, %v2689, %v2692
  %v2712 = vsel %vm2702, %v2698, 1326507024
  %v2713 = vsel %vm2701, %v2695, %v2712
  %v2714 = vsel %vm2700, %v2711, %v2713
  %v2715 = vshll.u32 %v2675, 8
  %v2716 = vmul.u32.u64.compose %v2715, %v2714
  %v2717 = vextract.low.u32 %v2716
  %v2718 = vextract.high.u32 %v2716
  %v2719 = vmul.u32.u64.compose %v2715, %v2710
  %v2720 = vextract.low.u32 %v2719
  %v2721 = vextract.high.u32 %v2719
  %v2722 = vmul.u32 %v2715, %v2706
  %v2723 = vadd.s32 %v2718, %v2720
  %vm2724 = vc.u32 %v2718, %v2720
  %v2725 = vadd.s32 %v2721, 1
  %v2726 = vsel %vm2724, %v2725, %v2721
  %v2727 = vadd.s32 %v2722, %v2726
  %v2728 = vadd.s32 %v2727, 536870912
  %v2729 = vshrl.u32 %v2728, 30
  %v2730 = vshll.u32 %v2729, 30
  %v2731 = vsub.s32 %v2727, %v2730
  %vm2732 = vcmp.lt.s32.totalorder %v2731, 0
  %v2733 = vsub.s32 0, %v2731
  %v2734 = vsel %vm2732, %v2733, %v2731
  %v2735 = vclz %v2734
  %v2736 = vsub.s32 %v2735, 2
  %vm2737 = vcmp.gt.s32.totalorder 0, %v2736
  %v2738 = vsel %vm2737, 0, %v2736
  %v2739 = vsub.s32 32, %v2738
  %v2740 = vshll.u32 %v2731, %v2738
  %v2741 = vshrl.u32 %v2723, %v2739
  %v2742 = vor.u32 %v2740, %v2741
  %v2743 = vsub.s32 4294967266, %v2738
  %v2744 = vadd.s32 %v2743, 127
  %v2745 = vshll.u32 %v2744, 23
  %v2746 = vor.u32 4788187, %v2745
  %v2747 = vand.u32 2147483647, %v2746
  %v2749 = vcvt.s32.f32 %v2742
  %v2750 = vmul.f32 %v2749, %v2747
  %v2751 = vxor.u32 %v2750, 2147483648
  %v2752 = vsel %vm2669, %v2751, %v2750
  %v2753 = vsub.s32 4, %v2729
  %v2754 = vsel %vm2669, %v2753, %v2729
  %v2755 = vsel %vm2668, %v2556, %v2752
  %v2756 = vsel %vm2668, 0, %v2754
  %v2757 = vcosq.f32.pop %v2755
  %v2758 = vsinq.f32.pop %v2755
  %vm2759 = vweird.f32 %v2556
  %v2760 = vadd.s32 %v2756, 3
  %v2761 = vand.u32 %v2760, 3
  %vm2762 = vcmp.lt.s32.totalorder %v2761, 2
  %vm2763 = vcmp.eq.s32.totalorder %v2761, 0
  %v2764 = vxor.u32 %v2758, 2147483648
  %v2765 = vsel %vm2763, %v2757, %v2764
  %vm2766 = vcmp.eq.s32.totalorder %v2761, 2
  %v2767 = vxor.u32 %v2757, 2147483648
  %v2768 = vsel %vm2766, %v2767, %v2758
  %v2769 = vsel %vm2762, %v2765, %v2768
  %v2770 = vsel %vm2759, nan, %v2769
  %v2771 = vand.u32 2147483647, %v2557
  %vm2772 = vcmp.le.f32.partialorder %v2771, 0.7853982
  %vm2773 = vcmp.lt.s32.totalorder %v2557, 0
  %v2774 = vand.u32 %v2557, 2139095040
  %v2775 = vshrl.u32 %v2774, 23
  %v2776 = vsub.s32 %v2775, 127
  %v2777 = vand.u32 2147483647, %v2557
  %v2778 = vand.u32 %v2777, 8388607
  %v2779 = vor.u32 %v2778, 8388608
  %v2780 = vsub.s32 0, %v2779
  %v2781 = vadd.s32 %v2776, 1
  %vm2782 = vcmp.gt.s32.totalorder %v2781, 0
  %v2783 = vsel %vm2782, %v2781, 0
  %v2784 = vshrl.u32 %v2783, 5
  %v2785 = vand.u32 %v2783, 31
  %v2786 = vsub.s32 32, %v2785
  %v2787 = vshrl.u32 683565275, %v2786
  %v2788 = vshll.u32 683565275, %v2785
  %v2789 = vshrl.u32 2475754826, %v2786
  %v2790 = vor.u32 %v2788, %v2789
  %v2791 = vshll.u32 2475754826, %v2785
  %v2792 = vshrl.u32 2131351028, %v2786
  %v2793 = vor.u32 %v2791, %v2792
  %v2794 = vshll.u32 2131351028, %v2785
  %v2795 = vshrl.u32 2102212464, %v2786
  %v2796 = vor.u32 %v2794, %v2795
  %v2797 = vshll.u32 2102212464, %v2785
  %v2798 = vshrl.u32 920167782, %v2786
  %v2799 = vor.u32 %v2797, %v2798
  %v2800 = vshll.u32 920167782, %v2785
  %v2801 = vshrl.u32 1326507024, %v2786
  %v2802 = vor.u32 %v2800, %v2801
  %vm2803 = vcmp.lt.s32.totalorder %v2784, 1
  %vm2804 = vcmp.lt.s32.totalorder %v2784, 2
  %vm2805 = vcmp.lt.s32.totalorder %v2784, 3
  %vm2806 = vcmp.lt.s32.totalorder %v2784, 4
  %v2807 = vsel %vm2803, %v2787, %v2790
  %v2808 = vsel %vm2806, %v2796, 2102212464
  %v2809 = vsel %vm2805, %v2793, %v2808
  %v2810 = vsel %vm2804, %v2807, %v2809
  %v2811 = vsel %vm2803, %v2790, %v2793
  %v2812 = vsel %vm2806, %v2799, 920167782
  %v2813 = vsel %vm2805, %v2796, %v2812
  %v2814 = vsel %vm2804, %v2811, %v2813
  %v2815 = vsel %vm2803, %v2793, %v2796
  %v2816 = vsel %vm2806, %v2802, 1326507024
  %v2817 = vsel %vm2805, %v2799, %v2816
  %v2818 = vsel %vm2804, %v2815, %v2817
  %v2819 = vshll.u32 %v2779, 8
  %v2820 = vmul.u32.u64.compose %v2819, %v2818
  %v2821 = vextract.low.u32 %v2820
  %v2822 = vextract.high.u32 %v2820
  %v2823 = vmul.u32.u64.compose %v2819, %v2814
  %v2824 = vextract.low.u32 %v2823
  %v2825 = vextract.high.u32 %v2823
  %v2826 = vmul.u32 %v2819, %v2810
  %v2827 = vadd.s32 %v2822, %v2824
  %vm2828 = vc.u32 %v2822, %v2824
  %v2829 = vadd.s32 %v2825, 1
  %v2830 = vsel %vm2828, %v2829, %v2825
  %v2831 = vadd.s32 %v2826, %v2830
  %v2832 = vadd.s32 %v2831, 536870912
  %v2833 = vshrl.u32 %v2832, 30
  %v2834 = vshll.u32 %v2833, 30
  %v2835 = vsub.s32 %v2831, %v2834
  %vm2836 = vcmp.lt.s32.totalorder %v2835, 0
  %v2837 = vsub.s32 0, %v2835
  %v2838 = vsel %vm2836, %v2837, %v2835
  %v2839 = vclz %v2838
  %v2840 = vsub.s32 %v2839, 2
  %vm2841 = vcmp.gt.s32.totalorder 0, %v2840
  %v2842 = vsel %vm2841, 0, %v2840
  %v2843 = vsub.s32 32, %v2842
  %v2844 = vshll.u32 %v2835, %v2842
  %v2845 = vshrl.u32 %v2827, %v2843
  %v2846 = vor.u32 %v2844, %v2845
  %v2847 = vsub.s32 4294967266, %v2842
  %v2848 = vadd.s32 %v2847, 127
  %v2849 = vshll.u32 %v2848, 23
  %v2850 = vor.u32 4788187, %v2849
  %v2851 = vand.u32 2147483647, %v2850
  %v2853 = vcvt.s32.f32 %v2846
  %v2854 = vmul.f32 %v2853, %v2851
  %v2855 = vxor.u32 %v2854, 2147483648
  %v2856 = vsel %vm2773, %v2855, %v2854
  %v2857 = vsub.s32 4, %v2833
  %v2858 = vsel %vm2773, %v2857, %v2833
  %v2859 = vsel %vm2772, %v2557, %v2856
  %v2860 = vsel %vm2772, 0, %v2858
  %v2861 = vcosq.f32.pop %v2859
  %v2862 = vsinq.f32.pop %v2859
  %vm2863 = vweird.f32 %v2557
  %v2864 = vadd.s32 %v2860, 3
  %v2865 = vand.u32 %v2864, 3
  %vm2866 = vcmp.lt.s32.totalorder %v2865, 2
  %vm2867 = vcmp.eq.s32.totalorder %v2865, 0
  %v2868 = vxor.u32 %v2862, 2147483648
  %v2869 = vsel %vm2867, %v2861, %v2868
  %vm2870 = vcmp.eq.s32.totalorder %v2865, 2
  %v2871 = vxor.u32 %v2861, 2147483648
  %v2872 = vsel %vm2870, %v2871, %v2862
  %v2873 = vsel %vm2866, %v2869, %v2872
  %v2874 = vsel %vm2863, nan, %v2873
  %v2875 = vand.u32 2147483647, %v2558
  %vm2876 = vcmp.le.f32.partialorder %v2875, 0.7853982
  %vm2877 = vcmp.lt.s32.totalorder %v2558, 0
  %v2878 = vand.u32 %v2558, 2139095040
  %v2879 = vshrl.u32 %v2878, 23
  %v2880 = vsub.s32 %v2879, 127
  %v2881 = vand.u32 2147483647, %v2558
  %v2882 = vand.u32 %v2881, 8388607
  %v2883 = vor.u32 %v2882, 8388608
  %v2884 = vsub.s32 0, %v2883
  %v2885 = vadd.s32 %v2880, 1
  %vm2886 = vcmp.gt.s32.totalorder %v2885, 0
  %v2887 = vsel %vm2886, %v2885, 0
  %v2888 = vshrl.u32 %v2887, 5
  %v2889 = vand.u32 %v2887, 31
  %v2890 = vsub.s32 32, %v2889
  %v2891 = vshrl.u32 683565275, %v2890
  %v2892 = vshll.u32 683565275, %v2889
  %v2893 = vshrl.u32 2475754826, %v2890
  %v2894 = vor.u32 %v2892, %v2893
  %v2895 = vshll.u32 2475754826, %v2889
  %v2896 = vshrl.u32 2131351028, %v2890
  %v2897 = vor.u32 %v2895, %v2896
  %v2898 = vshll.u32 2131351028, %v2889
  %v2899 = vshrl.u32 2102212464, %v2890
  %v2900 = vor.u32 %v2898, %v2899
  %v2901 = vshll.u32 2102212464, %v2889
  %v2902 = vshrl.u32 920167782, %v2890
  %v2903 = vor.u32 %v2901, %v2902
  %v2904 = vshll.u32 920167782, %v2889
  %v2905 = vshrl.u32 1326507024, %v2890
  %v2906 = vor.u32 %v2904, %v2905
  %vm2907 = vcmp.lt.s32.totalorder %v2888, 1
  %vm2908 = vcmp.lt.s32.totalorder %v2888, 2
  %vm2909 = vcmp.lt.s32.totalorder %v2888, 3
  %vm2910 = vcmp.lt.s32.totalorder %v2888, 4
  %v2911 = vsel %vm2907, %v2891, %v2894
  %v2912 = vsel %vm2910, %v2900, 2102212464
  %v2913 = vsel %vm2909, %v2897, %v2912
  %v2914 = vsel %vm2908, %v2911, %v2913
  %v2915 = vsel %vm2907, %v2894, %v2897
  %v2916 = vsel %vm2910, %v2903, 920167782
  %v2917 = vsel %vm2909, %v2900, %v2916
  %v2918 = vsel %vm2908, %v2915, %v2917
  %v2919 = vsel %vm2907, %v2897, %v2900
  %v2920 = vsel %vm2910, %v2906, 1326507024
  %v2921 = vsel %vm2909, %v2903, %v2920
  %v2922 = vsel %vm2908, %v2919, %v2921
  %v2923 = vshll.u32 %v2883, 8
  %v2924 = vmul.u32.u64.compose %v2923, %v2922
  %v2925 = vextract.low.u32 %v2924
  %v2926 = vextract.high.u32 %v2924
  %v2927 = vmul.u32.u64.compose %v2923, %v2918
  %v2928 = vextract.low.u32 %v2927
  %v2929 = vextract.high.u32 %v2927
  %v2930 = vmul.u32 %v2923, %v2914
  %v2931 = vadd.s32 %v2926, %v2928
  %vm2932 = vc.u32 %v2926, %v2928
  %v2933 = vadd.s32 %v2929, 1
  %v2934 = vsel %vm2932, %v2933, %v2929
  %v2935 = vadd.s32 %v2930, %v2934
  %v2936 = vadd.s32 %v2935, 536870912
  %v2937 = vshrl.u32 %v2936, 30
  %v2938 = vshll.u32 %v2937, 30
  %v2939 = vsub.s32 %v2935, %v2938
  %vm2940 = vcmp.lt.s32.totalorder %v2939, 0
  %v2941 = vsub.s32 0, %v2939
  %v2942 = vsel %vm2940, %v2941, %v2939
  %v2943 = vclz %v2942
  %v2944 = vsub.s32 %v2943, 2
  %vm2945 = vcmp.gt.s32.totalorder 0, %v2944
  %v2946 = vsel %vm2945, 0, %v2944
  %v2947 = vsub.s32 32, %v2946
  %v2948 = vshll.u32 %v2939, %v2946
  %v2949 = vshrl.u32 %v2931, %v2947
  %v2950 = vor.u32 %v2948, %v2949
  %v2951 = vsub.s32 4294967266, %v2946
  %v2952 = vadd.s32 %v2951, 127
  %v2953 = vshll.u32 %v2952, 23
  %v2954 = vor.u32 4788187, %v2953
  %v2955 = vand.u32 2147483647, %v2954
  %v2957 = vcvt.s32.f32 %v2950
  %v2958 = vmul.f32 %v2957, %v2955
  %v2959 = vxor.u32 %v2958, 2147483648
  %v2960 = vsel %vm2877, %v2959, %v2958
  %v2961 = vsub.s32 4, %v2937
  %v2962 = vsel %vm2877, %v2961, %v2937
  %v2963 = vsel %vm2876, %v2558, %v2960
  %v2964 = vsel %vm2876, 0, %v2962
  %v2965 = vcosq.f32.pop %v2963
  %v2966 = vsinq.f32.pop %v2963
  %vm2967 = vweird.f32 %v2558
  %v2968 = vadd.s32 %v2964, 3
  %v2969 = vand.u32 %v2968, 3
  %vm2970 = vcmp.lt.s32.totalorder %v2969, 2
  %vm2971 = vcmp.eq.s32.totalorder %v2969, 0
  %v2972 = vxor.u32 %v2966, 2147483648
  %v2973 = vsel %vm2971, %v2965, %v2972
  %vm2974 = vcmp.eq.s32.totalorder %v2969, 2
  %v2975 = vxor.u32 %v2965, 2147483648
  %v2976 = vsel %vm2974, %v2975, %v2966
  %v2977 = vsel %vm2970, %v2973, %v2976
  %v2978 = vsel %vm2967, nan, %v2977
  %v2979 = vand.u32 2147483647, %v2559
  %vm2980 = vcmp.le.f32.partialorder %v2979, 0.7853982
  %vm2981 = vcmp.lt.s32.totalorder %v2559, 0
  %v2982 = vand.u32 %v2559, 2139095040
  %v2983 = vshrl.u32 %v2982, 23
  %v2984 = vsub.s32 %v2983, 127
  %v2985 = vand.u32 2147483647, %v2559
  %v2986 = vand.u32 %v2985, 8388607
  %v2987 = vor.u32 %v2986, 8388608
  %v2988 = vsub.s32 0, %v2987
  %v2989 = vadd.s32 %v2984, 1
  %vm2990 = vcmp.gt.s32.totalorder %v2989, 0
  %v2991 = vsel %vm2990, %v2989, 0
  %v2992 = vshrl.u32 %v2991, 5
  %v2993 = vand.u32 %v2991, 31
  %v2994 = vsub.s32 32, %v2993
  %v2995 = vshrl.u32 683565275, %v2994
  %v2996 = vshll.u32 683565275, %v2993
  %v2997 = vshrl.u32 2475754826, %v2994
  %v2998 = vor.u32 %v2996, %v2997
  %v2999 = vshll.u32 2475754826, %v2993
  %v3000 = vshrl.u32 2131351028, %v2994
  %v3001 = vor.u32 %v2999, %v3000
  %v3002 = vshll.u32 2131351028, %v2993
  %v3003 = vshrl.u32 2102212464, %v2994
  %v3004 = vor.u32 %v3002, %v3003
  %v3005 = vshll.u32 2102212464, %v2993
  %v3006 = vshrl.u32 920167782, %v2994
  %v3007 = vor.u32 %v3005, %v3006
  %v3008 = vshll.u32 920167782, %v2993
  %v3009 = vshrl.u32 1326507024, %v2994
  %v3010 = vor.u32 %v3008, %v3009
  %vm3011 = vcmp.lt.s32.totalorder %v2992, 1
  %vm3012 = vcmp.lt.s32.totalorder %v2992, 2
  %vm3013 = vcmp.lt.s32.totalorder %v2992, 3
  %vm3014 = vcmp.lt.s32.totalorder %v2992, 4
  %v3015 = vsel %vm3011, %v2995, %v2998
  %v3016 = vsel %vm3014, %v3004, 2102212464
  %v3017 = vsel %vm3013, %v3001, %v3016
  %v3018 = vsel %vm3012, %v3015, %v3017
  %v3019 = vsel %vm3011, %v2998, %v3001
  %v3020 = vsel %vm3014, %v3007, 920167782
  %v3021 = vsel %vm3013, %v3004, %v3020
  %v3022 = vsel %vm3012, %v3019, %v3021
  %v3023 = vsel %vm3011, %v3001, %v3004
  %v3024 = vsel %vm3014, %v3010, 1326507024
  %v3025 = vsel %vm3013, %v3007, %v3024
  %v3026 = vsel %vm3012, %v3023, %v3025
  %v3027 = vshll.u32 %v2987, 8
  %v3028 = vmul.u32.u64.compose %v3027, %v3026
  %v3029 = vextract.low.u32 %v3028
  %v3030 = vextract.high.u32 %v3028
  %v3031 = vmul.u32.u64.compose %v3027, %v3022
  %v3032 = vextract.low.u32 %v3031
  %v3033 = vextract.high.u32 %v3031
  %v3034 = vmul.u32 %v3027, %v3018
  %v3035 = vadd.s32 %v3030, %v3032
  %vm3036 = vc.u32 %v3030, %v3032
  %v3037 = vadd.s32 %v3033, 1
  %v3038 = vsel %vm3036, %v3037, %v3033
  %v3039 = vadd.s32 %v3034, %v3038
  %v3040 = vadd.s32 %v3039, 536870912
  %v3041 = vshrl.u32 %v3040, 30
  %v3042 = vshll.u32 %v3041, 30
  %v3043 = vsub.s32 %v3039, %v3042
  %vm3044 = vcmp.lt.s32.totalorder %v3043, 0
  %v3045 = vsub.s32 0, %v3043
  %v3046 = vsel %vm3044, %v3045, %v3043
  %v3047 = vclz %v3046
  %v3048 = vsub.s32 %v3047, 2
  %vm3049 = vcmp.gt.s32.totalorder 0, %v3048
  %v3050 = vsel %vm3049, 0, %v3048
  %v3051 = vsub.s32 32, %v3050
  %v3052 = vshll.u32 %v3043, %v3050
  %v3053 = vshrl.u32 %v3035, %v3051
  %v3054 = vor.u32 %v3052, %v3053
  %v3055 = vsub.s32 4294967266, %v3050
  %v3056 = vadd.s32 %v3055, 127
  %v3057 = vshll.u32 %v3056, 23
  %v3058 = vor.u32 4788187, %v3057
  %v3059 = vand.u32 2147483647, %v3058
  %v3061 = vcvt.s32.f32 %v3054
  %v3062 = vmul.f32 %v3061, %v3059
  %v3063 = vxor.u32 %v3062, 2147483648
  %v3064 = vsel %vm2981, %v3063, %v3062
  %v3065 = vsub.s32 4, %v3041
  %v3066 = vsel %vm2981, %v3065, %v3041
  %v3067 = vsel %vm2980, %v2559, %v3064
  %v3068 = vsel %vm2980, 0, %v3066
  %v3069 = vcosq.f32.pop %v3067
  %v3070 = vsinq.f32.pop %v3067
  %vm3071 = vweird.f32 %v2559
  %v3072 = vadd.s32 %v3068, 3
  %v3073 = vand.u32 %v3072, 3
  %vm3074 = vcmp.lt.s32.totalorder %v3073, 2
  %vm3075 = vcmp.eq.s32.totalorder %v3073, 0
  %v3076 = vxor.u32 %v3070, 2147483648
  %v3077 = vsel %vm3075, %v3069, %v3076
  %vm3078 = vcmp.eq.s32.totalorder %v3073, 2
  %v3079 = vxor.u32 %v3069, 2147483648
  %v3080 = vsel %vm3078, %v3079, %v3070
  %v3081 = vsel %vm3074, %v3077, %v3080
  %v3082 = vsel %vm3071, nan, %v3081
  %v3083 = vand.u32 2147483647, %v2560
  %vm3084 = vcmp.le.f32.partialorder %v3083, 0.7853982
  %vm3085 = vcmp.lt.s32.totalorder %v2560, 0
  %v3086 = vand.u32 %v2560, 2139095040
  %v3087 = vshrl.u32 %v3086, 23
  %v3088 = vsub.s32 %v3087, 127
  %v3089 = vand.u32 2147483647, %v2560
  %v3090 = vand.u32 %v3089, 8388607
  %v3091 = vor.u32 %v3090, 8388608
  %v3092 = vsub.s32 0, %v3091
  %v3093 = vadd.s32 %v3088, 1
  %vm3094 = vcmp.gt.s32.totalorder %v3093, 0
  %v3095 = vsel %vm3094, %v3093, 0
  %v3096 = vshrl.u32 %v3095, 5
  %v3097 = vand.u32 %v3095, 31
  %v3098 = vsub.s32 32, %v3097
  %v3099 = vshrl.u32 683565275, %v3098
  %v3100 = vshll.u32 683565275, %v3097
  %v3101 = vshrl.u32 2475754826, %v3098
  %v3102 = vor.u32 %v3100, %v3101
  %v3103 = vshll.u32 2475754826, %v3097
  %v3104 = vshrl.u32 2131351028, %v3098
  %v3105 = vor.u32 %v3103, %v3104
  %v3106 = vshll.u32 2131351028, %v3097
  %v3107 = vshrl.u32 2102212464, %v3098
  %v3108 = vor.u32 %v3106, %v3107
  %v3109 = vshll.u32 2102212464, %v3097
  %v3110 = vshrl.u32 920167782, %v3098
  %v3111 = vor.u32 %v3109, %v3110
  %v3112 = vshll.u32 920167782, %v3097
  %v3113 = vshrl.u32 1326507024, %v3098
  %v3114 = vor.u32 %v3112, %v3113
  %vm3115 = vcmp.lt.s32.totalorder %v3096, 1
  %vm3116 = vcmp.lt.s32.totalorder %v3096, 2
  %vm3117 = vcmp.lt.s32.totalorder %v3096, 3
  %vm3118 = vcmp.lt.s32.totalorder %v3096, 4
  %v3119 = vsel %vm3115, %v3099, %v3102
  %v3120 = vsel %vm3118, %v3108, 2102212464
  %v3121 = vsel %vm3117, %v3105, %v3120
  %v3122 = vsel %vm3116, %v3119, %v3121
  %v3123 = vsel %vm3115, %v3102, %v3105
  %v3124 = vsel %vm3118, %v3111, 920167782
  %v3125 = vsel %vm3117, %v3108, %v3124
  %v3126 = vsel %vm3116, %v3123, %v3125
  %v3127 = vsel %vm3115, %v3105, %v3108
  %v3128 = vsel %vm3118, %v3114, 1326507024
  %v3129 = vsel %vm3117, %v3111, %v3128
  %v3130 = vsel %vm3116, %v3127, %v3129
  %v3131 = vshll.u32 %v3091, 8
  %v3132 = vmul.u32.u64.compose %v3131, %v3130
  %v3133 = vextract.low.u32 %v3132
  %v3134 = vextract.high.u32 %v3132
  %v3135 = vmul.u32.u64.compose %v3131, %v3126
  %v3136 = vextract.low.u32 %v3135
  %v3137 = vextract.high.u32 %v3135
  %v3138 = vmul.u32 %v3131, %v3122
  %v3139 = vadd.s32 %v3134, %v3136
  %vm3140 = vc.u32 %v3134, %v3136
  %v3141 = vadd.s32 %v3137, 1
  %v3142 = vsel %vm3140, %v3141, %v3137
  %v3143 = vadd.s32 %v3138, %v3142
  %v3144 = vadd.s32 %v3143, 536870912
  %v3145 = vshrl.u32 %v3144, 30
  %v3146 = vshll.u32 %v3145, 30
  %v3147 = vsub.s32 %v3143, %v3146
  %vm3148 = vcmp.lt.s32.totalorder %v3147, 0
  %v3149 = vsub.s32 0, %v3147
  %v3150 = vsel %vm3148, %v3149, %v3147
  %v3151 = vclz %v3150
  %v3152 = vsub.s32 %v3151, 2
  %vm3153 = vcmp.gt.s32.totalorder 0, %v3152
  %v3154 = vsel %vm3153, 0, %v3152
  %v3155 = vsub.s32 32, %v3154
  %v3156 = vshll.u32 %v3147, %v3154
  %v3157 = vshrl.u32 %v3139, %v3155
  %v3158 = vor.u32 %v3156, %v3157
  %v3159 = vsub.s32 4294967266, %v3154
  %v3160 = vadd.s32 %v3159, 127
  %v3161 = vshll.u32 %v3160, 23
  %v3162 = vor.u32 4788187, %v3161
  %v3163 = vand.u32 2147483647, %v3162
  %v3165 = vcvt.s32.f32 %v3158
  %v3166 = vmul.f32 %v3165, %v3163
  %v3167 = vxor.u32 %v3166, 2147483648
  %v3168 = vsel %vm3085, %v3167, %v3166
  %v3169 = vsub.s32 4, %v3145
  %v3170 = vsel %vm3085, %v3169, %v3145
  %v3171 = vsel %vm3084, %v2560, %v3168
  %v3172 = vsel %vm3084, 0, %v3170
  %v3173 = vcosq.f32.pop %v3171
  %v3174 = vsinq.f32.pop %v3171
  %vm3175 = vweird.f32 %v2560
  %v3176 = vadd.s32 %v3172, 3
  %v3177 = vand.u32 %v3176, 3
  %vm3178 = vcmp.lt.s32.totalorder %v3177, 2
  %vm3179 = vcmp.eq.s32.totalorder %v3177, 0
  %v3180 = vxor.u32 %v3174, 2147483648
  %v3181 = vsel %vm3179, %v3173, %v3180
  %vm3182 = vcmp.eq.s32.totalorder %v3177, 2
  %v3183 = vxor.u32 %v3173, 2147483648
  %v3184 = vsel %vm3182, %v3183, %v3174
  %v3185 = vsel %vm3178, %v3181, %v3184
  %v3186 = vsel %vm3175, nan, %v3185
  %v3187 = vand.u32 2147483647, %v2561
  %vm3188 = vcmp.le.f32.partialorder %v3187, 0.7853982
  %vm3189 = vcmp.lt.s32.totalorder %v2561, 0
  %v3190 = vand.u32 %v2561, 2139095040
  %v3191 = vshrl.u32 %v3190, 23
  %v3192 = vsub.s32 %v3191, 127
  %v3193 = vand.u32 2147483647, %v2561
  %v3194 = vand.u32 %v3193, 8388607
  %v3195 = vor.u32 %v3194, 8388608
  %v3196 = vsub.s32 0, %v3195
  %v3197 = vadd.s32 %v3192, 1
  %vm3198 = vcmp.gt.s32.totalorder %v3197, 0
  %v3199 = vsel %vm3198, %v3197, 0
  %v3200 = vshrl.u32 %v3199, 5
  %v3201 = vand.u32 %v3199, 31
  %v3202 = vsub.s32 32, %v3201
  %v3203 = vshrl.u32 683565275, %v3202
  %v3204 = vshll.u32 683565275, %v3201
  %v3205 = vshrl.u32 2475754826, %v3202
  %v3206 = vor.u32 %v3204, %v3205
  %v3207 = vshll.u32 2475754826, %v3201
  %v3208 = vshrl.u32 2131351028, %v3202
  %v3209 = vor.u32 %v3207, %v3208
  %v3210 = vshll.u32 2131351028, %v3201
  %v3211 = vshrl.u32 2102212464, %v3202
  %v3212 = vor.u32 %v3210, %v3211
  %v3213 = vshll.u32 2102212464, %v3201
  %v3214 = vshrl.u32 920167782, %v3202
  %v3215 = vor.u32 %v3213, %v3214
  %v3216 = vshll.u32 920167782, %v3201
  %v3217 = vshrl.u32 1326507024, %v3202
  %v3218 = vor.u32 %v3216, %v3217
  %vm3219 = vcmp.lt.s32.totalorder %v3200, 1
  %vm3220 = vcmp.lt.s32.totalorder %v3200, 2
  %vm3221 = vcmp.lt.s32.totalorder %v3200, 3
  %vm3222 = vcmp.lt.s32.totalorder %v3200, 4
  %v3223 = vsel %vm3219, %v3203, %v3206
  %v3224 = vsel %vm3222, %v3212, 2102212464
  %v3225 = vsel %vm3221, %v3209, %v3224
  %v3226 = vsel %vm3220, %v3223, %v3225
  %v3227 = vsel %vm3219, %v3206, %v3209
  %v3228 = vsel %vm3222, %v3215, 920167782
  %v3229 = vsel %vm3221, %v3212, %v3228
  %v3230 = vsel %vm3220, %v3227, %v3229
  %v3231 = vsel %vm3219, %v3209, %v3212
  %v3232 = vsel %vm3222, %v3218, 1326507024
  %v3233 = vsel %vm3221, %v3215, %v3232
  %v3234 = vsel %vm3220, %v3231, %v3233
  %v3235 = vshll.u32 %v3195, 8
  %v3236 = vmul.u32.u64.compose %v3235, %v3234
  %v3237 = vextract.low.u32 %v3236
  %v3238 = vextract.high.u32 %v3236
  %v3239 = vmul.u32.u64.compose %v3235, %v3230
  %v3240 = vextract.low.u32 %v3239
  %v3241 = vextract.high.u32 %v3239
  %v3242 = vmul.u32 %v3235, %v3226
  %v3243 = vadd.s32 %v3238, %v3240
  %vm3244 = vc.u32 %v3238, %v3240
  %v3245 = vadd.s32 %v3241, 1
  %v3246 = vsel %vm3244, %v3245, %v3241
  %v3247 = vadd.s32 %v3242, %v3246
  %v3248 = vadd.s32 %v3247, 536870912
  %v3249 = vshrl.u32 %v3248, 30
  %v3250 = vshll.u32 %v3249, 30
  %v3251 = vsub.s32 %v3247, %v3250
  %vm3252 = vcmp.lt.s32.totalorder %v3251, 0
  %v3253 = vsub.s32 0, %v3251
  %v3254 = vsel %vm3252, %v3253, %v3251
  %v3255 = vclz %v3254
  %v3256 = vsub.s32 %v3255, 2
  %vm3257 = vcmp.gt.s32.totalorder 0, %v3256
  %v3258 = vsel %vm3257, 0, %v3256
  %v3259 = vsub.s32 32, %v3258
  %v3260 = vshll.u32 %v3251, %v3258
  %v3261 = vshrl.u32 %v3243, %v3259
  %v3262 = vor.u32 %v3260, %v3261
  %v3263 = vsub.s32 4294967266, %v3258
  %v3264 = vadd.s32 %v3263, 127
  %v3265 = vshll.u32 %v3264, 23
  %v3266 = vor.u32 4788187, %v3265
  %v3267 = vand.u32 2147483647, %v3266
  %v3269 = vcvt.s32.f32 %v3262
  %v3270 = vmul.f32 %v3269, %v3267
  %v3271 = vxor.u32 %v3270, 2147483648
  %v3272 = vsel %vm3189, %v3271, %v3270
  %v3273 = vsub.s32 4, %v3249
  %v3274 = vsel %vm3189, %v3273, %v3249
  %v3275 = vsel %vm3188, %v2561, %v3272
  %v3276 = vsel %vm3188, 0, %v3274
  %v3277 = vcosq.f32.pop %v3275
  %v3278 = vsinq.f32.pop %v3275
  %vm3279 = vweird.f32 %v2561
  %v3280 = vadd.s32 %v3276, 3
  %v3281 = vand.u32 %v3280, 3
  %vm3282 = vcmp.lt.s32.totalorder %v3281, 2
  %vm3283 = vcmp.eq.s32.totalorder %v3281, 0
  %v3284 = vxor.u32 %v3278, 2147483648
  %v3285 = vsel %vm3283, %v3277, %v3284
  %vm3286 = vcmp.eq.s32.totalorder %v3281, 2
  %v3287 = vxor.u32 %v3277, 2147483648
  %v3288 = vsel %vm3286, %v3287, %v3278
  %v3289 = vsel %vm3282, %v3285, %v3288
  %v3290 = vsel %vm3279, nan, %v3289
  %v3291 = vand.u32 2147483647, %v2562
  %vm3292 = vcmp.le.f32.partialorder %v3291, 0.7853982
  %vm3293 = vcmp.lt.s32.totalorder %v2562, 0
  %v3294 = vand.u32 %v2562, 2139095040
  %v3295 = vshrl.u32 %v3294, 23
  %v3296 = vsub.s32 %v3295, 127
  %v3297 = vand.u32 2147483647, %v2562
  %v3298 = vand.u32 %v3297, 8388607
  %v3299 = vor.u32 %v3298, 8388608
  %v3300 = vsub.s32 0, %v3299
  %v3301 = vadd.s32 %v3296, 1
  %vm3302 = vcmp.gt.s32.totalorder %v3301, 0
  %v3303 = vsel %vm3302, %v3301, 0
  %v3304 = vshrl.u32 %v3303, 5
  %v3305 = vand.u32 %v3303, 31
  %v3306 = vsub.s32 32, %v3305
  %v3307 = vshrl.u32 683565275, %v3306
  %v3308 = vshll.u32 683565275, %v3305
  %v3309 = vshrl.u32 2475754826, %v3306
  %v3310 = vor.u32 %v3308, %v3309
  %v3311 = vshll.u32 2475754826, %v3305
  %v3312 = vshrl.u32 2131351028, %v3306
  %v3313 = vor.u32 %v3311, %v3312
  %v3314 = vshll.u32 2131351028, %v3305
  %v3315 = vshrl.u32 2102212464, %v3306
  %v3316 = vor.u32 %v3314, %v3315
  %v3317 = vshll.u32 2102212464, %v3305
  %v3318 = vshrl.u32 920167782, %v3306
  %v3319 = vor.u32 %v3317, %v3318
  %v3320 = vshll.u32 920167782, %v3305
  %v3321 = vshrl.u32 1326507024, %v3306
  %v3322 = vor.u32 %v3320, %v3321
  %vm3323 = vcmp.lt.s32.totalorder %v3304, 1
  %vm3324 = vcmp.lt.s32.totalorder %v3304, 2
  %vm3325 = vcmp.lt.s32.totalorder %v3304, 3
  %vm3326 = vcmp.lt.s32.totalorder %v3304, 4
  %v3327 = vsel %vm3323, %v3307, %v3310
  %v3328 = vsel %vm3326, %v3316, 2102212464
  %v3329 = vsel %vm3325, %v3313, %v3328
  %v3330 = vsel %vm3324, %v3327, %v3329
  %v3331 = vsel %vm3323, %v3310, %v3313
  %v3332 = vsel %vm3326, %v3319, 920167782
  %v3333 = vsel %vm3325, %v3316, %v3332
  %v3334 = vsel %vm3324, %v3331, %v3333
  %v3335 = vsel %vm3323, %v3313, %v3316
  %v3336 = vsel %vm3326, %v3322, 1326507024
  %v3337 = vsel %vm3325, %v3319, %v3336
  %v3338 = vsel %vm3324, %v3335, %v3337
  %v3339 = vshll.u32 %v3299, 8
  %v3340 = vmul.u32.u64.compose %v3339, %v3338
  %v3341 = vextract.low.u32 %v3340
  %v3342 = vextract.high.u32 %v3340
  %v3343 = vmul.u32.u64.compose %v3339, %v3334
  %v3344 = vextract.low.u32 %v3343
  %v3345 = vextract.high.u32 %v3343
  %v3346 = vmul.u32 %v3339, %v3330
  %v3347 = vadd.s32 %v3342, %v3344
  %vm3348 = vc.u32 %v3342, %v3344
  %v3349 = vadd.s32 %v3345, 1
  %v3350 = vsel %vm3348, %v3349, %v3345
  %v3351 = vadd.s32 %v3346, %v3350
  %v3352 = vadd.s32 %v3351, 536870912
  %v3353 = vshrl.u32 %v3352, 30
  %v3354 = vshll.u32 %v3353, 30
  %v3355 = vsub.s32 %v3351, %v3354
  %vm3356 = vcmp.lt.s32.totalorder %v3355, 0
  %v3357 = vsub.s32 0, %v3355
  %v3358 = vsel %vm3356, %v3357, %v3355
  %v3359 = vclz %v3358
  %v3360 = vsub.s32 %v3359, 2
  %vm3361 = vcmp.gt.s32.totalorder 0, %v3360
  %v3362 = vsel %vm3361, 0, %v3360
  %v3363 = vsub.s32 32, %v3362
  %v3364 = vshll.u32 %v3355, %v3362
  %v3365 = vshrl.u32 %v3347, %v3363
  %v3366 = vor.u32 %v3364, %v3365
  %v3367 = vsub.s32 4294967266, %v3362
  %v3368 = vadd.s32 %v3367, 127
  %v3369 = vshll.u32 %v3368, 23
  %v3370 = vor.u32 4788187, %v3369
  %v3371 = vand.u32 2147483647, %v3370
  %v3373 = vcvt.s32.f32 %v3366
  %v3374 = vmul.f32 %v3373, %v3371
  %v3375 = vxor.u32 %v3374, 2147483648
  %v3376 = vsel %vm3293, %v3375, %v3374
  %v3377 = vsub.s32 4, %v3353
  %v3378 = vsel %vm3293, %v3377, %v3353
  %v3379 = vsel %vm3292, %v2562, %v3376
  %v3380 = vsel %vm3292, 0, %v3378
  %v3381 = vcosq.f32.pop %v3379
  %v3382 = vsinq.f32.pop %v3379
  %vm3383 = vweird.f32 %v2562
  %v3384 = vadd.s32 %v3380, 3
  %v3385 = vand.u32 %v3384, 3
  %vm3386 = vcmp.lt.s32.totalorder %v3385, 2
  %vm3387 = vcmp.eq.s32.totalorder %v3385, 0
  %v3388 = vxor.u32 %v3382, 2147483648
  %v3389 = vsel %vm3387, %v3381, %v3388
  %vm3390 = vcmp.eq.s32.totalorder %v3385, 2
  %v3391 = vxor.u32 %v3381, 2147483648
  %v3392 = vsel %vm3390, %v3391, %v3382
  %v3393 = vsel %vm3386, %v3389, %v3392
  %v3394 = vsel %vm3383, nan, %v3393
  %v3395 = vld [vmem:[%s7] sm:$0xff]
  %v3396 = vld [vmem:[%s7 + $0x8] sm:$0xff]
  %v3398 = vsel %vm1400, %v3395, 0
  %v3401 = vsel %vm1400, %v3396, 0
  %3403 = vmatprep.subr.mxu0 0.0
  %3404 = vmatpush1.msra.mxu0 0.0
  %3405 = vmatprep.subr.mxu0 0.0
  %3406 = vmatpush1.msra.mxu0 0.0
  %3407 = vmatprep.subr.mxu0 0.0
  %3408 = vmatpush1.msra.mxu0 0.0
  %3409 = vmatprep.subr.mxu0 0.0
  %3410 = vmatpush1.msra.mxu0 0.0
  %3411 = vmatprep.subr.mxu0 0.0
  %3412 = vmatpush1.msra.mxu0 0.0
  %3413 = vmatprep.subr.mxu0 0.0
  %3414 = vmatpush1.msra.mxu0 0.0
  %3415 = vmatprep.subr.mxu0 0.0
  %3416 = vmatpush1.msra.mxu0 0.0
  %3417 = vmatprep.subr.mxu0 0.0
  %3418 = vmatpush1.msra.mxu0 0.0
  %3419 = vmatprep.subr.mxu0 0.0
  %3420 = vmatpush1.msra.mxu0 %v3394
  %3421 = vmatprep.subr.mxu0 0.0
  %3422 = vmatpush1.msra.mxu0 %v3290
  %3423 = vmatprep.subr.mxu0 0.0
  %3424 = vmatpush1.msra.mxu0 %v3186
  %3425 = vmatprep.subr.mxu0 0.0
  %3426 = vmatpush1.msra.mxu0 %v3082
  %3427 = vmatprep.subr.mxu0 0.0
  %3428 = vmatpush1.msra.mxu0 %v2978
  %3429 = vmatprep.subr.mxu0 0.0
  %3430 = vmatpush1.msra.mxu0 %v2874
  %3431 = vmatprep.subr.mxu0 0.0
  %3432 = vmatpush1.msra.mxu0 %v2770
  %3433 = vmatprep.subr.mxu0 0.0
  %3434 = vmatpush1.msra.mxu0 %v2666
  %3435 = vmatprep.subr.mxu0 0.0
  %3436 = vmatpush2.msra.mxu0 0.0
  %3437 = vmatprep.subr.mxu0 0.0
  %3438 = vmatpush2.msra.mxu0 0.0
  %3439 = vmatprep.subr.mxu0 0.0
  %3440 = vmatpush2.msra.mxu0 0.0
  %3441 = vmatprep.subr.mxu0 0.0
  %3442 = vmatpush2.msra.mxu0 0.0
  %3443 = vmatprep.subr.mxu0 0.0
  %3444 = vmatpush2.msra.mxu0 0.0
  %3445 = vmatprep.subr.mxu0 0.0
  %3446 = vmatpush2.msra.mxu0 0.0
  %3447 = vmatprep.subr.mxu0 0.0
  %3448 = vmatpush2.msra.mxu0 0.0
  %3449 = vmatprep.subr.mxu0 0.0
  %3450 = vmatpush2.msra.mxu0 0.0
  %3451 = vmatprep.subr.mxu0 0.0
  %3452 = vmatpush2.msra.mxu0 0.0
  %3453 = vmatprep.subr.mxu0 0.0
  %3454 = vmatpush2.msra.mxu0 0.0
  %3455 = vmatprep.subr.mxu0 0.0
  %3456 = vmatpush2.msra.mxu0 0.0
  %3457 = vmatprep.subr.mxu0 0.0
  %3458 = vmatpush2.msra.mxu0 0.0
  %3459 = vmatprep.subr.mxu0 0.0
  %3460 = vmatpush2.msra.mxu0 0.0
  %3461 = vmatprep.subr.mxu0 0.0
  %3462 = vmatpush2.msra.mxu0 0.0
  %3463 = vmatprep.subr.mxu0 0.0
  %3464 = vmatpush2.msra.mxu0 0.0
  %3465 = vmatprep.subr.mxu0 0.0
  %3466 = vmatpush2.msra.mxu0 0.0
  %3467 = vmatprep.mubr.f32.mxu0 0.0
  %3468 = vmatmul.mubr.f32.gmra.mxu0 %v3398
  %v3469 = vpop.f32.mrf.mxu0
  %v3470 = vadd.f32 0.0, %v3469
  %v3471 = vpop.f32.mrf.mxu0
  %3472 = vmatprep.mubr.f32.mxu0 0.0
  %3473 = vmatmul.mubr.f32.gmra.mxu0 %v3401
  %v3474 = vpop.f32.mrf.mxu0
  %v3475 = vadd.f32 0.0, %v3474
  %v3476 = vpop.f32.mrf.mxu0
  %3477 = vdwg.mxu0
  %v3478 = vsub.f32 0.0, %v38
  %v3479 = vld [vmem:[%s8] sm:$0xff]
  %v3480 = vld [vmem:[%s8 + $0x8] sm:$0xff]
  %v3481 = vand.u32 2147483647, %v3479
  %v3482 = vand.u32 2147483647, %v3480
  %3484 = vset.pattern.permute.xlu0 0
  %3485 = vperm.xlu0 %3484, %v3481
  %v3486 = vpop.permute.xlu0 %3485
  %3489 = vset.pattern.permute.xlu0 0
  %3490 = vperm.xlu0 %3489, %v3482
  %v3491 = vpop.permute.xlu0 %3490
  %v3493 = vmul.f32 %v3478, %v3486
  %v3494 = vmul.f32 %v3478, %v3491
  %v3495 = vmul.f32 %v3493, 1.442695
  %v3496 = vpow.pop %v3495
  %v3497 = vmul.f32 %v3494, 1.442695
  %v3498 = vpow.pop %v3497
  %v3499 = vmul.f32 %v3470, %v3496
  %v3500 = vmul.f32 %v3475, %v3498
  %3501 = vst [vmem:[%s9] sm:$0xff] %v3499
  %3502 = vst [vmem:[%s9 + $0x8] sm:$0xff] %v3500
  // Predicated region
  $region38: #{hyena_block_forward.1} parent=0 // pred_check
    _
  $region39: #{hyena_block_forward.1} parent=0 // pred_check_branch
    %3504 = sbr.rel (0) target = $region41
  $region40: #{hyena_block_forward.1} parent=0 // pred_region
    _
  $region41: #{hyena_block_forward.1} parent=0 // pred_fallthru
    _
  // Predicated region
  $region42: #{hyena_block_forward.1} parent=0 // pred_check
    _
  $region43: #{hyena_block_forward.1} parent=0 // pred_check_branch
    %3506 = sbr.rel (0) target = $region45
  $region44: #{hyena_block_forward.1} parent=0 // pred_region
    _
  $region45: #{hyena_block_forward.1} parent=0 // pred_fallthru
    _

// kernel: reverse.1
$region0: #{reverse.1}
  %s0 = inlined_call_operand.vmem [shape: f32[2,16,127], index: 0, kind: input, shape index: {}]
  %s1 = inlined_call_operand.vmem [shape: f32[2,16,127], index: 1, kind: output, shape index: {}]
  %v2 = vlaneseq
  %v3 = vsub.s32 126, %v2
  %4 = vset.pattern.permute.xlu0 %v3
  $region1: #{reverse.1} parent=0
    #allocation0 [shape = 'u8[16384]{0}', space=vmem, size = 0x4000, scoped, tag = 'operand span for operand 0']
    #allocation1 [shape = 'u8[16384]{0}', space=vmem, size = 0x4000, scoped, tag = 'operand span for operand 1']
    // Predicated region
    $region2: #{reverse.1} parent=1 // pred_check
      _
    $region3: #{reverse.1} parent=1 // pred_check_branch
      %6 = sbr.rel (0) target = $region5
    $region4: #{reverse.1} parent=1 // pred_region
      // Predicated region
      $region6: #{reverse.1} parent=4 // pred_check
        _
      $region7: #{reverse.1} parent=4 // pred_check_branch
        %8 = sbr.rel (0) target = $region9
      $region8: #{reverse.1} parent=4 // pred_region
        // Predicated region
        $region21: #{reverse.1} parent=8 // pred_check
          _
        $region22: #{reverse.1} parent=8 // pred_check_branch
          %30 = sbr.rel (0) target = $region24
        $region23: #{reverse.1} parent=8 // pred_region
          loop: start=0, step=1, limit=1
          $region25: #{reverse.1} parent=23 // loop_pre_header
            _
          $region26: #{reverse.1} parent=23 // loop_header
            %s32 = sphi 0, %s36
            %p33 = scmp.ge.s32.totalorder %s32, 1
            %s37 = sphi %s0, %s0
            %s38 = sphi [#allocation0], [#allocation0]
          $region27: #{reverse.1} parent=23 // loop_header_branch
            %35 = sbr.rel (%p33) target = $region31
          $region28: #{reverse.1} parent=23 // loop_body
            %v39 = vld [vmem:[%s37] sm:$0xff]
            %40 = vst [vmem:[%s38] sm:$0xff] %v39
            %v41 = vld [vmem:[%s37 + $0x8] sm:$0xff]
            %42 = vst [vmem:[%s38 + $0x8] sm:$0xff] %v41
            %v43 = vld [vmem:[%s37 + $0x10] sm:$0xff]
            %44 = vst [vmem:[%s38 + $0x10] sm:$0xff] %v43
            %v45 = vld [vmem:[%s37 + $0x18] sm:$0xff]
            %46 = vst [vmem:[%s38 + $0x18] sm:$0xff] %v45
          $region29: #{reverse.1} parent=23 // loop_footer
            %s36 = sadd.s32 1, %s32
          $region30: #{reverse.1} parent=23 // loop_footer_branch
            %31 = sbr.rel target = $region26
          $region31: #{reverse.1} parent=23 // loop_exit
            _
        $region24: #{reverse.1} parent=8 // pred_fallthru
          _
        // Predicated region
        $region32: #{reverse.1} parent=8 // pred_check
          _
        $region33: #{reverse.1} parent=8 // pred_check_branch
          %48 = sbr.rel target = $region35
        $region34: #{reverse.1} parent=8 // pred_region
          _
        $region35: #{reverse.1} parent=8 // pred_fallthru
          _
      $region9: #{reverse.1} parent=4 // pred_fallthru
        _
      // Predicated region
      $region10: #{reverse.1} parent=4 // pred_check
        _
      $region11: #{reverse.1} parent=4 // pred_check_branch
        %10 = sbr.rel target = $region13
      $region12: #{reverse.1} parent=4 // pred_region
        %s12 = ssub.s32 256, 1
        loop: start=0, step=1, limit=1
        $region14: #{reverse.1} parent=12 // loop_pre_header
          _
        $region15: #{reverse.1} parent=12 // loop_header
          %s14 = sphi 0, %s18
          %p15 = scmp.ge.s32.totalorder %s14, 1
          %s19 = sphi %s0, %s0
          %s20 = sphi [#allocation0], [#allocation0]
        $region16: #{reverse.1} parent=12 // loop_header_branch
          %17 = sbr.rel (%p15) target = $region20
        $region17: #{reverse.1} parent=12 // loop_body
          %v21 = vld [vmem:[%s19] sm:%s12]
          %22 = vst [vmem:[%s20] sm:%s12] %v21
          %v23 = vld [vmem:[%s19 + $0x8] sm:%s12]
          %24 = vst [vmem:[%s20 + $0x8] sm:%s12] %v23
          %v25 = vld [vmem:[%s19 + $0x10] sm:%s12]
          %26 = vst [vmem:[%s20 + $0x10] sm:%s12] %v25
          %v27 = vld [vmem:[%s19 + $0x18] sm:%s12]
          %28 = vst [vmem:[%s20 + $0x18] sm:%s12] %v27
        $region18: #{reverse.1} parent=12 // loop_footer
          %s18 = sadd.s32 1, %s14
        $region19: #{reverse.1} parent=12 // loop_footer_branch
          %13 = sbr.rel target = $region15
        $region20: #{reverse.1} parent=12 // loop_exit
          _
      $region13: #{reverse.1} parent=4 // pred_fallthru
        _
    $region5: #{reverse.1} parent=1 // pred_fallthru
      _
    %49 = vnop
    %v50 = vld [vmem:[#allocation0] sm:$0xff]
    %51 = vperm.xlu0 %4, %v50
    %v52 = vpop.permute.xlu0 %51
    %53 = vst [vmem:[#allocation1] sm:$0xff] %v52
    %s54 = scalar_lea.vmem [#allocation1], 8
    %s55 = scalar_lea.vmem [#allocation0], 8
    %v56 = vld [vmem:[%s55] sm:$0xff]
    %57 = vperm.xlu0 %4, %v56
    %v58 = vpop.permute.xlu0 %57
    %59 = vst [vmem:[%s54] sm:$0xff] %v58
    %s60 = scalar_lea.vmem [#allocation1], 16
    %s61 = scalar_lea.vmem [#allocation0], 16
    %v62 = vld [vmem:[%s61] sm:$0xff]
    %63 = vperm.xlu0 %4, %v62
    %v64 = vpop.permute.xlu0 %63
    %65 = vst [vmem:[%s60] sm:$0xff] %v64
    %s66 = scalar_lea.vmem %s60, 8 [#allocation1]
    %s67 = scalar_lea.vmem %s61, 8 [#allocation0]
    %v68 = vld [vmem:[%s67] sm:$0xff]
    %69 = vperm.xlu0 %4, %v68
    %v70 = vpop.permute.xlu0 %69
    %71 = vst [vmem:[%s66] sm:$0xff] %v70
    // Predicated region
    $region36: #{reverse.1} parent=1 // pred_check
      _
    $region37: #{reverse.1} parent=1 // pred_check_branch
      %73 = sbr.rel (0) target = $region39
    $region38: #{reverse.1} parent=1 // pred_region
      // Predicated region
      $region40: #{reverse.1} parent=38 // pred_check
        _
      $region41: #{reverse.1} parent=38 // pred_check_branch
        %75 = sbr.rel (0) target = $region43
      $region42: #{reverse.1} parent=38 // pred_region
        // Predicated region
        $region55: #{reverse.1} parent=42 // pred_check
          _
        $region56: #{reverse.1} parent=42 // pred_check_branch
          %97 = sbr.rel (0) target = $region58
        $region57: #{reverse.1} parent=42 // pred_region
          loop: start=0, step=1, limit=1
          $region59: #{reverse.1} parent=57 // loop_pre_header
            _
          $region60: #{reverse.1} parent=57 // loop_header
            %s99 = sphi 0, %s103
            %p100 = scmp.ge.s32.totalorder %s99, 1
            %s104 = sphi [#allocation1], [#allocation1]
            %s105 = sphi %s1, %s1
          $region61: #{reverse.1} parent=57 // loop_header_branch
            %102 = sbr.rel (%p100) target = $region65
          $region62: #{reverse.1} parent=57 // loop_body
            %v106 = vld [vmem:[%s104] sm:$0xff]
            %107 = vst [vmem:[%s105] sm:$0xff] %v106
            %v108 = vld [vmem:[%s104 + $0x8] sm:$0xff]
            %109 = vst [vmem:[%s105 + $0x8] sm:$0xff] %v108
            %v110 = vld [vmem:[%s104 + $0x10] sm:$0xff]
            %111 = vst [vmem:[%s105 + $0x10] sm:$0xff] %v110
            %v112 = vld [vmem:[%s104 + $0x18] sm:$0xff]
            %113 = vst [vmem:[%s105 + $0x18] sm:$0xff] %v112
          $region63: #{reverse.1} parent=57 // loop_footer
            %s103 = sadd.s32 1, %s99
          $region64: #{reverse.1} parent=57 // loop_footer_branch
            %98 = sbr.rel target = $region60
          $region65: #{reverse.1} parent=57 // loop_exit
            _
        $region58: #{reverse.1} parent=42 // pred_fallthru
          _
        // Predicated region
        $region66: #{reverse.1} parent=42 // pred_check
          _
        $region67: #{reverse.1} parent=42 // pred_check_branch
          %115 = sbr.rel target = $region69
        $region68: #{reverse.1} parent=42 // pred_region
          _
        $region69: #{reverse.1} parent=42 // pred_fallthru
          _
      $region43: #{reverse.1} parent=38 // pred_fallthru
        _
      // Predicated region
      $region44: #{reverse.1} parent=38 // pred_check
        _
      $region45: #{reverse.1} parent=38 // pred_check_branch
        %77 = sbr.rel target = $region47
      $region46: #{reverse.1} parent=38 // pred_region
        %s79 = ssub.s32 256, 1
        loop: start=0, step=1, limit=1
        $region48: #{reverse.1} parent=46 // loop_pre_header
          _
        $region49: #{reverse.1} parent=46 // loop_header
          %s81 = sphi 0, %s85
          %p82 = scmp.ge.s32.totalorder %s81, 1
          %s86 = sphi [#allocation1], [#allocation1]
          %s87 = sphi %s1, %s1
        $region50: #{reverse.1} parent=46 // loop_header_branch
          %84 = sbr.rel (%p82) target = $region54
        $region51: #{reverse.1} parent=46 // loop_body
          %v88 = vld [vmem:[%s86] sm:%s79]
          %89 = vst [vmem:[%s87] sm:%s79] %v88
          %v90 = vld [vmem:[%s86 + $0x8] sm:%s79]
          %91 = vst [vmem:[%s87 + $0x8] sm:%s79] %v90
          %v92 = vld [vmem:[%s86 + $0x10] sm:%s79]
          %93 = vst [vmem:[%s87 + $0x10] sm:%s79] %v92
          %v94 = vld [vmem:[%s86 + $0x18] sm:%s79]
          %95 = vst [vmem:[%s87 + $0x18] sm:%s79] %v94
        $region52: #{reverse.1} parent=46 // loop_footer
          %s85 = sadd.s32 1, %s81
        $region53: #{reverse.1} parent=46 // loop_footer_branch
          %80 = sbr.rel target = $region49
        $region54: #{reverse.1} parent=46 // loop_exit
          _
      $region47: #{reverse.1} parent=38 // pred_fallthru
        _
    $region39: #{reverse.1} parent=1 // pred_fallthru
      _
    %116 = vnop

</llo_original>
